<compile_context>
chip_gen: v7x
topology: tpu7x:2x2x1
jax: 0.10.0
libtpu: 0.0.40
codegen_flags: <defaults>
</compile_context>

<pallas_src>
import functools

import jax
import jax.numpy as jnp
from jax import lax
from jax.experimental import pallas as pl
from jax.experimental.pallas import tpu as pltpu

LANE = 128      # lane width: feature dims / gate blocks padded to this
SUBLANE = 8     # f32 sublane: batch padded to this


def _round_up(x, m):
    return (x + m - 1) // m * m


def _sigmoid(x):
    # tanh-based sigmoid: one EUP transcendental instead of exp + reciprocal.
    return 0.5 * (jnp.tanh(0.5 * x) + 1.0)


def _pick_time_tile(T, Bp, requested=None, target_rows=512):
    """Largest Tt <= requested dividing T with Tt*Bp 16-row aligned.

    Default targets Tt*Bp ~ 512 rows (amortizes per-grid-step overhead while
    leaving VMEM headroom).  Batch padding to a sublane multiple is handled in
    the wrapper, so the old degenerate Tt=T fallback is gone.
    """
    if requested is None:
        requested = max(1, target_rows // max(Bp, 1))
    tt = max(1, min(int(requested), T))
    while tt >= 1:
        if T % tt == 0 and ((tt * Bp) % 16 == 0 or tt == T):
            return tt
        tt -= 1
    return T


# ----------------------------------------------------------------------------
# Fused kernel: all LSTM layers + mean-over-time + FC.
#   grid = (T // Tt,)  sequential ("arbitrary").
#   For each time tile: layer 0 .. L-1 are run over the whole tile; layer l's
#   outputs are written to a VMEM slab consumed by layer l+1 (never HBM).
#   PyTorch gate order: i, f, g, o ;  c = f*c + i*g ; h = o*tanh(c)
# ----------------------------------------------------------------------------
def _fused_lstm_kernel(Tt, Bp, L, inv_T,
                       x_ref, wih0_ref, wihr_ref, whh_ref, b_ref,
                       wfc_ref, bfc_ref, out_ref,
                       h_sc, c_sc, acc_sc, slab_sc, xg_sc):
    Hp = h_sc.shape[-1]
    f32 = jnp.float32

    @pl.when(pl.program_id(0) == 0)
    def _init():
        h_sc[...] = jnp.zeros_like(h_sc)
        c_sc[...] = jnp.zeros_like(c_sc)
        acc_sc[...] = jnp.zeros_like(acc_sc)

    for l in range(L):
        is_last = (l == L - 1)

        # Hoisted input projection for the whole time tile (bias folded in):
        # one bf16 MXU matmul with M = Tt*Bp rows, staged into VMEM scratch so
        # the recurrence only keeps one (Bp, 4Hp) slice live per step.
        if l == 0:
            xg = jnp.dot(x_ref[...], wih0_ref[...],
                         preferred_element_type=f32)
        else:
            xg = jnp.dot(slab_sc[...].astype(jnp.bfloat16), wihr_ref[l - 1],
                         preferred_element_type=f32)
        xg_sc[...] = xg + b_ref[l]                                # (Tt*Bp, 4Hp)

        def step(s, carry, l=l, is_last=is_last):
            if is_last:
                h, c, acc = carry
            else:
                h, c = carry
            row = pl.multiple_of(s * Bp, Bp)                      # sublane-aligned
            gates = xg_sc[pl.ds(row, Bp), :] + jnp.dot(
                h.astype(jnp.bfloat16), whh_ref[l],
                preferred_element_type=f32)                       # (Bp, 4Hp)
            # Gate slices are lane-aligned (Hp is a multiple of 128).
            i_g = _sigmoid(gates[:, 0 * Hp:1 * Hp])
            f_g = _sigmoid(gates[:, 1 * Hp:2 * Hp])
            g_g = jnp.tanh(gates[:, 2 * Hp:3 * Hp])
            o_g = _sigmoid(gates[:, 3 * Hp:4 * Hp])
            c = f_g * c + i_g * g_g
            h = o_g * jnp.tanh(c)
            if is_last:
                return h, c, acc + h
            slab_sc[pl.ds(row, Bp), :] = h                        # next layer input
            return h, c

        if is_last:
            h, c, acc = lax.fori_loop(0, Tt, step,
                                      (h_sc[l], c_sc[l], acc_sc[...]),
                                      unroll=True)
            acc_sc[...] = acc
        else:
            h, c = lax.fori_loop(0, Tt, step, (h_sc[l], c_sc[l]), unroll=True)
        h_sc[l] = h
        c_sc[l] = c

    @pl.when(pl.program_id(0) == pl.num_programs(0) - 1)
    def _finalize():
        mean = acc_sc[...] * inv_T
        out_ref[...] = (jnp.dot(mean, wfc_ref[...], preferred_element_type=f32)
                        + bfc_ref[...]).astype(out_ref.dtype)


def _fused_lstm_call(x_flat, kp, T, Bp, *, time_tile=None):
    """x_flat: (T*Bp, Ep) bf16 time-major-flattened embeddings -> (Bp, C)."""
    Ep = x_flat.shape[-1]
    L, Hp = kp["whh"].shape[0], kp["whh"].shape[1]
    C = kp["fc_w"].shape[-1]
    Tt = _pick_time_tile(T, Bp, time_tile)
    kernel = functools.partial(_fused_lstm_kernel, Tt, Bp, L, 1.0 / T)

    def _weight_spec(shape):
        # Grid-invariant operands: single-buffered (no double-buffer copy) so
        # large weights stay resident once in VMEM (matters most on v7x).
        n = len(shape)
        return pl.BlockSpec(shape, lambda t: (0,) * n,
                            pipeline_mode=pl.Buffered(1))

    Lr = max(L - 1, 1)
    return pl.pallas_call(
        kernel,
        out_shape=jax.ShapeDtypeStruct((Bp, C), jnp.float32),
        grid_spec=pltpu.PrefetchScalarGridSpec(
            num_scalar_prefetch=0,
            grid=(T // Tt,),
            in_specs=[
                pl.BlockSpec((Tt * Bp, Ep), lambda t: (t, 0)),   # x time tile
                _weight_spec((Ep, 4 * Hp)),                      # wih, layer 0
                _weight_spec((Lr, Hp, 4 * Hp)),                  # wih, layers 1..
                _weight_spec((L, Hp, 4 * Hp)),                   # whh, all layers
                _weight_spec((L, 1, 4 * Hp)),                    # bias, all layers
                _weight_spec((Hp, C)),                           # fc weight
                _weight_spec((1, C)),                            # fc bias
            ],
            out_specs=pl.BlockSpec((Bp, C), lambda t: (0, 0)),
            scratch_shapes=[
                pltpu.VMEM((L, Bp, Hp), jnp.float32),            # h carries
                pltpu.VMEM((L, Bp, Hp), jnp.float32),            # c carries
                pltpu.VMEM((Bp, Hp), jnp.float32),               # sum_t h (last layer)
                pltpu.VMEM((Tt * Bp, Hp), jnp.float32),          # inter-layer slab
                pltpu.VMEM((Tt * Bp, 4 * Hp), jnp.float32),      # staged gate pre-acts
            ],
        ),
        compiler_params=pltpu.CompilerParams(
            # recurrence: the time axis MUST stay sequential.
            dimension_semantics=("arbitrary",),
            vmem_limit_bytes=64 * 1024 * 1024),
    )(x_flat, kp["wih0"], kp["wih_rest"], kp["whh"], kp["b"],
      kp["fc_w"], kp["fc_b"])


# ----------------------------------------------------------------------------
# Model forward (glue in plain JAX: embedding gather, batch padding, transpose
# to the lane-dense time-major layout). Dropout is identity (eval mode).
# ----------------------------------------------------------------------------
def lstm_model_forward(token_ids, kparams, *, time_tile=None):
    B, T = token_ids.shape
    Bp = _round_up(B, SUBLANE)
    emb = kparams["embedding"][token_ids]                # (B, T, Ep) bf16 gather
    x = jnp.transpose(emb, (1, 0, 2))                    # (T, B, Ep) time-major
    if Bp != B:
        x = jnp.pad(x, ((0, 0), (0, Bp - B), (0, 0)))    # pad batch to sublane mult
    x = x.reshape(T * Bp, -1)                            # lane-dense (T*Bp, Ep)
    logits = _fused_lstm_call(x, kparams, T, Bp, time_tile=time_tile)
    return logits[:B]                                    # drop padded batch rows


# ----------------------------------------------------------------------------
# Parameters: PyTorch-layout f32 params + TPU-friendly padded/bf16 kernel params.
# ----------------------------------------------------------------------------
def init_params(key, vocab_size, embed_size, hidden_size, num_layers,
                num_classes):
    """f32 params with nn.Embedding / nn.LSTM / nn.Linear layouts."""
    keys = jax.random.split(key, num_layers + 3)

    def u(k, shape, scale):
        return jax.random.uniform(k, shape, jnp.float32, -scale, scale)

    params = {"embedding": jax.random.normal(
        keys[0], (vocab_size, embed_size), jnp.float32)}
    scale = 1.0 / float(hidden_size) ** 0.5
    layers = []
    for l in range(num_layers):
        in_dim = embed_size if l == 0 else hidden_size
        kk = jax.random.split(keys[1 + l], 4)
        layers.append({
            "w_ih": u(kk[0], (4 * hidden_size, in_dim), scale),
            "w_hh": u(kk[1], (4 * hidden_size, hidden_size), scale),
            "b_ih": u(kk[2], (4 * hidden_size,), scale),
            "b_hh": u(kk[3], (4 * hidden_size,), scale),
        })
    params["layers"] = layers
    params["fc_w"] = u(keys[-2], (num_classes, hidden_size), scale)
    params["fc_b"] = u(keys[-1], (num_classes,), scale)
    return params


def _pad_gates_axis0(w, Hp):
    """(4H, ...) -> (4Hp, ...), padding each gate block [i|f|g|o] to Hp rows."""
    H = w.shape[0] // 4
    w = w.reshape((4, H) + w.shape[1:])
    pad = [(0, 0)] * w.ndim
    pad[1] = (0, Hp - H)
    w = jnp.pad(w, pad)
    return w.reshape((4 * Hp,) + w.shape[2:])


def prepare_kernel_params(params):
    """Pad to lane/gate-aligned shapes, transpose to (in,4H)/(H,4H), cast the
    matmul operands to bf16 (f32 accumulation happens in-kernel), stack layers.
    Zero padding is numerically exact for the LSTM (padded dims stay 0)."""
    E = params["embedding"].shape[1]
    H = params["layers"][0]["w_hh"].shape[1]
    L = len(params["layers"])
    C = params["fc_w"].shape[0]
    Ep = _round_up(E, LANE)
    Hp = _round_up(H, LANE)

    emb = jnp.pad(params["embedding"],
                  ((0, 0), (0, Ep - E))).astype(jnp.bfloat16)

    def ih(layer, in_p):
        w = _pad_gates_axis0(layer["w_ih"], Hp)                  # (4Hp, in)
        w = jnp.pad(w, ((0, 0), (0, in_p - w.shape[1])))
        return jnp.transpose(w)                                  # (in_p, 4Hp)

    def hh(layer):
        w = _pad_gates_axis0(layer["w_hh"], Hp)                  # (4Hp, H)
        w = jnp.pad(w, ((0, 0), (0, Hp - H)))
        return jnp.transpose(w)                                  # (Hp, 4Hp)

    def bias(layer):
        return _pad_gates_axis0(layer["b_ih"] + layer["b_hh"],
                                Hp).reshape(1, 4 * Hp)

    wih0 = ih(params["layers"][0], Ep).astype(jnp.bfloat16)
    if L > 1:
        wih_rest = jnp.stack(
            [ih(l, Hp) for l in params["layers"][1:]]).astype(jnp.bfloat16)
    else:
        wih_rest = jnp.zeros((1, Hp, 4 * Hp), jnp.bfloat16)      # unused dummy
    whh = jnp.stack([hh(l) for l in params["layers"]]).astype(jnp.bfloat16)
    b = jnp.stack([bias(l) for l in params["layers"]]).astype(jnp.float32)

    fc_w = jnp.pad(jnp.transpose(params["fc_w"]),
                   ((0, Hp - H), (0, 0))).astype(jnp.float32)    # (Hp, C)
    fc_b = params["fc_b"].reshape(1, C).astype(jnp.float32)

    return {"embedding": emb, "wih0": wih0, "wih_rest": wih_rest,
            "whh": whh, "b": b, "fc_w": fc_w, "fc_b": fc_b}


# ----------------------------------------------------------------------------
# Pure-JAX reference implementing the same numerical policy as the kernel
# (bf16 matmul operands, f32 accumulation/carries), on the unpadded params.
# ----------------------------------------------------------------------------
def reference_forward(token_ids, params):
    x = params["embedding"][token_ids].astype(jnp.bfloat16)      # (B, T, E)
    B, T, _ = x.shape
    hs = None
    for layer in params["layers"]:
        H = layer["w_hh"].shape[1]
        wih = jnp.transpose(layer["w_ih"]).astype(jnp.bfloat16)  # (in, 4H)
        whh = jnp.transpose(layer["w_hh"]).astype(jnp.bfloat16)  # (H, 4H)
        b = (layer["b_ih"] + layer["b_hh"]).astype(jnp.float32)
        h = jnp.zeros((B, H), jnp.float32)
        c = jnp.zeros((B, H), jnp.float32)
        outs = []
        for t in range(T):
            gates = (jnp.dot(x[:, t, :], wih,
                             preferred_element_type=jnp.float32)
                     + jnp.dot(h.astype(jnp.bfloat16), whh,
                               preferred_element_type=jnp.float32) + b)
            i_g = jax.nn.sigmoid(gates[:, 0 * H:1 * H])
            f_g = jax.nn.sigmoid(gates[:, 1 * H:2 * H])
            g_g = jnp.tanh(gates[:, 2 * H:3 * H])
            o_g = jax.nn.sigmoid(gates[:, 3 * H:4 * H])
            c = f_g * c + i_g * g_g
            h = o_g * jnp.tanh(c)
            outs.append(h)
        hs = jnp.stack(outs, axis=1)                             # (B, T, H) f32
        x = hs.astype(jnp.bfloat16)                              # next layer input
    mean = jnp.mean(hs, axis=1)
    return jnp.dot(mean, jnp.transpose(params["fc_w"])) + params["fc_b"]


if __name__ == "__main__":
    # Small config consistent with the module's forward.
    VOCAB, EMBED, HIDDEN, LAYERS, CLASSES = 100, 32, 32, 2, 4
    B, T = 2, 8
    TIME_TILE = 4   # grid = (2,): exercises the h/c/acc carries across time tiles

    key = jax.random.PRNGKey(0)
    k_param, k_tok = jax.random.split(key)
    params = init_params(k_param, VOCAB, EMBED, HIDDEN, LAYERS, CLASSES)
    kparams = prepare_kernel_params(params)
    token_ids = jax.random.randint(k_tok, (B, T), 0, VOCAB, dtype=jnp.int32)

    out = lstm_model_forward(token_ids, kparams, time_tile=TIME_TILE)
    out = jax.block_until_ready(out)

    ref = reference_forward(token_ids, params)
    assert out.shape == (B, CLASSES), out.shape
    assert jnp.allclose(out, ref, rtol=2e-3, atol=2e-3), (out, ref)

    print("KERNEL_OK")
</pallas_src>

<mosaic_0001>
module attributes {stable_mosaic.version = 11 : i64} {
  func.func @_fused_lstm_kernel(%arg0: i32, %arg1: memref<32x128xbf16, #tpu.memory_space<vmem>>, %arg2: memref<128x512xbf16, #tpu.memory_space<vmem>>, %arg3: memref<1x128x512xbf16, #tpu.memory_space<vmem>>, %arg4: memref<2x128x512xbf16, #tpu.memory_space<vmem>>, %arg5: memref<2x1x512xf32, #tpu.memory_space<vmem>>, %arg6: memref<128x4xf32, #tpu.memory_space<vmem>>, %arg7: memref<1x4xf32, #tpu.memory_space<vmem>>, %arg8: memref<8x4xf32, #tpu.memory_space<vmem>>, %arg9: memref<2x8x128xf32, #tpu.memory_space<vmem>>, %arg10: memref<2x8x128xf32, #tpu.memory_space<vmem>>, %arg11: memref<8x128xf32, #tpu.memory_space<vmem>>, %arg12: memref<32x128xf32, #tpu.memory_space<vmem>>, %arg13: memref<32x512xf32, #tpu.memory_space<vmem>>) attributes {dimension_semantics = [#tpu.dimension_semantics<arbitrary>], iteration_bounds = array<i64: 2>, scalar_prefetch = 0 : i64, scratch_operands = 5 : i64, tpu.core_type = #tpu.core_type<tc>, window_params = [{transform_indices = @transform_0, window_bounds = array<i64: 32, 128>}, {pipeline_mode = #tpu.pipeline_mode<synchronous>, transform_indices = @transform_1, window_bounds = array<i64: 128, 512>}, {pipeline_mode = #tpu.pipeline_mode<synchronous>, transform_indices = @transform_2, window_bounds = array<i64: 1, 128, 512>}, {pipeline_mode = #tpu.pipeline_mode<synchronous>, transform_indices = @transform_3, window_bounds = array<i64: 2, 128, 512>}, {pipeline_mode = #tpu.pipeline_mode<synchronous>, transform_indices = @transform_4, window_bounds = array<i64: 2, 1, 512>}, {pipeline_mode = #tpu.pipeline_mode<synchronous>, transform_indices = @transform_5, window_bounds = array<i64: 128, 4>}, {pipeline_mode = #tpu.pipeline_mode<synchronous>, transform_indices = @transform_6, window_bounds = array<i64: 1, 4>}, {pipeline_mode = #tpu.pipeline_mode<synchronous>, transform_indices = @transform_7, window_bounds = array<i64: 8, 4>}]} {
    %c0_i32 = arith.constant 0 : i32
    %0 = arith.cmpi eq, %arg0, %c0_i32 : i32
    %1 = arith.extui %0 : i1 to i32
    %c0_i32_0 = arith.constant 0 : i32
    %2 = arith.cmpi ne, %1, %c0_i32_0 : i32
    scf.if %2 {
      %cst_178 = arith.constant 0.000000e+00 : f32
      %378 = vector.broadcast %cst_178 : f32 to vector<2x8x128xf32>
      %c0_179 = arith.constant 0 : index
      %c0_180 = arith.constant 0 : index
      %c0_181 = arith.constant 0 : index
      %379 = vector.load %arg9[%c0_179, %c0_180, %c0_181] : memref<2x8x128xf32, #tpu.memory_space<vmem>>, vector<2x8x128xf32>
      tpu.vector_store %arg9[%c0_179, %c0_180, %c0_181], %378 {strides = array<i32>} : memref<2x8x128xf32, #tpu.memory_space<vmem>>, vector<2x8x128xf32>,
      %cst_182 = arith.constant 0.000000e+00 : f32
      %380 = vector.broadcast %cst_182 : f32 to vector<2x8x128xf32>
      %c0_183 = arith.constant 0 : index
      %c0_184 = arith.constant 0 : index
      %c0_185 = arith.constant 0 : index
      %381 = vector.load %arg10[%c0_183, %c0_184, %c0_185] : memref<2x8x128xf32, #tpu.memory_space<vmem>>, vector<2x8x128xf32>
      tpu.vector_store %arg10[%c0_183, %c0_184, %c0_185], %380 {strides = array<i32>} : memref<2x8x128xf32, #tpu.memory_space<vmem>>, vector<2x8x128xf32>,
      %cst_186 = arith.constant 0.000000e+00 : f32
      %382 = vector.broadcast %cst_186 : f32 to vector<8x128xf32>
      %c0_187 = arith.constant 0 : index
      %c0_188 = arith.constant 0 : index
      %383 = vector.load %arg11[%c0_187, %c0_188] : memref<8x128xf32, #tpu.memory_space<vmem>>, vector<8x128xf32>
      tpu.vector_store %arg11[%c0_187, %c0_188], %382 {strides = array<i32>} : memref<8x128xf32, #tpu.memory_space<vmem>>, vector<8x128xf32>,
    } else {
    }
    %c0 = arith.constant 0 : index
    %c0_1 = arith.constant 0 : index
    %3 = vector.load %arg1[%c0, %c0_1] : memref<32x128xbf16, #tpu.memory_space<vmem>>, vector<32x128xbf16>
    %c0_2 = arith.constant 0 : index
    %c0_3 = arith.constant 0 : index
    %4 = vector.load %arg2[%c0_2, %c0_3] : memref<128x512xbf16, #tpu.memory_space<vmem>>, vector<128x512xbf16>
    %cst = arith.constant dense<0.000000e+00> : vector<32x512xf32>
    %5 = tpu.matmul %3, %4, %cst {dimension_numbers = #tpu.dot_dimension_numbers<[1], [0], [0], [1], [0, 0, 1, 1], [], []>} : vector<32x128xbf16>, vector<128x512xbf16>, vector<32x512xf32> -> vector<32x512xf32>
    %c0_4 = arith.constant 0 : index
    %c0_5 = arith.constant 0 : index
    %c0_6 = arith.constant 0 : index
    %6 = vector.load %arg5[%c0_4, %c0_5, %c0_6] : memref<2x1x512xf32, #tpu.memory_space<vmem>>, vector<1x1x512xf32>
    %7 = vector.shape_cast %6 : vector<1x1x512xf32> to vector<1x512xf32>
    %8 = vector.broadcast %7 : vector<1x512xf32> to vector<32x512xf32>
    %9 = arith.addf %5, %8 : vector<32x512xf32>
    %c0_7 = arith.constant 0 : index
    %c0_8 = arith.constant 0 : index
    %10 = vector.load %arg13[%c0_7, %c0_8] : memref<32x512xf32, #tpu.memory_space<vmem>>, vector<32x512xf32>
    tpu.vector_store %arg13[%c0_7, %c0_8], %9 {strides = array<i32>} : memref<32x512xf32, #tpu.memory_space<vmem>>, vector<32x512xf32>,
    %c0_9 = arith.constant 0 : index
    %c0_10 = arith.constant 0 : index
    %c0_11 = arith.constant 0 : index
    %11 = vector.load %arg9[%c0_9, %c0_10, %c0_11] : memref<2x8x128xf32, #tpu.memory_space<vmem>>, vector<1x8x128xf32>
    %12 = vector.shape_cast %11 : vector<1x8x128xf32> to vector<8x128xf32>
    %c0_12 = arith.constant 0 : index
    %c0_13 = arith.constant 0 : index
    %c0_14 = arith.constant 0 : index
    %13 = vector.load %arg10[%c0_12, %c0_13, %c0_14] : memref<2x8x128xf32, #tpu.memory_space<vmem>>, vector<1x8x128xf32>
    %14 = vector.shape_cast %13 : vector<1x8x128xf32> to vector<8x128xf32>
    %c0_i32_15 = arith.constant 0 : i32
    %c8_i32 = arith.constant 8 : i32
    %15 = arith.muli %c0_i32_15, %c8_i32 : i32
    %16 = tpu.assume_multiple %15, 8 : i32
    %17 = arith.index_cast %16 : i32 to index
    %c0_16 = arith.constant 0 : index
    %18 = vector.load %arg13[%17, %c0_16] : memref<32x512xf32, #tpu.memory_space<vmem>>, vector<8x512xf32>
    %19 = arith.truncf %12 : vector<8x128xf32> to vector<8x128xbf16>
    %c0_17 = arith.constant 0 : index
    %c0_18 = arith.constant 0 : index
    %c0_19 = arith.constant 0 : index
    %20 = vector.load %arg4[%c0_17, %c0_18, %c0_19] : memref<2x128x512xbf16, #tpu.memory_space<vmem>>, vector<1x128x512xbf16>
    %21 = vector.shape_cast %20 : vector<1x128x512xbf16> to vector<128x512xbf16>
    %cst_20 = arith.constant dense<0.000000e+00> : vector<8x512xf32>
    %22 = tpu.matmul %19, %21, %cst_20 {dimension_numbers = #tpu.dot_dimension_numbers<[1], [0], [0], [1], [0, 0, 1, 1], [], []>} : vector<8x128xbf16>, vector<128x512xbf16>, vector<8x512xf32> -> vector<8x512xf32>
    %23 = arith.addf %18, %22 : vector<8x512xf32>
    %24 = vector.extract_strided_slice %23 {offsets = [0, 0], sizes = [8, 128], strides = [1, 1]} : vector<8x512xf32> to vector<8x128xf32>
    %cst_21 = arith.constant 5.000000e-01 : f32
    %25 = vector.broadcast %cst_21 : f32 to vector<8x128xf32>
    %26 = arith.mulf %25, %24 : vector<8x128xf32>
    %27 = math.tanh %26 : vector<8x128xf32>
    %cst_22 = arith.constant 1.000000e+00 : f32
    %28 = vector.broadcast %cst_22 : f32 to vector<8x128xf32>
    %29 = arith.addf %27, %28 : vector<8x128xf32>
    %cst_23 = arith.constant 5.000000e-01 : f32
    %30 = vector.broadcast %cst_23 : f32 to vector<8x128xf32>
    %31 = arith.mulf %30, %29 : vector<8x128xf32>
    %32 = vector.extract_strided_slice %23 {offsets = [0, 128], sizes = [8, 128], strides = [1, 1]} : vector<8x512xf32> to vector<8x128xf32>
    %cst_24 = arith.constant 5.000000e-01 : f32
    %33 = vector.broadcast %cst_24 : f32 to vector<8x128xf32>
    %34 = arith.mulf %33, %32 : vector<8x128xf32>
    %35 = math.tanh %34 : vector<8x128xf32>
    %cst_25 = arith.constant 1.000000e+00 : f32
    %36 = vector.broadcast %cst_25 : f32 to vector<8x128xf32>
    %37 = arith.addf %35, %36 : vector<8x128xf32>
    %cst_26 = arith.constant 5.000000e-01 : f32
    %38 = vector.broadcast %cst_26 : f32 to vector<8x128xf32>
    %39 = arith.mulf %38, %37 : vector<8x128xf32>
    %40 = vector.extract_strided_slice %23 {offsets = [0, 256], sizes = [8, 128], strides = [1, 1]} : vector<8x512xf32> to vector<8x128xf32>
    %41 = math.tanh %40 : vector<8x128xf32>
    %42 = vector.extract_strided_slice %23 {offsets = [0, 384], sizes = [8, 128], strides = [1, 1]} : vector<8x512xf32> to vector<8x128xf32>
    %cst_27 = arith.constant 5.000000e-01 : f32
    %43 = vector.broadcast %cst_27 : f32 to vector<8x128xf32>
    %44 = arith.mulf %43, %42 : vector<8x128xf32>
    %45 = math.tanh %44 : vector<8x128xf32>
    %cst_28 = arith.constant 1.000000e+00 : f32
    %46 = vector.broadcast %cst_28 : f32 to vector<8x128xf32>
    %47 = arith.addf %45, %46 : vector<8x128xf32>
    %cst_29 = arith.constant 5.000000e-01 : f32
    %48 = vector.broadcast %cst_29 : f32 to vector<8x128xf32>
    %49 = arith.mulf %48, %47 : vector<8x128xf32>
    %50 = arith.mulf %39, %14 : vector<8x128xf32>
    %51 = arith.mulf %31, %41 : vector<8x128xf32>
    %52 = arith.addf %50, %51 : vector<8x128xf32>
    %53 = math.tanh %52 : vector<8x128xf32>
    %54 = arith.mulf %49, %53 : vector<8x128xf32>
    %55 = arith.index_cast %16 : i32 to index
    %c0_30 = arith.constant 0 : index
    %56 = vector.load %arg12[%55, %c0_30] : memref<32x128xf32, #tpu.memory_space<vmem>>, vector<8x128xf32>
    tpu.vector_store %arg12[%55, %c0_30], %54 {strides = array<i32>} : memref<32x128xf32, #tpu.memory_space<vmem>>, vector<8x128xf32>,
    %c1_i32 = arith.constant 1 : i32
    %c8_i32_31 = arith.constant 8 : i32
    %57 = arith.muli %c1_i32, %c8_i32_31 : i32
    %58 = tpu.assume_multiple %57, 8 : i32
    %59 = arith.index_cast %58 : i32 to index
    %c0_32 = arith.constant 0 : index
    %60 = vector.load %arg13[%59, %c0_32] : memref<32x512xf32, #tpu.memory_space<vmem>>, vector<8x512xf32>
    %61 = arith.truncf %54 : vector<8x128xf32> to vector<8x128xbf16>
    %c0_33 = arith.constant 0 : index
    %c0_34 = arith.constant 0 : index
    %c0_35 = arith.constant 0 : index
    %62 = vector.load %arg4[%c0_33, %c0_34, %c0_35] : memref<2x128x512xbf16, #tpu.memory_space<vmem>>, vector<1x128x512xbf16>
    %63 = vector.shape_cast %62 : vector<1x128x512xbf16> to vector<128x512xbf16>
    %cst_36 = arith.constant dense<0.000000e+00> : vector<8x512xf32>
    %64 = tpu.matmul %61, %63, %cst_36 {dimension_numbers = #tpu.dot_dimension_numbers<[1], [0], [0], [1], [0, 0, 1, 1], [], []>} : vector<8x128xbf16>, vector<128x512xbf16>, vector<8x512xf32> -> vector<8x512xf32>
    %65 = arith.addf %60, %64 : vector<8x512xf32>
    %66 = vector.extract_strided_slice %65 {offsets = [0, 0], sizes = [8, 128], strides = [1, 1]} : vector<8x512xf32> to vector<8x128xf32>
    %cst_37 = arith.constant 5.000000e-01 : f32
    %67 = vector.broadcast %cst_37 : f32 to vector<8x128xf32>
    %68 = arith.mulf %67, %66 : vector<8x128xf32>
    %69 = math.tanh %68 : vector<8x128xf32>
    %cst_38 = arith.constant 1.000000e+00 : f32
    %70 = vector.broadcast %cst_38 : f32 to vector<8x128xf32>
    %71 = arith.addf %69, %70 : vector<8x128xf32>
    %cst_39 = arith.constant 5.000000e-01 : f32
    %72 = vector.broadcast %cst_39 : f32 to vector<8x128xf32>
    %73 = arith.mulf %72, %71 : vector<8x128xf32>
    %74 = vector.extract_strided_slice %65 {offsets = [0, 128], sizes = [8, 128], strides = [1, 1]} : vector<8x512xf32> to vector<8x128xf32>
    %cst_40 = arith.constant 5.000000e-01 : f32
    %75 = vector.broadcast %cst_40 : f32 to vector<8x128xf32>
    %76 = arith.mulf %75, %74 : vector<8x128xf32>
    %77 = math.tanh %76 : vector<8x128xf32>
    %cst_41 = arith.constant 1.000000e+00 : f32
    %78 = vector.broadcast %cst_41 : f32 to vector<8x128xf32>
    %79 = arith.addf %77, %78 : vector<8x128xf32>
    %cst_42 = arith.constant 5.000000e-01 : f32
    %80 = vector.broadcast %cst_42 : f32 to vector<8x128xf32>
    %81 = arith.mulf %80, %79 : vector<8x128xf32>
    %82 = vector.extract_strided_slice %65 {offsets = [0, 256], sizes = [8, 128], strides = [1, 1]} : vector<8x512xf32> to vector<8x128xf32>
    %83 = math.tanh %82 : vector<8x128xf32>
    %84 = vector.extract_strided_slice %65 {offsets = [0, 384], sizes = [8, 128], strides = [1, 1]} : vector<8x512xf32> to vector<8x128xf32>
    %cst_43 = arith.constant 5.000000e-01 : f32
    %85 = vector.broadcast %cst_43 : f32 to vector<8x128xf32>
    %86 = arith.mulf %85, %84 : vector<8x128xf32>
    %87 = math.tanh %86 : vector<8x128xf32>
    %cst_44 = arith.constant 1.000000e+00 : f32
    %88 = vector.broadcast %cst_44 : f32 to vector<8x128xf32>
    %89 = arith.addf %87, %88 : vector<8x128xf32>
    %cst_45 = arith.constant 5.000000e-01 : f32
    %90 = vector.broadcast %cst_45 : f32 to vector<8x128xf32>
    %91 = arith.mulf %90, %89 : vector<8x128xf32>
    %92 = arith.mulf %81, %52 : vector<8x128xf32>
    %93 = arith.mulf %73, %83 : vector<8x128xf32>
    %94 = arith.addf %92, %93 : vector<8x128xf32>
    %95 = math.tanh %94 : vector<8x128xf32>
    %96 = arith.mulf %91, %95 : vector<8x128xf32>
    %97 = arith.index_cast %58 : i32 to index
    %c0_46 = arith.constant 0 : index
    %98 = vector.load %arg12[%97, %c0_46] : memref<32x128xf32, #tpu.memory_space<vmem>>, vector<8x128xf32>
    tpu.vector_store %arg12[%97, %c0_46], %96 {strides = array<i32>} : memref<32x128xf32, #tpu.memory_space<vmem>>, vector<8x128xf32>,
    %c2_i32 = arith.constant 2 : i32
    %c8_i32_47 = arith.constant 8 : i32
    %99 = arith.muli %c2_i32, %c8_i32_47 : i32
    %100 = tpu.assume_multiple %99, 8 : i32
    %101 = arith.index_cast %100 : i32 to index
    %c0_48 = arith.constant 0 : index
    %102 = vector.load %arg13[%101, %c0_48] : memref<32x512xf32, #tpu.memory_space<vmem>>, vector<8x512xf32>
    %103 = arith.truncf %96 : vector<8x128xf32> to vector<8x128xbf16>
    %c0_49 = arith.constant 0 : index
    %c0_50 = arith.constant 0 : index
    %c0_51 = arith.constant 0 : index
    %104 = vector.load %arg4[%c0_49, %c0_50, %c0_51] : memref<2x128x512xbf16, #tpu.memory_space<vmem>>, vector<1x128x512xbf16>
    %105 = vector.shape_cast %104 : vector<1x128x512xbf16> to vector<128x512xbf16>
    %cst_52 = arith.constant dense<0.000000e+00> : vector<8x512xf32>
    %106 = tpu.matmul %103, %105, %cst_52 {dimension_numbers = #tpu.dot_dimension_numbers<[1], [0], [0], [1], [0, 0, 1, 1], [], []>} : vector<8x128xbf16>, vector<128x512xbf16>, vector<8x512xf32> -> vector<8x512xf32>
    %107 = arith.addf %102, %106 : vector<8x512xf32>
    %108 = vector.extract_strided_slice %107 {offsets = [0, 0], sizes = [8, 128], strides = [1, 1]} : vector<8x512xf32> to vector<8x128xf32>
    %cst_53 = arith.constant 5.000000e-01 : f32
    %109 = vector.broadcast %cst_53 : f32 to vector<8x128xf32>
    %110 = arith.mulf %109, %108 : vector<8x128xf32>
    %111 = math.tanh %110 : vector<8x128xf32>
    %cst_54 = arith.constant 1.000000e+00 : f32
    %112 = vector.broadcast %cst_54 : f32 to vector<8x128xf32>
    %113 = arith.addf %111, %112 : vector<8x128xf32>
    %cst_55 = arith.constant 5.000000e-01 : f32
    %114 = vector.broadcast %cst_55 : f32 to vector<8x128xf32>
    %115 = arith.mulf %114, %113 : vector<8x128xf32>
    %116 = vector.extract_strided_slice %107 {offsets = [0, 128], sizes = [8, 128], strides = [1, 1]} : vector<8x512xf32> to vector<8x128xf32>
    %cst_56 = arith.constant 5.000000e-01 : f32
    %117 = vector.broadcast %cst_56 : f32 to vector<8x128xf32>
    %118 = arith.mulf %117, %116 : vector<8x128xf32>
    %119 = math.tanh %118 : vector<8x128xf32>
    %cst_57 = arith.constant 1.000000e+00 : f32
    %120 = vector.broadcast %cst_57 : f32 to vector<8x128xf32>
    %121 = arith.addf %119, %120 : vector<8x128xf32>
    %cst_58 = arith.constant 5.000000e-01 : f32
    %122 = vector.broadcast %cst_58 : f32 to vector<8x128xf32>
    %123 = arith.mulf %122, %121 : vector<8x128xf32>
    %124 = vector.extract_strided_slice %107 {offsets = [0, 256], sizes = [8, 128], strides = [1, 1]} : vector<8x512xf32> to vector<8x128xf32>
    %125 = math.tanh %124 : vector<8x128xf32>
    %126 = vector.extract_strided_slice %107 {offsets = [0, 384], sizes = [8, 128], strides = [1, 1]} : vector<8x512xf32> to vector<8x128xf32>
    %cst_59 = arith.constant 5.000000e-01 : f32
    %127 = vector.broadcast %cst_59 : f32 to vector<8x128xf32>
    %128 = arith.mulf %127, %126 : vector<8x128xf32>
    %129 = math.tanh %128 : vector<8x128xf32>
    %cst_60 = arith.constant 1.000000e+00 : f32
    %130 = vector.broadcast %cst_60 : f32 to vector<8x128xf32>
    %131 = arith.addf %129, %130 : vector<8x128xf32>
    %cst_61 = arith.constant 5.000000e-01 : f32
    %132 = vector.broadcast %cst_61 : f32 to vector<8x128xf32>
    %133 = arith.mulf %132, %131 : vector<8x128xf32>
    %134 = arith.mulf %123, %94 : vector<8x128xf32>
    %135 = arith.mulf %115, %125 : vector<8x128xf32>
    %136 = arith.addf %134, %135 : vector<8x128xf32>
    %137 = math.tanh %136 : vector<8x128xf32>
    %138 = arith.mulf %133, %137 : vector<8x128xf32>
    %139 = arith.index_cast %100 : i32 to index
    %c0_62 = arith.constant 0 : index
    %140 = vector.load %arg12[%139, %c0_62] : memref<32x128xf32, #tpu.memory_space<vmem>>, vector<8x128xf32>
    tpu.vector_store %arg12[%139, %c0_62], %138 {strides = array<i32>} : memref<32x128xf32, #tpu.memory_space<vmem>>, vector<8x128xf32>,
    %c3_i32 = arith.constant 3 : i32
    %c8_i32_63 = arith.constant 8 : i32
    %141 = arith.muli %c3_i32, %c8_i32_63 : i32
    %142 = tpu.assume_multiple %141, 8 : i32
    %143 = arith.index_cast %142 : i32 to index
    %c0_64 = arith.constant 0 : index
    %144 = vector.load %arg13[%143, %c0_64] : memref<32x512xf32, #tpu.memory_space<vmem>>, vector<8x512xf32>
    %145 = arith.truncf %138 : vector<8x128xf32> to vector<8x128xbf16>
    %c0_65 = arith.constant 0 : index
    %c0_66 = arith.constant 0 : index
    %c0_67 = arith.constant 0 : index
    %146 = vector.load %arg4[%c0_65, %c0_66, %c0_67] : memref<2x128x512xbf16, #tpu.memory_space<vmem>>, vector<1x128x512xbf16>
    %147 = vector.shape_cast %146 : vector<1x128x512xbf16> to vector<128x512xbf16>
    %cst_68 = arith.constant dense<0.000000e+00> : vector<8x512xf32>
    %148 = tpu.matmul %145, %147, %cst_68 {dimension_numbers = #tpu.dot_dimension_numbers<[1], [0], [0], [1], [0, 0, 1, 1], [], []>} : vector<8x128xbf16>, vector<128x512xbf16>, vector<8x512xf32> -> vector<8x512xf32>
    %149 = arith.addf %144, %148 : vector<8x512xf32>
    %150 = vector.extract_strided_slice %149 {offsets = [0, 0], sizes = [8, 128], strides = [1, 1]} : vector<8x512xf32> to vector<8x128xf32>
    %cst_69 = arith.constant 5.000000e-01 : f32
    %151 = vector.broadcast %cst_69 : f32 to vector<8x128xf32>
    %152 = arith.mulf %151, %150 : vector<8x128xf32>
    %153 = math.tanh %152 : vector<8x128xf32>
    %cst_70 = arith.constant 1.000000e+00 : f32
    %154 = vector.broadcast %cst_70 : f32 to vector<8x128xf32>
    %155 = arith.addf %153, %154 : vector<8x128xf32>
    %cst_71 = arith.constant 5.000000e-01 : f32
    %156 = vector.broadcast %cst_71 : f32 to vector<8x128xf32>
    %157 = arith.mulf %156, %155 : vector<8x128xf32>
    %158 = vector.extract_strided_slice %149 {offsets = [0, 128], sizes = [8, 128], strides = [1, 1]} : vector<8x512xf32> to vector<8x128xf32>
    %cst_72 = arith.constant 5.000000e-01 : f32
    %159 = vector.broadcast %cst_72 : f32 to vector<8x128xf32>
    %160 = arith.mulf %159, %158 : vector<8x128xf32>
    %161 = math.tanh %160 : vector<8x128xf32>
    %cst_73 = arith.constant 1.000000e+00 : f32
    %162 = vector.broadcast %cst_73 : f32 to vector<8x128xf32>
    %163 = arith.addf %161, %162 : vector<8x128xf32>
    %cst_74 = arith.constant 5.000000e-01 : f32
    %164 = vector.broadcast %cst_74 : f32 to vector<8x128xf32>
    %165 = arith.mulf %164, %163 : vector<8x128xf32>
    %166 = vector.extract_strided_slice %149 {offsets = [0, 256], sizes = [8, 128], strides = [1, 1]} : vector<8x512xf32> to vector<8x128xf32>
    %167 = math.tanh %166 : vector<8x128xf32>
    %168 = vector.extract_strided_slice %149 {offsets = [0, 384], sizes = [8, 128], strides = [1, 1]} : vector<8x512xf32> to vector<8x128xf32>
    %cst_75 = arith.constant 5.000000e-01 : f32
    %169 = vector.broadcast %cst_75 : f32 to vector<8x128xf32>
    %170 = arith.mulf %169, %168 : vector<8x128xf32>
    %171 = math.tanh %170 : vector<8x128xf32>
    %cst_76 = arith.constant 1.000000e+00 : f32
    %172 = vector.broadcast %cst_76 : f32 to vector<8x128xf32>
    %173 = arith.addf %171, %172 : vector<8x128xf32>
    %cst_77 = arith.constant 5.000000e-01 : f32
    %174 = vector.broadcast %cst_77 : f32 to vector<8x128xf32>
    %175 = arith.mulf %174, %173 : vector<8x128xf32>
    %176 = arith.mulf %165, %136 : vector<8x128xf32>
    %177 = arith.mulf %157, %167 : vector<8x128xf32>
    %178 = arith.addf %176, %177 : vector<8x128xf32>
    %179 = math.tanh %178 : vector<8x128xf32>
    %180 = arith.mulf %175, %179 : vector<8x128xf32>
    %181 = arith.index_cast %142 : i32 to index
    %c0_78 = arith.constant 0 : index
    %182 = vector.load %arg12[%181, %c0_78] : memref<32x128xf32, #tpu.memory_space<vmem>>, vector<8x128xf32>
    tpu.vector_store %arg12[%181, %c0_78], %180 {strides = array<i32>} : memref<32x128xf32, #tpu.memory_space<vmem>>, vector<8x128xf32>,
    %c4_i32 = arith.constant 4 : i32
    %c0_79 = arith.constant 0 : index
    %c0_80 = arith.constant 0 : index
    %c0_81 = arith.constant 0 : index
    %183 = vector.load %arg9[%c0_79, %c0_80, %c0_81] : memref<2x8x128xf32, #tpu.memory_space<vmem>>, vector<1x8x128xf32>
    %184 = vector.shape_cast %183 : vector<1x8x128xf32> to vector<8x128xf32>
    %185 = vector.shape_cast %180 : vector<8x128xf32> to vector<1x8x128xf32>
    tpu.vector_store %arg9[%c0_79, %c0_80, %c0_81], %185 {strides = array<i32>} : memref<2x8x128xf32, #tpu.memory_space<vmem>>, vector<1x8x128xf32>,
    %c0_82 = arith.constant 0 : index
    %c0_83 = arith.constant 0 : index
    %c0_84 = arith.constant 0 : index
    %186 = vector.load %arg10[%c0_82, %c0_83, %c0_84] : memref<2x8x128xf32, #tpu.memory_space<vmem>>, vector<1x8x128xf32>
    %187 = vector.shape_cast %186 : vector<1x8x128xf32> to vector<8x128xf32>
    %188 = vector.shape_cast %178 : vector<8x128xf32> to vector<1x8x128xf32>
    tpu.vector_store %arg10[%c0_82, %c0_83, %c0_84], %188 {strides = array<i32>} : memref<2x8x128xf32, #tpu.memory_space<vmem>>, vector<1x8x128xf32>,
    %c0_85 = arith.constant 0 : index
    %c0_86 = arith.constant 0 : index
    %189 = vector.load %arg12[%c0_85, %c0_86] : memref<32x128xf32, #tpu.memory_space<vmem>>, vector<32x128xf32>
    %190 = arith.truncf %189 : vector<32x128xf32> to vector<32x128xbf16>
    %c0_87 = arith.constant 0 : index
    %c0_88 = arith.constant 0 : index
    %c0_89 = arith.constant 0 : index
    %191 = vector.load %arg3[%c0_87, %c0_88, %c0_89] : memref<1x128x512xbf16, #tpu.memory_space<vmem>>, vector<1x128x512xbf16>
    %192 = vector.shape_cast %191 : vector<1x128x512xbf16> to vector<128x512xbf16>
    %cst_90 = arith.constant dense<0.000000e+00> : vector<32x512xf32>
    %193 = tpu.matmul %190, %192, %cst_90 {dimension_numbers = #tpu.dot_dimension_numbers<[1], [0], [0], [1], [0, 0, 1, 1], [], []>} : vector<32x128xbf16>, vector<128x512xbf16>, vector<32x512xf32> -> vector<32x512xf32>
    %c1 = arith.constant 1 : index
    %c0_91 = arith.constant 0 : index
    %c0_92 = arith.constant 0 : index
    %194 = vector.load %arg5[%c1, %c0_91, %c0_92] : memref<2x1x512xf32, #tpu.memory_space<vmem>>, vector<1x1x512xf32>
    %195 = vector.shape_cast %194 : vector<1x1x512xf32> to vector<1x512xf32>
    %196 = vector.broadcast %195 : vector<1x512xf32> to vector<32x512xf32>
    %197 = arith.addf %193, %196 : vector<32x512xf32>
    %c0_93 = arith.constant 0 : index
    %c0_94 = arith.constant 0 : index
    %198 = vector.load %arg13[%c0_93, %c0_94] : memref<32x512xf32, #tpu.memory_space<vmem>>, vector<32x512xf32>
    tpu.vector_store %arg13[%c0_93, %c0_94], %197 {strides = array<i32>} : memref<32x512xf32, #tpu.memory_space<vmem>>, vector<32x512xf32>,
    %c1_95 = arith.constant 1 : index
    %c0_96 = arith.constant 0 : index
    %c0_97 = arith.constant 0 : index
    %199 = vector.load %arg9[%c1_95, %c0_96, %c0_97] : memref<2x8x128xf32, #tpu.memory_space<vmem>>, vector<1x8x128xf32>
    %200 = vector.shape_cast %199 : vector<1x8x128xf32> to vector<8x128xf32>
    %c1_98 = arith.constant 1 : index
    %c0_99 = arith.constant 0 : index
    %c0_100 = arith.constant 0 : index
    %201 = vector.load %arg10[%c1_98, %c0_99, %c0_100] : memref<2x8x128xf32, #tpu.memory_space<vmem>>, vector<1x8x128xf32>
    %202 = vector.shape_cast %201 : vector<1x8x128xf32> to vector<8x128xf32>
    %c0_101 = arith.constant 0 : index
    %c0_102 = arith.constant 0 : index
    %203 = vector.load %arg11[%c0_101, %c0_102] : memref<8x128xf32, #tpu.memory_space<vmem>>, vector<8x128xf32>
    %c0_i32_103 = arith.constant 0 : i32
    %c8_i32_104 = arith.constant 8 : i32
    %204 = arith.muli %c0_i32_103, %c8_i32_104 : i32
    %205 = tpu.assume_multiple %204, 8 : i32
    %206 = arith.index_cast %205 : i32 to index
    %c0_105 = arith.constant 0 : index
    %207 = vector.load %arg13[%206, %c0_105] : memref<32x512xf32, #tpu.memory_space<vmem>>, vector<8x512xf32>
    %208 = arith.truncf %200 : vector<8x128xf32> to vector<8x128xbf16>
    %c1_106 = arith.constant 1 : index
    %c0_107 = arith.constant 0 : index
    %c0_108 = arith.constant 0 : index
    %209 = vector.load %arg4[%c1_106, %c0_107, %c0_108] : memref<2x128x512xbf16, #tpu.memory_space<vmem>>, vector<1x128x512xbf16>
    %210 = vector.shape_cast %209 : vector<1x128x512xbf16> to vector<128x512xbf16>
    %cst_109 = arith.constant dense<0.000000e+00> : vector<8x512xf32>
    %211 = tpu.matmul %208, %210, %cst_109 {dimension_numbers = #tpu.dot_dimension_numbers<[1], [0], [0], [1], [0, 0, 1, 1], [], []>} : vector<8x128xbf16>, vector<128x512xbf16>, vector<8x512xf32> -> vector<8x512xf32>
    %212 = arith.addf %207, %211 : vector<8x512xf32>
    %213 = vector.extract_strided_slice %212 {offsets = [0, 0], sizes = [8, 128], strides = [1, 1]} : vector<8x512xf32> to vector<8x128xf32>
    %cst_110 = arith.constant 5.000000e-01 : f32
    %214 = vector.broadcast %cst_110 : f32 to vector<8x128xf32>
    %215 = arith.mulf %214, %213 : vector<8x128xf32>
    %216 = math.tanh %215 : vector<8x128xf32>
    %cst_111 = arith.constant 1.000000e+00 : f32
    %217 = vector.broadcast %cst_111 : f32 to vector<8x128xf32>
    %218 = arith.addf %216, %217 : vector<8x128xf32>
    %cst_112 = arith.constant 5.000000e-01 : f32
    %219 = vector.broadcast %cst_112 : f32 to vector<8x128xf32>
    %220 = arith.mulf %219, %218 : vector<8x128xf32>
    %221 = vector.extract_strided_slice %212 {offsets = [0, 128], sizes = [8, 128], strides = [1, 1]} : vector<8x512xf32> to vector<8x128xf32>
    %cst_113 = arith.constant 5.000000e-01 : f32
    %222 = vector.broadcast %cst_113 : f32 to vector<8x128xf32>
    %223 = arith.mulf %222, %221 : vector<8x128xf32>
    %224 = math.tanh %223 : vector<8x128xf32>
    %cst_114 = arith.constant 1.000000e+00 : f32
    %225 = vector.broadcast %cst_114 : f32 to vector<8x128xf32>
    %226 = arith.addf %224, %225 : vector<8x128xf32>
    %cst_115 = arith.constant 5.000000e-01 : f32
    %227 = vector.broadcast %cst_115 : f32 to vector<8x128xf32>
    %228 = arith.mulf %227, %226 : vector<8x128xf32>
    %229 = vector.extract_strided_slice %212 {offsets = [0, 256], sizes = [8, 128], strides = [1, 1]} : vector<8x512xf32> to vector<8x128xf32>
    %230 = math.tanh %229 : vector<8x128xf32>
    %231 = vector.extract_strided_slice %212 {offsets = [0, 384], sizes = [8, 128], strides = [1, 1]} : vector<8x512xf32> to vector<8x128xf32>
    %cst_116 = arith.constant 5.000000e-01 : f32
    %232 = vector.broadcast %cst_116 : f32 to vector<8x128xf32>
    %233 = arith.mulf %232, %231 : vector<8x128xf32>
    %234 = math.tanh %233 : vector<8x128xf32>
    %cst_117 = arith.constant 1.000000e+00 : f32
    %235 = vector.broadcast %cst_117 : f32 to vector<8x128xf32>
    %236 = arith.addf %234, %235 : vector<8x128xf32>
    %cst_118 = arith.constant 5.000000e-01 : f32
    %237 = vector.broadcast %cst_118 : f32 to vector<8x128xf32>
    %238 = arith.mulf %237, %236 : vector<8x128xf32>
    %239 = arith.mulf %228, %202 : vector<8x128xf32>
    %240 = arith.mulf %220, %230 : vector<8x128xf32>
    %241 = arith.addf %239, %240 : vector<8x128xf32>
    %242 = math.tanh %241 : vector<8x128xf32>
    %243 = arith.mulf %238, %242 : vector<8x128xf32>
    %244 = arith.addf %203, %243 : vector<8x128xf32>
    %c1_i32_119 = arith.constant 1 : i32
    %c8_i32_120 = arith.constant 8 : i32
    %245 = arith.muli %c1_i32_119, %c8_i32_120 : i32
    %246 = tpu.assume_multiple %245, 8 : i32
    %247 = arith.index_cast %246 : i32 to index
    %c0_121 = arith.constant 0 : index
    %248 = vector.load %arg13[%247, %c0_121] : memref<32x512xf32, #tpu.memory_space<vmem>>, vector<8x512xf32>
    %249 = arith.truncf %243 : vector<8x128xf32> to vector<8x128xbf16>
    %c1_122 = arith.constant 1 : index
    %c0_123 = arith.constant 0 : index
    %c0_124 = arith.constant 0 : index
    %250 = vector.load %arg4[%c1_122, %c0_123, %c0_124] : memref<2x128x512xbf16, #tpu.memory_space<vmem>>, vector<1x128x512xbf16>
    %251 = vector.shape_cast %250 : vector<1x128x512xbf16> to vector<128x512xbf16>
    %cst_125 = arith.constant dense<0.000000e+00> : vector<8x512xf32>
    %252 = tpu.matmul %249, %251, %cst_125 {dimension_numbers = #tpu.dot_dimension_numbers<[1], [0], [0], [1], [0, 0, 1, 1], [], []>} : vector<8x128xbf16>, vector<128x512xbf16>, vector<8x512xf32> -> vector<8x512xf32>
    %253 = arith.addf %248, %252 : vector<8x512xf32>
    %254 = vector.extract_strided_slice %253 {offsets = [0, 0], sizes = [8, 128], strides = [1, 1]} : vector<8x512xf32> to vector<8x128xf32>
    %cst_126 = arith.constant 5.000000e-01 : f32
    %255 = vector.broadcast %cst_126 : f32 to vector<8x128xf32>
    %256 = arith.mulf %255, %254 : vector<8x128xf32>
    %257 = math.tanh %256 : vector<8x128xf32>
    %cst_127 = arith.constant 1.000000e+00 : f32
    %258 = vector.broadcast %cst_127 : f32 to vector<8x128xf32>
    %259 = arith.addf %257, %258 : vector<8x128xf32>
    %cst_128 = arith.constant 5.000000e-01 : f32
    %260 = vector.broadcast %cst_128 : f32 to vector<8x128xf32>
    %261 = arith.mulf %260, %259 : vector<8x128xf32>
    %262 = vector.extract_strided_slice %253 {offsets = [0, 128], sizes = [8, 128], strides = [1, 1]} : vector<8x512xf32> to vector<8x128xf32>
    %cst_129 = arith.constant 5.000000e-01 : f32
    %263 = vector.broadcast %cst_129 : f32 to vector<8x128xf32>
    %264 = arith.mulf %263, %262 : vector<8x128xf32>
    %265 = math.tanh %264 : vector<8x128xf32>
    %cst_130 = arith.constant 1.000000e+00 : f32
    %266 = vector.broadcast %cst_130 : f32 to vector<8x128xf32>
    %267 = arith.addf %265, %266 : vector<8x128xf32>
    %cst_131 = arith.constant 5.000000e-01 : f32
    %268 = vector.broadcast %cst_131 : f32 to vector<8x128xf32>
    %269 = arith.mulf %268, %267 : vector<8x128xf32>
    %270 = vector.extract_strided_slice %253 {offsets = [0, 256], sizes = [8, 128], strides = [1, 1]} : vector<8x512xf32> to vector<8x128xf32>
    %271 = math.tanh %270 : vector<8x128xf32>
    %272 = vector.extract_strided_slice %253 {offsets = [0, 384], sizes = [8, 128], strides = [1, 1]} : vector<8x512xf32> to vector<8x128xf32>
    %cst_132 = arith.constant 5.000000e-01 : f32
    %273 = vector.broadcast %cst_132 : f32 to vector<8x128xf32>
    %274 = arith.mulf %273, %272 : vector<8x128xf32>
    %275 = math.tanh %274 : vector<8x128xf32>
    %cst_133 = arith.constant 1.000000e+00 : f32
    %276 = vector.broadcast %cst_133 : f32 to vector<8x128xf32>
    %277 = arith.addf %275, %276 : vector<8x128xf32>
    %cst_134 = arith.constant 5.000000e-01 : f32
    %278 = vector.broadcast %cst_134 : f32 to vector<8x128xf32>
    %279 = arith.mulf %278, %277 : vector<8x128xf32>
    %280 = arith.mulf %269, %241 : vector<8x128xf32>
    %281 = arith.mulf %261, %271 : vector<8x128xf32>
    %282 = arith.addf %280, %281 : vector<8x128xf32>
    %283 = math.tanh %282 : vector<8x128xf32>
    %284 = arith.mulf %279, %283 : vector<8x128xf32>
    %285 = arith.addf %244, %284 : vector<8x128xf32>
    %c2_i32_135 = arith.constant 2 : i32
    %c8_i32_136 = arith.constant 8 : i32
    %286 = arith.muli %c2_i32_135, %c8_i32_136 : i32
    %287 = tpu.assume_multiple %286, 8 : i32
    %288 = arith.index_cast %287 : i32 to index
    %c0_137 = arith.constant 0 : index
    %289 = vector.load %arg13[%288, %c0_137] : memref<32x512xf32, #tpu.memory_space<vmem>>, vector<8x512xf32>
    %290 = arith.truncf %284 : vector<8x128xf32> to vector<8x128xbf16>
    %c1_138 = arith.constant 1 : index
    %c0_139 = arith.constant 0 : index
    %c0_140 = arith.constant 0 : index
    %291 = vector.load %arg4[%c1_138, %c0_139, %c0_140] : memref<2x128x512xbf16, #tpu.memory_space<vmem>>, vector<1x128x512xbf16>
    %292 = vector.shape_cast %291 : vector<1x128x512xbf16> to vector<128x512xbf16>
    %cst_141 = arith.constant dense<0.000000e+00> : vector<8x512xf32>
    %293 = tpu.matmul %290, %292, %cst_141 {dimension_numbers = #tpu.dot_dimension_numbers<[1], [0], [0], [1], [0, 0, 1, 1], [], []>} : vector<8x128xbf16>, vector<128x512xbf16>, vector<8x512xf32> -> vector<8x512xf32>
    %294 = arith.addf %289, %293 : vector<8x512xf32>
    %295 = vector.extract_strided_slice %294 {offsets = [0, 0], sizes = [8, 128], strides = [1, 1]} : vector<8x512xf32> to vector<8x128xf32>
    %cst_142 = arith.constant 5.000000e-01 : f32
    %296 = vector.broadcast %cst_142 : f32 to vector<8x128xf32>
    %297 = arith.mulf %296, %295 : vector<8x128xf32>
    %298 = math.tanh %297 : vector<8x128xf32>
    %cst_143 = arith.constant 1.000000e+00 : f32
    %299 = vector.broadcast %cst_143 : f32 to vector<8x128xf32>
    %300 = arith.addf %298, %299 : vector<8x128xf32>
    %cst_144 = arith.constant 5.000000e-01 : f32
    %301 = vector.broadcast %cst_144 : f32 to vector<8x128xf32>
    %302 = arith.mulf %301, %300 : vector<8x128xf32>
    %303 = vector.extract_strided_slice %294 {offsets = [0, 128], sizes = [8, 128], strides = [1, 1]} : vector<8x512xf32> to vector<8x128xf32>
    %cst_145 = arith.constant 5.000000e-01 : f32
    %304 = vector.broadcast %cst_145 : f32 to vector<8x128xf32>
    %305 = arith.mulf %304, %303 : vector<8x128xf32>
    %306 = math.tanh %305 : vector<8x128xf32>
    %cst_146 = arith.constant 1.000000e+00 : f32
    %307 = vector.broadcast %cst_146 : f32 to vector<8x128xf32>
    %308 = arith.addf %306, %307 : vector<8x128xf32>
    %cst_147 = arith.constant 5.000000e-01 : f32
    %309 = vector.broadcast %cst_147 : f32 to vector<8x128xf32>
    %310 = arith.mulf %309, %308 : vector<8x128xf32>
    %311 = vector.extract_strided_slice %294 {offsets = [0, 256], sizes = [8, 128], strides = [1, 1]} : vector<8x512xf32> to vector<8x128xf32>
    %312 = math.tanh %311 : vector<8x128xf32>
    %313 = vector.extract_strided_slice %294 {offsets = [0, 384], sizes = [8, 128], strides = [1, 1]} : vector<8x512xf32> to vector<8x128xf32>
    %cst_148 = arith.constant 5.000000e-01 : f32
    %314 = vector.broadcast %cst_148 : f32 to vector<8x128xf32>
    %315 = arith.mulf %314, %313 : vector<8x128xf32>
    %316 = math.tanh %315 : vector<8x128xf32>
    %cst_149 = arith.constant 1.000000e+00 : f32
    %317 = vector.broadcast %cst_149 : f32 to vector<8x128xf32>
    %318 = arith.addf %316, %317 : vector<8x128xf32>
    %cst_150 = arith.constant 5.000000e-01 : f32
    %319 = vector.broadcast %cst_150 : f32 to vector<8x128xf32>
    %320 = arith.mulf %319, %318 : vector<8x128xf32>
    %321 = arith.mulf %310, %282 : vector<8x128xf32>
    %322 = arith.mulf %302, %312 : vector<8x128xf32>
    %323 = arith.addf %321, %322 : vector<8x128xf32>
    %324 = math.tanh %323 : vector<8x128xf32>
    %325 = arith.mulf %320, %324 : vector<8x128xf32>
    %326 = arith.addf %285, %325 : vector<8x128xf32>
    %c3_i32_151 = arith.constant 3 : i32
    %c8_i32_152 = arith.constant 8 : i32
    %327 = arith.muli %c3_i32_151, %c8_i32_152 : i32
    %328 = tpu.assume_multiple %327, 8 : i32
    %329 = arith.index_cast %328 : i32 to index
    %c0_153 = arith.constant 0 : index
    %330 = vector.load %arg13[%329, %c0_153] : memref<32x512xf32, #tpu.memory_space<vmem>>, vector<8x512xf32>
    %331 = arith.truncf %325 : vector<8x128xf32> to vector<8x128xbf16>
    %c1_154 = arith.constant 1 : index
    %c0_155 = arith.constant 0 : index
    %c0_156 = arith.constant 0 : index
    %332 = vector.load %arg4[%c1_154, %c0_155, %c0_156] : memref<2x128x512xbf16, #tpu.memory_space<vmem>>, vector<1x128x512xbf16>
    %333 = vector.shape_cast %332 : vector<1x128x512xbf16> to vector<128x512xbf16>
    %cst_157 = arith.constant dense<0.000000e+00> : vector<8x512xf32>
    %334 = tpu.matmul %331, %333, %cst_157 {dimension_numbers = #tpu.dot_dimension_numbers<[1], [0], [0], [1], [0, 0, 1, 1], [], []>} : vector<8x128xbf16>, vector<128x512xbf16>, vector<8x512xf32> -> vector<8x512xf32>
    %335 = arith.addf %330, %334 : vector<8x512xf32>
    %336 = vector.extract_strided_slice %335 {offsets = [0, 0], sizes = [8, 128], strides = [1, 1]} : vector<8x512xf32> to vector<8x128xf32>
    %cst_158 = arith.constant 5.000000e-01 : f32
    %337 = vector.broadcast %cst_158 : f32 to vector<8x128xf32>
    %338 = arith.mulf %337, %336 : vector<8x128xf32>
    %339 = math.tanh %338 : vector<8x128xf32>
    %cst_159 = arith.constant 1.000000e+00 : f32
    %340 = vector.broadcast %cst_159 : f32 to vector<8x128xf32>
    %341 = arith.addf %339, %340 : vector<8x128xf32>
    %cst_160 = arith.constant 5.000000e-01 : f32
    %342 = vector.broadcast %cst_160 : f32 to vector<8x128xf32>
    %343 = arith.mulf %342, %341 : vector<8x128xf32>
    %344 = vector.extract_strided_slice %335 {offsets = [0, 128], sizes = [8, 128], strides = [1, 1]} : vector<8x512xf32> to vector<8x128xf32>
    %cst_161 = arith.constant 5.000000e-01 : f32
    %345 = vector.broadcast %cst_161 : f32 to vector<8x128xf32>
    %346 = arith.mulf %345, %344 : vector<8x128xf32>
    %347 = math.tanh %346 : vector<8x128xf32>
    %cst_162 = arith.constant 1.000000e+00 : f32
    %348 = vector.broadcast %cst_162 : f32 to vector<8x128xf32>
    %349 = arith.addf %347, %348 : vector<8x128xf32>
    %cst_163 = arith.constant 5.000000e-01 : f32
    %350 = vector.broadcast %cst_163 : f32 to vector<8x128xf32>
    %351 = arith.mulf %350, %349 : vector<8x128xf32>
    %352 = vector.extract_strided_slice %335 {offsets = [0, 256], sizes = [8, 128], strides = [1, 1]} : vector<8x512xf32> to vector<8x128xf32>
    %353 = math.tanh %352 : vector<8x128xf32>
    %354 = vector.extract_strided_slice %335 {offsets = [0, 384], sizes = [8, 128], strides = [1, 1]} : vector<8x512xf32> to vector<8x128xf32>
    %cst_164 = arith.constant 5.000000e-01 : f32
    %355 = vector.broadcast %cst_164 : f32 to vector<8x128xf32>
    %356 = arith.mulf %355, %354 : vector<8x128xf32>
    %357 = math.tanh %356 : vector<8x128xf32>
    %cst_165 = arith.constant 1.000000e+00 : f32
    %358 = vector.broadcast %cst_165 : f32 to vector<8x128xf32>
    %359 = arith.addf %357, %358 : vector<8x128xf32>
    %cst_166 = arith.constant 5.000000e-01 : f32
    %360 = vector.broadcast %cst_166 : f32 to vector<8x128xf32>
    %361 = arith.mulf %360, %359 : vector<8x128xf32>
    %362 = arith.mulf %351, %323 : vector<8x128xf32>
    %363 = arith.mulf %343, %353 : vector<8x128xf32>
    %364 = arith.addf %362, %363 : vector<8x128xf32>
    %365 = math.tanh %364 : vector<8x128xf32>
    %366 = arith.mulf %361, %365 : vector<8x128xf32>
    %367 = arith.addf %326, %366 : vector<8x128xf32>
    %c4_i32_167 = arith.constant 4 : i32
    %c0_168 = arith.constant 0 : index
    %c0_169 = arith.constant 0 : index
    %368 = vector.load %arg11[%c0_168, %c0_169] : memref<8x128xf32, #tpu.memory_space<vmem>>, vector<8x128xf32>
    tpu.vector_store %arg11[%c0_168, %c0_169], %367 {strides = array<i32>} : memref<8x128xf32, #tpu.memory_space<vmem>>, vector<8x128xf32>,
    %c1_170 = arith.constant 1 : index
    %c0_171 = arith.constant 0 : index
    %c0_172 = arith.constant 0 : index
    %369 = vector.load %arg9[%c1_170, %c0_171, %c0_172] : memref<2x8x128xf32, #tpu.memory_space<vmem>>, vector<1x8x128xf32>
    %370 = vector.shape_cast %369 : vector<1x8x128xf32> to vector<8x128xf32>
    %371 = vector.shape_cast %366 : vector<8x128xf32> to vector<1x8x128xf32>
    tpu.vector_store %arg9[%c1_170, %c0_171, %c0_172], %371 {strides = array<i32>} : memref<2x8x128xf32, #tpu.memory_space<vmem>>, vector<1x8x128xf32>,
    %c1_173 = arith.constant 1 : index
    %c0_174 = arith.constant 0 : index
    %c0_175 = arith.constant 0 : index
    %372 = vector.load %arg10[%c1_173, %c0_174, %c0_175] : memref<2x8x128xf32, #tpu.memory_space<vmem>>, vector<1x8x128xf32>
    %373 = vector.shape_cast %372 : vector<1x8x128xf32> to vector<8x128xf32>
    %374 = vector.shape_cast %364 : vector<8x128xf32> to vector<1x8x128xf32>
    tpu.vector_store %arg10[%c1_173, %c0_174, %c0_175], %374 {strides = array<i32>} : memref<2x8x128xf32, #tpu.memory_space<vmem>>, vector<1x8x128xf32>,
    %c1_i32_176 = arith.constant 1 : i32
    %375 = arith.cmpi eq, %arg0, %c1_i32_176 : i32
    %376 = arith.extui %375 : i1 to i32
    %c0_i32_177 = arith.constant 0 : i32
    %377 = arith.cmpi ne, %376, %c0_i32_177 : i32
    scf.if %377 {
      %c0_178 = arith.constant 0 : index
      %c0_179 = arith.constant 0 : index
      %378 = vector.load %arg11[%c0_178, %c0_179] : memref<8x128xf32, #tpu.memory_space<vmem>>, vector<8x128xf32>
      %cst_180 = arith.constant 1.250000e-01 : f32
      %379 = vector.broadcast %cst_180 : f32 to vector<8x128xf32>
      %380 = arith.mulf %378, %379 : vector<8x128xf32>
      %c0_181 = arith.constant 0 : index
      %c0_182 = arith.constant 0 : index
      %381 = vector.load %arg6[%c0_181, %c0_182] : memref<128x4xf32, #tpu.memory_space<vmem>>, vector<128x4xf32>
      %cst_183 = arith.constant dense<0.000000e+00> : vector<8x4xf32>
      %382 = tpu.matmul %380, %381, %cst_183 {dimension_numbers = #tpu.dot_dimension_numbers<[1], [0], [0], [1], [0, 0, 1, 1], [], []>} : vector<8x128xf32>, vector<128x4xf32>, vector<8x4xf32> -> vector<8x4xf32>
      %c0_184 = arith.constant 0 : index
      %c0_185 = arith.constant 0 : index
      %383 = vector.load %arg7[%c0_184, %c0_185] : memref<1x4xf32, #tpu.memory_space<vmem>>, vector<1x4xf32>
      %384 = vector.broadcast %383 : vector<1x4xf32> to vector<8x4xf32>
      %385 = arith.addf %382, %384 : vector<8x4xf32>
      %c0_186 = arith.constant 0 : index
      %c0_187 = arith.constant 0 : index
      %386 = vector.load %arg8[%c0_186, %c0_187] : memref<8x4xf32, #tpu.memory_space<vmem>>, vector<8x4xf32>
      tpu.vector_store %arg8[%c0_186, %c0_187], %385 {strides = array<i32>} : memref<8x4xf32, #tpu.memory_space<vmem>>, vector<8x4xf32>,
    } else {
    }
    return
  }
  func.func @transform_0(%arg0: i32) -> (i32, i32) {
    %c0_i32 = arith.constant 0 : i32
    %c0_i32_0 = arith.constant 0 : i32
    return %arg0, %c0_i32 : i32, i32
  }
  func.func @transform_1(%arg0: i32) -> (i32, i32) {
    %c0_i32 = arith.constant 0 : i32
    %c0_i32_0 = arith.constant 0 : i32
    %c0_i32_1 = arith.constant 0 : i32
    return %c0_i32, %c0_i32_0 : i32, i32
  }
  func.func @transform_2(%arg0: i32) -> (i32, i32, i32) {
    %c0_i32 = arith.constant 0 : i32
    %c0_i32_0 = arith.constant 0 : i32
    %c0_i32_1 = arith.constant 0 : i32
    %c0_i32_2 = arith.constant 0 : i32
    return %c0_i32, %c0_i32_0, %c0_i32_1 : i32, i32, i32
  }
  func.func @transform_3(%arg0: i32) -> (i32, i32, i32) {
    %c0_i32 = arith.constant 0 : i32
    %c0_i32_0 = arith.constant 0 : i32
    %c0_i32_1 = arith.constant 0 : i32
    %c0_i32_2 = arith.constant 0 : i32
    return %c0_i32, %c0_i32_0, %c0_i32_1 : i32, i32, i32
  }
  func.func @transform_4(%arg0: i32) -> (i32, i32, i32) {
    %c0_i32 = arith.constant 0 : i32
    %c0_i32_0 = arith.constant 0 : i32
    %c0_i32_1 = arith.constant 0 : i32
    %c0_i32_2 = arith.constant 0 : i32
    return %c0_i32, %c0_i32_0, %c0_i32_1 : i32, i32, i32
  }
  func.func @transform_5(%arg0: i32) -> (i32, i32) {
    %c0_i32 = arith.constant 0 : i32
    %c0_i32_0 = arith.constant 0 : i32
    %c0_i32_1 = arith.constant 0 : i32
    return %c0_i32, %c0_i32_0 : i32, i32
  }
  func.func @transform_6(%arg0: i32) -> (i32, i32) {
    %c0_i32 = arith.constant 0 : i32
    %c0_i32_0 = arith.constant 0 : i32
    %c0_i32_1 = arith.constant 0 : i32
    return %c0_i32, %c0_i32_0 : i32, i32
  }
  func.func @transform_7(%arg0: i32) -> (i32, i32) {
    %c0_i32 = arith.constant 0 : i32
    %c0_i32_0 = arith.constant 0 : i32
    %c0_i32_1 = arith.constant 0 : i32
    return %c0_i32, %c0_i32_0 : i32, i32
  }
}

</mosaic_0001>

<llo_original>
// kernel: tpu_custom_call.1
$region0: #{tpu_custom_call.1}
  #allocation0 [shape = 'u32[]', space=smem, size = 0x4, offset = 0x4, fixed_abs, tag = 'smem constant byte address 0x4 - core index']
  #allocation1 [shape = 'u32[144,128]{1,0:T(1,128)}', space=vmem, size = 0x12000, scoped, tag = 'internal scratch']
  #allocation2 [shape = 'f32[2,8,128]{2,1,0:T(8,128)}', space=vmem, size = 0x2000, scoped, tag = 'scratch operand']
  #allocation3 [shape = 'f32[2,8,128]{2,1,0:T(8,128)}', space=vmem, size = 0x2000, scoped, tag = 'scratch operand']
  #allocation4 [shape = 'f32[8,128]{1,0:T(8,128)}', space=vmem, size = 0x1000, scoped, tag = 'scratch operand']
  #allocation5 [shape = 'f32[32,128]{1,0:T(8,128)}', space=vmem, size = 0x4000, scoped, tag = 'scratch operand']
  #allocation6 [shape = 'f32[32,512]{1,0:T(8,128)}', space=vmem, size = 0x10000, scoped, tag = 'scratch operand']
  %s0 = inlined_call_operand.hbm [shape: bf16[64,128], index: 0, kind: input, shape index: {}]
  %s1 = inlined_call_operand.hbm [shape: bf16[128,512], index: 1, kind: input, shape index: {}]
  %s2 = inlined_call_operand.hbm [shape: bf16[1,128,512], index: 2, kind: input, shape index: {}]
  %s3 = inlined_call_operand.hbm [shape: bf16[2,128,512], index: 3, kind: input, shape index: {}]
  %s4 = inlined_call_operand.hbm [shape: f32[2,1,512], index: 4, kind: input, shape index: {}]
  %s5 = inlined_call_operand.hbm [shape: f32[128,4], index: 5, kind: input, shape index: {}]
  %s6 = inlined_call_operand.hbm [shape: f32[1,4], index: 6, kind: input, shape index: {}]
  %s7 = inlined_call_operand.hbm [shape: f32[8,4], index: 7, kind: output, shape index: {}]
  %s8 = sld [smem:[#allocation0]]
  $region97: #{tpu_custom_call.1} parent=0
    _
  %s10 = ssub.s32 1, %s8
  %s11 = scalar_select 0, %s10, %s8
  $region1: #{tpu_custom_call.1} parent=0
    #allocation7 [shape = 'u8[16384]{0}', space=vmem, size = 0x4000, scoped, tag = 'input window, operand 0']
    #allocation8 [shape = 's32[2]{0}', space=sflag, size = 0x8, scoped, tag = 'scoped memory for tpu_custom_call.1']
    #allocation9 [shape = 's32[2]{0}', space=sflag, size = 0x8, scoped, tag = 'scoped memory for tpu_custom_call.1']
    #allocation10 [shape = 'u8[131072]{0}', space=vmem, size = 0x20000, scoped, tag = 'input window, operand 1, single buffered']
    #allocation11 [shape = 's32[1]{0}', space=sflag, size = 0x4, scoped, tag = 'scoped memory for tpu_custom_call.1']
    #allocation12 [shape = 'u8[131072]{0}', space=vmem, size = 0x20000, scoped, tag = 'input window, operand 2, single buffered']
    #allocation13 [shape = 'u8[262144]{0}', space=vmem, size = 0x40000, scoped, tag = 'input window, operand 3, single buffered']
    #allocation14 [shape = 's32[1]{0}', space=sflag, size = 0x4, scoped, tag = 'scoped memory for tpu_custom_call.1']
    #allocation15 [shape = 'u8[4096]{0}', space=vmem, size = 0x1000, scoped, tag = 'input window, operand 4, single buffered']
    #allocation16 [shape = 'u8[65536]{0}', space=vmem, size = 0x10000, scoped, tag = 'input window, operand 5, single buffered']
    #allocation17 [shape = 's32[1]{0}', space=sflag, size = 0x4, scoped, tag = 'scoped memory for tpu_custom_call.1']
    #allocation18 [shape = 'u8[512]{0}', space=vmem, size = 0x400, scoped, tag = 'input window, operand 6, single buffered']
    #allocation19 [shape = 'u8[4096]{0}', space=vmem, size = 0x1000, scoped, tag = 'output window, operand 0, single buffered']
    %12 = vsyncpa [#allocation8], 0
    %s13 = scalar_lea.sflag [#allocation8], 1
    %14 = vsyncpa %s13, 0
    %15 = vsyncpa [#allocation11], 0
    %16 = vsyncpa [#allocation14], 0
    %17 = vsyncpa [#allocation17], 0
    %18 = vsyncpa [#allocation9], 0
    loop: start=0, step=1, limit=4
    $region2: #{tpu_custom_call.1} parent=1 // loop_pre_header
      _
    $region3: #{tpu_custom_call.1} parent=1 // loop_header
      %s20 = sphi 0, %s24
      %p21 = scmp.ge.s32.totalorder %s20, 4
      %s30 = sphi 0, %s32
      %s33 = sphi 0, %s30
      %s34 = sphi 0, %s33
      %s50 = sphi 0, %s34
      %s54 = sphi 0, %s54
      %s56 = sphi 0, %s54
      %s57 = sphi 0, %s56
      %s71 = sphi 0, %s57
      %s75 = sphi 0, %s75
      %s77 = sphi 0, %s75
      %s78 = sphi 0, %s77
      %s92 = sphi 0, %s78
      %s96 = sphi 0, %s96
      %s98 = sphi 0, %s96
      %s99 = sphi 0, %s98
      %s113 = sphi 0, %s99
      %s117 = sphi 0, %s117
      %s119 = sphi 0, %s117
      %s120 = sphi 0, %s119
      %s134 = sphi 0, %s120
      %s138 = sphi 0, %s138
      %s140 = sphi 0, %s138
      %s141 = sphi 0, %s140
      %s155 = sphi 0, %s141
      %s159 = sphi 0, %s159
      %s161 = sphi 0, %s159
      %s162 = sphi 0, %s161
      %s176 = sphi 0, %s162
      %s180 = sphi 0, %s180
      %s182 = sphi 0, %s180
      %s183 = sphi 0, %s182
      %s197 = sphi 0, %s183
    $region4: #{tpu_custom_call.1} parent=1 // loop_header_branch
      %23 = sbr.rel (%p21) target = $region8
    $region5: #{tpu_custom_call.1} parent=1 // loop_body
      %s25 = ssub.s32 %s20, 1
      %s26 = ssub.s32 %s20, 2
      %s27 = sadd.s32 %s20, 1
      %s28 = ssub.s32 %s20, %s27
      %p29 = scmp.eq.s32.totalorder %s28, 0
      %s31 = sadd.s32 %s30, 1
      %s32 = scalar_select %p29, %s30, %s31
      %p35 = pneg %p29
      %p36 = scmp.eq.s32.totalorder %s20, 1
      %p37 = por %p35, %p36
      %p38 = scmp.ne.s32.totalorder %s30, %s33
      %p39 = scmp.eq.s32.totalorder %s20, 0
      %p40 = por %p38, %p39
      %p41 = scmp.ne.s32.totalorder %s30, %s33
      %p42 = scmp.eq.s32.totalorder %s25, 1
      %p43 = por %p41, %p42
      %p44 = scmp.ne.s32.totalorder %s33, %s34
      %p45 = scmp.eq.s32.totalorder %s25, 0
      %p46 = por %p44, %p45
      %p47 = scmp.ne.s32.totalorder %s33, %s34
      %p48 = scmp.eq.s32.totalorder %s26, 1
      %p49 = por %p47, %p48
      %p51 = scmp.ne.s32.totalorder %s34, %s50
      %p52 = scmp.eq.s32.totalorder %s26, 0
      %p53 = por %p51, %p52
      %s55 = sadd.s32 %s54, 1
      %p58 = scmp.eq.s32.totalorder %s20, 1
      %p59 = scmp.ne.s32.totalorder %s54, %s56
      %p60 = scmp.eq.s32.totalorder %s20, 0
      %p61 = por %p59, %p60
      %p62 = scmp.ne.s32.totalorder %s54, %s56
      %p63 = scmp.eq.s32.totalorder %s25, 1
      %p64 = por %p62, %p63
      %p65 = scmp.ne.s32.totalorder %s56, %s57
      %p66 = scmp.eq.s32.totalorder %s25, 0
      %p67 = por %p65, %p66
      %p68 = scmp.ne.s32.totalorder %s56, %s57
      %p69 = scmp.eq.s32.totalorder %s26, 1
      %p70 = por %p68, %p69
      %p72 = scmp.ne.s32.totalorder %s57, %s71
      %p73 = scmp.eq.s32.totalorder %s26, 0
      %p74 = por %p72, %p73
      %s76 = sadd.s32 %s75, 1
      %p79 = scmp.eq.s32.totalorder %s20, 1
      %p80 = scmp.ne.s32.totalorder %s75, %s77
      %p81 = scmp.eq.s32.totalorder %s20, 0
      %p82 = por %p80, %p81
      %p83 = scmp.ne.s32.totalorder %s75, %s77
      %p84 = scmp.eq.s32.totalorder %s25, 1
      %p85 = por %p83, %p84
      %p86 = scmp.ne.s32.totalorder %s77, %s78
      %p87 = scmp.eq.s32.totalorder %s25, 0
      %p88 = por %p86, %p87
      %p89 = scmp.ne.s32.totalorder %s77, %s78
      %p90 = scmp.eq.s32.totalorder %s26, 1
      %p91 = por %p89, %p90
      %p93 = scmp.ne.s32.totalorder %s78, %s92
      %p94 = scmp.eq.s32.totalorder %s26, 0
      %p95 = por %p93, %p94
      %s97 = sadd.s32 %s96, 1
      %p100 = scmp.eq.s32.totalorder %s20, 1
      %p101 = scmp.ne.s32.totalorder %s96, %s98
      %p102 = scmp.eq.s32.totalorder %s20, 0
      %p103 = por %p101, %p102
      %p104 = scmp.ne.s32.totalorder %s96, %s98
      %p105 = scmp.eq.s32.totalorder %s25, 1
      %p106 = por %p104, %p105
      %p107 = scmp.ne.s32.totalorder %s98, %s99
      %p108 = scmp.eq.s32.totalorder %s25, 0
      %p109 = por %p107, %p108
      %p110 = scmp.ne.s32.totalorder %s98, %s99
      %p111 = scmp.eq.s32.totalorder %s26, 1
      %p112 = por %p110, %p111
      %p114 = scmp.ne.s32.totalorder %s99, %s113
      %p115 = scmp.eq.s32.totalorder %s26, 0
      %p116 = por %p114, %p115
      %s118 = sadd.s32 %s117, 1
      %p121 = scmp.eq.s32.totalorder %s20, 1
      %p122 = scmp.ne.s32.totalorder %s117, %s119
      %p123 = scmp.eq.s32.totalorder %s20, 0
      %p124 = por %p122, %p123
      %p125 = scmp.ne.s32.totalorder %s117, %s119
      %p126 = scmp.eq.s32.totalorder %s25, 1
      %p127 = por %p125, %p126
      %p128 = scmp.ne.s32.totalorder %s119, %s120
      %p129 = scmp.eq.s32.totalorder %s25, 0
      %p130 = por %p128, %p129
      %p131 = scmp.ne.s32.totalorder %s119, %s120
      %p132 = scmp.eq.s32.totalorder %s26, 1
      %p133 = por %p131, %p132
      %p135 = scmp.ne.s32.totalorder %s120, %s134
      %p136 = scmp.eq.s32.totalorder %s26, 0
      %p137 = por %p135, %p136
      %s139 = sadd.s32 %s138, 1
      %p142 = scmp.eq.s32.totalorder %s20, 1
      %p143 = scmp.ne.s32.totalorder %s138, %s140
      %p144 = scmp.eq.s32.totalorder %s20, 0
      %p145 = por %p143, %p144
      %p146 = scmp.ne.s32.totalorder %s138, %s140
      %p147 = scmp.eq.s32.totalorder %s25, 1
      %p148 = por %p146, %p147
      %p149 = scmp.ne.s32.totalorder %s140, %s141
      %p150 = scmp.eq.s32.totalorder %s25, 0
      %p151 = por %p149, %p150
      %p152 = scmp.ne.s32.totalorder %s140, %s141
      %p153 = scmp.eq.s32.totalorder %s26, 1
      %p154 = por %p152, %p153
      %p156 = scmp.ne.s32.totalorder %s141, %s155
      %p157 = scmp.eq.s32.totalorder %s26, 0
      %p158 = por %p156, %p157
      %s160 = sadd.s32 %s159, 1
      %p163 = scmp.eq.s32.totalorder %s20, 1
      %p164 = scmp.ne.s32.totalorder %s159, %s161
      %p165 = scmp.eq.s32.totalorder %s20, 0
      %p166 = por %p164, %p165
      %p167 = scmp.ne.s32.totalorder %s159, %s161
      %p168 = scmp.eq.s32.totalorder %s25, 1
      %p169 = por %p167, %p168
      %p170 = scmp.ne.s32.totalorder %s161, %s162
      %p171 = scmp.eq.s32.totalorder %s25, 0
      %p172 = por %p170, %p171
      %p173 = scmp.ne.s32.totalorder %s161, %s162
      %p174 = scmp.eq.s32.totalorder %s26, 1
      %p175 = por %p173, %p174
      %p177 = scmp.ne.s32.totalorder %s162, %s176
      %p178 = scmp.eq.s32.totalorder %s26, 0
      %p179 = por %p177, %p178
      %s181 = sadd.s32 %s180, 1
      %p184 = scmp.eq.s32.totalorder %s20, 1
      %p185 = scmp.ne.s32.totalorder %s180, %s182
      %p186 = scmp.eq.s32.totalorder %s20, 0
      %p187 = por %p185, %p186
      %p188 = scmp.ne.s32.totalorder %s180, %s182
      %p189 = scmp.eq.s32.totalorder %s25, 1
      %p190 = por %p188, %p189
      %p191 = scmp.ne.s32.totalorder %s182, %s183
      %p192 = scmp.eq.s32.totalorder %s25, 0
      %p193 = por %p191, %p192
      %p194 = scmp.ne.s32.totalorder %s182, %s183
      %p195 = scmp.eq.s32.totalorder %s26, 1
      %p196 = por %p194, %p195
      %p198 = scmp.ne.s32.totalorder %s183, %s197
      %p199 = scmp.eq.s32.totalorder %s26, 0
      %p200 = por %p198, %p199
      %p201 = scmp.le.s32.totalorder 1, %s20
      %p202 = scmp.lt.s32.totalorder %s20, 3
      %p203 = pnand %p201, %p202
      %p204 = pneg %p203
      // Predicated region
      $region9: #{tpu_custom_call.1} parent=5 // pred_check
        _
      $region10: #{tpu_custom_call.1} parent=5 // pred_check_branch
        %206 = sbr.rel (%p203) target = $region12
      $region11: #{tpu_custom_call.1} parent=5 // pred_region
        %s207 = ssub.s32 %s20, 1
        // Predicated region
        $region13: #{tpu_custom_call.1} parent=11 // pred_check
          %p208 = pneg %p67
        $region14: #{tpu_custom_call.1} parent=11 // pred_check_branch
          %210 = sbr.rel (%p208) target = $region16
        $region15: #{tpu_custom_call.1} parent=11 // pred_region
          %s212 = ssub.s32 4096, 4096
          %213 = vsyncadd [#allocation11], %s212
          %s214 = sshll.u32 [#allocation10], 4
          %s215 = int_to_ptr.vmem [resolvable:$true] %s214
          %220 = dma.hbm_to_vmem [thread:$0]  %s1, 4096, %s215, [#allocation11], 256, 256, 16
        $region16: #{tpu_custom_call.1} parent=11 // pred_fallthru
          _
        // Predicated region
        $region17: #{tpu_custom_call.1} parent=11 // pred_check
          %p221 = pneg %p88
        $region18: #{tpu_custom_call.1} parent=11 // pred_check_branch
          %223 = sbr.rel (%p221) target = $region20
        $region19: #{tpu_custom_call.1} parent=11 // pred_region
          %s225 = ssub.s32 4096, 4096
          %226 = vsyncadd [#allocation11], %s225
          %s227 = sshll.u32 [#allocation12], 4
          %s228 = int_to_ptr.vmem [resolvable:$true] %s227
          %233 = dma.hbm_to_vmem [thread:$0]  %s2, 4096, %s228, [#allocation11], 256, 256, 16
        $region20: #{tpu_custom_call.1} parent=11 // pred_fallthru
          _
        // Predicated region
        $region21: #{tpu_custom_call.1} parent=11 // pred_check
          %p234 = pneg %p109
        $region22: #{tpu_custom_call.1} parent=11 // pred_check_branch
          %236 = sbr.rel (%p234) target = $region24
        $region23: #{tpu_custom_call.1} parent=11 // pred_region
          %s238 = ssub.s32 8192, 8192
          %239 = vsyncadd [#allocation14], %s238
          %s240 = sshll.u32 [#allocation13], 4
          %s241 = int_to_ptr.vmem [resolvable:$true] %s240
          %246 = dma.hbm_to_vmem [thread:$0]  %s3, 8192, %s241, [#allocation14], 256, 256, 16
        $region24: #{tpu_custom_call.1} parent=11 // pred_fallthru
          _
        // Predicated region
        $region25: #{tpu_custom_call.1} parent=11 // pred_check
          %p247 = pneg %p130
        $region26: #{tpu_custom_call.1} parent=11 // pred_check_branch
          %249 = sbr.rel (%p247) target = $region28
        $region27: #{tpu_custom_call.1} parent=11 // pred_region
          %s251 = ssub.s32 128, 128
          %252 = vsyncadd [#allocation14], %s251
          %s253 = sshll.u32 [#allocation15], 4
          %s254 = int_to_ptr.vmem [resolvable:$true] %s253
          %259 = dma.hbm_to_vmem [thread:$0]  %s4, 128, %s254, [#allocation14], 64, 64, 4
        $region28: #{tpu_custom_call.1} parent=11 // pred_fallthru
          _
        // Predicated region
        $region29: #{tpu_custom_call.1} parent=11 // pred_check
          %p260 = pneg %p151
        $region30: #{tpu_custom_call.1} parent=11 // pred_check_branch
          %262 = sbr.rel (%p260) target = $region32
        $region31: #{tpu_custom_call.1} parent=11 // pred_region
          %s264 = ssub.s32 2048, 2048
          %265 = vsyncadd [#allocation17], %s264
          %s266 = sshll.u32 [#allocation16], 4
          %s267 = int_to_ptr.vmem [resolvable:$true] %s266
          %272 = dma.hbm_to_vmem [thread:$0]  %s5, 2048, %s267, [#allocation17], 128, 128, 8
        $region32: #{tpu_custom_call.1} parent=11 // pred_fallthru
          _
        // Predicated region
        $region33: #{tpu_custom_call.1} parent=11 // pred_check
          %p273 = pneg %p172
        $region34: #{tpu_custom_call.1} parent=11 // pred_check_branch
          %275 = sbr.rel (%p273) target = $region36
        $region35: #{tpu_custom_call.1} parent=11 // pred_region
          %s277 = ssub.s32 16, 16
          %278 = vsyncadd [#allocation17], %s277
          %s280 = sshll.u32 [#allocation18], 4
          %s281 = int_to_ptr.vmem [resolvable:$true] %s280
          %283 = dma.hbm_to_vmem [thread:$0]  %s6, 16, %s281, [#allocation17]
        $region36: #{tpu_custom_call.1} parent=11 // pred_fallthru
          _
      $region12: #{tpu_custom_call.1} parent=5 // pred_fallthru
        _
      %p284 = scmp.lt.s32.totalorder %s20, 2
      // Predicated region
      $region37: #{tpu_custom_call.1} parent=5 // pred_check
        %p285 = pneg %p284
      $region38: #{tpu_custom_call.1} parent=5 // pred_check_branch
        %287 = sbr.rel (%p285) target = $region40
      $region39: #{tpu_custom_call.1} parent=5 // pred_region
        // Predicated region
        $region41: #{tpu_custom_call.1} parent=39 // pred_check
          %p288 = pneg %p40
        $region42: #{tpu_custom_call.1} parent=39 // pred_check_branch
          %290 = sbr.rel (%p288) target = $region44
        $region43: #{tpu_custom_call.1} parent=39 // pred_region
          %s291 = sand.u32 %s30, 1
          %s292 = scalar_lea.sflag [#allocation8], %s291
          %s293 = sand.u32 %s30, 1
          %s294 = smul.addr %s293, 16
          %s295 = scalar_lea.vmem [#allocation7], %s294
          %s296 = smul.u32 4, %s20
          %s298 = ssub.s32 256, 256
          %299 = vsyncadd %s292, %s298
          %s300 = smul.addr %s296, 64
          %s301 = scalar_lea.hbm %s0, %s300
          %s302 = sshll.u32 %s295, 4
          %s303 = int_to_ptr.vmem [resolvable:$true] %s302
          %308 = dma.hbm_to_vmem [thread:$0]  %s301, 256, %s303, %s292, 64, 64, 4
        $region44: #{tpu_custom_call.1} parent=39 // pred_fallthru
          _
      $region40: #{tpu_custom_call.1} parent=5 // pred_fallthru
        _
      %p309 = scmp.le.s32.totalorder 1, %s20
      %p310 = scmp.lt.s32.totalorder %s20, 3
      %p311 = pnand %p309, %p310
      %p312 = pneg %p311
      // Predicated region
      $region45: #{tpu_custom_call.1} parent=5 // pred_check
        _
      $region46: #{tpu_custom_call.1} parent=5 // pred_check_branch
        %314 = sbr.rel (%p311) target = $region48
      $region47: #{tpu_custom_call.1} parent=5 // pred_region
        %s315 = ssub.s32 %s20, 1
        %s316 = sand.u32 %s33, 1
        %s317 = scalar_lea.sflag [#allocation8], %s316
        %s318 = sand.u32 %s33, 1
        %s319 = smul.addr %s318, 16
        %s320 = scalar_lea.vmem [#allocation7], %s319
        // Predicated region
        $region49: #{tpu_custom_call.1} parent=47 // pred_check
          %p321 = pneg %p46
        $region50: #{tpu_custom_call.1} parent=47 // pred_check_branch
          %323 = sbr.rel (%p321) target = $region52
        $region51: #{tpu_custom_call.1} parent=47 // pred_region
          %324 = dma.done %s317, 256
        $region52: #{tpu_custom_call.1} parent=47 // pred_fallthru
          _
        // Predicated region
        $region53: #{tpu_custom_call.1} parent=47 // pred_check
          %p325 = pneg %p67
        $region54: #{tpu_custom_call.1} parent=47 // pred_check_branch
          %327 = sbr.rel (%p325) target = $region56
        $region55: #{tpu_custom_call.1} parent=47 // pred_region
          %328 = dma.done [#allocation11], 4096
        $region56: #{tpu_custom_call.1} parent=47 // pred_fallthru
          _
        // Predicated region
        $region57: #{tpu_custom_call.1} parent=47 // pred_check
          %p329 = pneg %p88
        $region58: #{tpu_custom_call.1} parent=47 // pred_check_branch
          %331 = sbr.rel (%p329) target = $region60
        $region59: #{tpu_custom_call.1} parent=47 // pred_region
          %332 = dma.done [#allocation11], 4096
        $region60: #{tpu_custom_call.1} parent=47 // pred_fallthru
          _
        // Predicated region
        $region61: #{tpu_custom_call.1} parent=47 // pred_check
          %p333 = pneg %p109
        $region62: #{tpu_custom_call.1} parent=47 // pred_check_branch
          %335 = sbr.rel (%p333) target = $region64
        $region63: #{tpu_custom_call.1} parent=47 // pred_region
          %336 = dma.done [#allocation14], 8192
        $region64: #{tpu_custom_call.1} parent=47 // pred_fallthru
          _
        // Predicated region
        $region65: #{tpu_custom_call.1} parent=47 // pred_check
          %p337 = pneg %p130
        $region66: #{tpu_custom_call.1} parent=47 // pred_check_branch
          %339 = sbr.rel (%p337) target = $region68
        $region67: #{tpu_custom_call.1} parent=47 // pred_region
          %340 = dma.done [#allocation14], 128
        $region68: #{tpu_custom_call.1} parent=47 // pred_fallthru
          _
        // Predicated region
        $region69: #{tpu_custom_call.1} parent=47 // pred_check
          %p341 = pneg %p151
        $region70: #{tpu_custom_call.1} parent=47 // pred_check_branch
          %343 = sbr.rel (%p341) target = $region72
        $region71: #{tpu_custom_call.1} parent=47 // pred_region
          %344 = dma.done [#allocation17], 2048
        $region72: #{tpu_custom_call.1} parent=47 // pred_fallthru
          _
        // Predicated region
        $region73: #{tpu_custom_call.1} parent=47 // pred_check
          %p345 = pneg %p172
        $region74: #{tpu_custom_call.1} parent=47 // pred_check_branch
          %347 = sbr.rel (%p345) target = $region76
        $region75: #{tpu_custom_call.1} parent=47 // pred_region
          %348 = dma.done [#allocation17], 16
        $region76: #{tpu_custom_call.1} parent=47 // pred_fallthru
          _
        %s349 = sand.u32 %s33, 1
        %s350 = scalar_lea.sflag [#allocation8], %s349
        %s351 = sand.u32 %s33, 1
        %s352 = smul.addr %s351, 16
        %s353 = scalar_lea.vmem [#allocation7], %s352
        %p354 = pneg %p46
        %p355 = pneg %p43
        %p356 = pneg %p67
        %p357 = pneg %p64
        %p358 = pneg %p88
        %p359 = pneg %p85
        %p360 = pneg %p109
        %p361 = pneg %p106
        %p362 = pneg %p130
        %p363 = pneg %p127
        %p364 = pneg %p151
        %p365 = pneg %p148
        %p366 = pneg %p172
        %p367 = pneg %p169
        %p368 = pneg %p193
        %p369 = pneg %p190
        %s370 = smul.u32 4, %s25
        %p372 = scmp.eq.s32.totalorder %s25, 0
        // Predicated region
        $region77: #{tpu_custom_call.1} parent=47 // pred_check
          %p373 = pneg %p372
        $region78: #{tpu_custom_call.1} parent=47 // pred_check_branch
          %375 = sbr.rel (%p373) target = $region80
        $region79: #{tpu_custom_call.1} parent=47 // pred_region
          %376 = vst [vmem:[#allocation2] sm:$0xff] 0.0
          %377 = vst [vmem:[#allocation2 + $0x8] sm:$0xff] 0.0
          %378 = vst [vmem:[#allocation3] sm:$0xff] 0.0
          %379 = vst [vmem:[#allocation3 + $0x8] sm:$0xff] 0.0
          %380 = vst [vmem:[#allocation4] sm:$0xff] 0.0
        $region80: #{tpu_custom_call.1} parent=47 // pred_fallthru
          _
        %v381 = vld [vmem:[%s320] sm:$0xf]
        %v382 = vld [vmem:[%s320 + $0x4] sm:$0xf]
        %v383 = vld [vmem:[%s320 + $0x8] sm:$0xf]
        %v384 = vld [vmem:[%s320 + $0xc] sm:$0xf]
        %v385 = vld [vmem:[#allocation10] sm:$0xff]
        %v386 = vld [vmem:[#allocation10 + $0x8] sm:$0xff]
        %v387 = vld [vmem:[#allocation10 + $0x10] sm:$0xff]
        %v388 = vld [vmem:[#allocation10 + $0x18] sm:$0xff]
        %v389 = vld [vmem:[#allocation10 + $0x20] sm:$0xff]
        %v390 = vld [vmem:[#allocation10 + $0x28] sm:$0xff]
        %v391 = vld [vmem:[#allocation10 + $0x30] sm:$0xff]
        %v392 = vld [vmem:[#allocation10 + $0x38] sm:$0xff]
        %v393 = vld [vmem:[#allocation10 + $0x40] sm:$0xff]
        %v394 = vld [vmem:[#allocation10 + $0x48] sm:$0xff]
        %v395 = vld [vmem:[#allocation10 + $0x50] sm:$0xff]
        %v396 = vld [vmem:[#allocation10 + $0x58] sm:$0xff]
        %v397 = vld [vmem:[#allocation10 + $0x60] sm:$0xff]
        %v398 = vld [vmem:[#allocation10 + $0x68] sm:$0xff]
        %v399 = vld [vmem:[#allocation10 + $0x70] sm:$0xff]
        %v400 = vld [vmem:[#allocation10 + $0x78] sm:$0xff]
        %v401 = vld [vmem:[#allocation10 + $0x80] sm:$0xff]
        %v402 = vld [vmem:[#allocation10 + $0x88] sm:$0xff]
        %v403 = vld [vmem:[#allocation10 + $0x90] sm:$0xff]
        %v404 = vld [vmem:[#allocation10 + $0x98] sm:$0xff]
        %v405 = vld [vmem:[#allocation10 + $0xa0] sm:$0xff]
        %v406 = vld [vmem:[#allocation10 + $0xa8] sm:$0xff]
        %v407 = vld [vmem:[#allocation10 + $0xb0] sm:$0xff]
        %v408 = vld [vmem:[#allocation10 + $0xb8] sm:$0xff]
        %v409 = vld [vmem:[#allocation10 + $0xc0] sm:$0xff]
        %v410 = vld [vmem:[#allocation10 + $0xc8] sm:$0xff]
        %v411 = vld [vmem:[#allocation10 + $0xd0] sm:$0xff]
        %v412 = vld [vmem:[#allocation10 + $0xd8] sm:$0xff]
        %v413 = vld [vmem:[#allocation10 + $0xe0] sm:$0xff]
        %v414 = vld [vmem:[#allocation10 + $0xe8] sm:$0xff]
        %v415 = vld [vmem:[#allocation10 + $0xf0] sm:$0xff]
        %v416 = vld [vmem:[#allocation10 + $0xf8] sm:$0xff]
        %v417 = vld [vmem:[#allocation15] sm:$0xf]
        %v419 = vlaneseq
        %v420 = vshrl.u32 %v419, 7
        %v421 = vsub.s32 0, %v420
        %v422 = vrot.slane %v417, %v421
        %v423 = vlaneseq
        %v424 = vshrl.u32 %v423, 7
        %v425 = vsub.s32 1, %v424
        %v426 = vrot.slane %v417, %v425
        %v427 = vlaneseq
        %v428 = vshrl.u32 %v427, 7
        %v429 = vsub.s32 2, %v428
        %v430 = vrot.slane %v417, %v429
        %v431 = vlaneseq
        %v432 = vshrl.u32 %v431, 7
        %v433 = vsub.s32 3, %v432
        %v434 = vrot.slane %v417, %v433
        %v443 = vunpack.c.l.b16 %v381
        %v444 = vunpack.c.l.b16 %v382
        %v445 = vunpack.c.l.b16 %v383
        %v446 = vunpack.c.l.b16 %v384
        %v447 = vpack.c.b16 %v444, %v443
        %v448 = vpack.c.b16 %v446, %v445
        %v483 = vunpack.c.l.b16 %v385
        %v484 = vunpack.c.h.b16 %v385
        %v485 = vunpack.c.l.b16 %v386
        %v486 = vunpack.c.h.b16 %v386
        %v487 = vunpack.c.l.b16 %v387
        %v488 = vunpack.c.h.b16 %v387
        %v489 = vunpack.c.l.b16 %v388
        %v490 = vunpack.c.h.b16 %v388
        %v491 = vunpack.c.l.b16 %v389
        %v492 = vunpack.c.h.b16 %v389
        %v493 = vunpack.c.l.b16 %v390
        %v494 = vunpack.c.h.b16 %v390
        %v495 = vunpack.c.l.b16 %v391
        %v496 = vunpack.c.h.b16 %v391
        %v497 = vunpack.c.l.b16 %v392
        %v498 = vunpack.c.h.b16 %v392
        %v499 = vunpack.c.l.b16 %v393
        %v500 = vunpack.c.h.b16 %v393
        %v501 = vunpack.c.l.b16 %v394
        %v502 = vunpack.c.h.b16 %v394
        %v503 = vunpack.c.l.b16 %v395
        %v504 = vunpack.c.h.b16 %v395
        %v505 = vunpack.c.l.b16 %v396
        %v506 = vunpack.c.h.b16 %v396
        %v507 = vunpack.c.l.b16 %v397
        %v508 = vunpack.c.h.b16 %v397
        %v509 = vunpack.c.l.b16 %v398
        %v510 = vunpack.c.h.b16 %v398
        %v511 = vunpack.c.l.b16 %v399
        %v512 = vunpack.c.h.b16 %v399
        %v513 = vunpack.c.l.b16 %v400
        %v514 = vunpack.c.h.b16 %v400
        %v515 = vunpack.c.l.b16 %v401
        %v516 = vunpack.c.h.b16 %v401
        %v517 = vunpack.c.l.b16 %v402
        %v518 = vunpack.c.h.b16 %v402
        %v519 = vunpack.c.l.b16 %v403
        %v520 = vunpack.c.h.b16 %v403
        %v521 = vunpack.c.l.b16 %v404
        %v522 = vunpack.c.h.b16 %v404
        %v523 = vunpack.c.l.b16 %v405
        %v524 = vunpack.c.h.b16 %v405
        %v525 = vunpack.c.l.b16 %v406
        %v526 = vunpack.c.h.b16 %v406
        %v527 = vunpack.c.l.b16 %v407
        %v528 = vunpack.c.h.b16 %v407
        %v529 = vunpack.c.l.b16 %v408
        %v530 = vunpack.c.h.b16 %v408
        %v531 = vunpack.c.l.b16 %v409
        %v532 = vunpack.c.h.b16 %v409
        %v533 = vunpack.c.l.b16 %v410
        %v534 = vunpack.c.h.b16 %v410
        %v535 = vunpack.c.l.b16 %v411
        %v536 = vunpack.c.h.b16 %v411
        %v537 = vunpack.c.l.b16 %v412
        %v538 = vunpack.c.h.b16 %v412
        %v539 = vunpack.c.l.b16 %v413
        %v540 = vunpack.c.h.b16 %v413
        %v541 = vunpack.c.l.b16 %v414
        %v542 = vunpack.c.h.b16 %v414
        %v543 = vunpack.c.l.b16 %v415
        %v544 = vunpack.c.h.b16 %v415
        %v545 = vunpack.c.l.b16 %v416
        %v546 = vunpack.c.h.b16 %v416
        %v547 = vpack.c.b16 %v487, %v483
        %v548 = vpack.c.b16 %v488, %v484
        %v549 = vpack.c.b16 %v489, %v485
        %v550 = vpack.c.b16 %v490, %v486
        %v551 = vpack.c.b16 %v495, %v491
        %v552 = vpack.c.b16 %v496, %v492
        %v553 = vpack.c.b16 %v497, %v493
        %v554 = vpack.c.b16 %v498, %v494
        %v555 = vpack.c.b16 %v503, %v499
        %v556 = vpack.c.b16 %v504, %v500
        %v557 = vpack.c.b16 %v505, %v501
        %v558 = vpack.c.b16 %v506, %v502
        %v559 = vpack.c.b16 %v511, %v507
        %v560 = vpack.c.b16 %v512, %v508
        %v561 = vpack.c.b16 %v513, %v509
        %v562 = vpack.c.b16 %v514, %v510
        %v563 = vpack.c.b16 %v519, %v515
        %v564 = vpack.c.b16 %v520, %v516
        %v565 = vpack.c.b16 %v521, %v517
        %v566 = vpack.c.b16 %v522, %v518
        %v567 = vpack.c.b16 %v527, %v523
        %v568 = vpack.c.b16 %v528, %v524
        %v569 = vpack.c.b16 %v529, %v525
        %v570 = vpack.c.b16 %v530, %v526
        %v571 = vpack.c.b16 %v535, %v531
        %v572 = vpack.c.b16 %v536, %v532
        %v573 = vpack.c.b16 %v537, %v533
        %v574 = vpack.c.b16 %v538, %v534
        %v575 = vpack.c.b16 %v543, %v539
        %v576 = vpack.c.b16 %v544, %v540
        %v577 = vpack.c.b16 %v545, %v541
        %v578 = vpack.c.b16 %v546, %v542
        %611 = vmatprep.subr.bf16.mxu0 %v548
        %612 = vmatpush1.bf16.msra.mxu0 %v547
        %613 = vmatprep.subr.bf16.mxu0 %v552
        %614 = vmatpush1.bf16.msra.mxu0 %v551
        %615 = vmatprep.subr.bf16.mxu0 %v556
        %616 = vmatpush1.bf16.msra.mxu0 %v555
        %617 = vmatprep.subr.bf16.mxu0 %v560
        %618 = vmatpush1.bf16.msra.mxu0 %v559
        %619 = vmatprep.subr.bf16.mxu0 %v564
        %620 = vmatpush1.bf16.msra.mxu0 %v563
        %621 = vmatprep.subr.bf16.mxu0 %v568
        %622 = vmatpush1.bf16.msra.mxu0 %v567
        %623 = vmatprep.subr.bf16.mxu0 %v572
        %624 = vmatpush1.bf16.msra.mxu0 %v571
        %625 = vmatprep.subr.bf16.mxu0 %v576
        %626 = vmatpush1.bf16.msra.mxu0 %v575
        %627 = vmatprep.subr.bf16.mxu0 0
        %628 = vmatpush1.bf16.msra.mxu0 0
        %629 = vmatprep.subr.bf16.mxu0 0
        %630 = vmatpush1.bf16.msra.mxu0 0
        %631 = vmatprep.subr.bf16.mxu0 0
        %632 = vmatpush1.bf16.msra.mxu0 0
        %633 = vmatprep.subr.bf16.mxu0 0
        %634 = vmatpush1.bf16.msra.mxu0 0
        %635 = vmatprep.subr.bf16.mxu0 0
        %636 = vmatpush1.bf16.msra.mxu0 0
        %637 = vmatprep.subr.bf16.mxu0 0
        %638 = vmatpush1.bf16.msra.mxu0 0
        %639 = vmatprep.subr.bf16.mxu0 0
        %640 = vmatpush1.bf16.msra.mxu0 0
        %641 = vmatprep.subr.bf16.mxu0 0
        %642 = vmatpush1.bf16.msra.mxu0 0
        %643 = vmatprep.mubr.bf16.mxu0 0
        %644 = vmatmul.mubr.bf16.gmra.mrb[0].mxu0 %v447
        %v645 = vpop.f32.mrb[0].mxu0
        %v646 = vadd.f32 %v422, %v645
        %v647 = vpop.f32.mrb[0].mxu0
        %v648 = vadd.f32 %v426, %v647
        %v649 = vpop.f32.mrb[0].mxu0
        %v650 = vadd.f32 %v422, %v649
        %v651 = vpop.f32.mrb[0].mxu0
        %v652 = vadd.f32 %v426, %v651
        %653 = vmatprep.mubr.bf16.mxu0 0
        %654 = vmatmul.mubr.bf16.gmra.mrb[0].mxu0 %v448
        %v655 = vpop.f32.mrb[0].mxu0
        %v656 = vadd.f32 %v422, %v655
        %v657 = vpop.f32.mrb[0].mxu0
        %v658 = vadd.f32 %v426, %v657
        %v659 = vpop.f32.mrb[0].mxu0
        %v660 = vadd.f32 %v422, %v659
        %v661 = vpop.f32.mrb[0].mxu0
        %v662 = vadd.f32 %v426, %v661
        %663 = vdwg.mxu0
        %664 = vmatprep.subr.bf16.mxu0 %v550
        %665 = vmatpush1.bf16.msra.mxu0 %v549
        %666 = vmatprep.subr.bf16.mxu0 %v554
        %667 = vmatpush1.bf16.msra.mxu0 %v553
        %668 = vmatprep.subr.bf16.mxu0 %v558
        %669 = vmatpush1.bf16.msra.mxu0 %v557
        %670 = vmatprep.subr.bf16.mxu0 %v562
        %671 = vmatpush1.bf16.msra.mxu0 %v561
        %672 = vmatprep.subr.bf16.mxu0 %v566
        %673 = vmatpush1.bf16.msra.mxu0 %v565
        %674 = vmatprep.subr.bf16.mxu0 %v570
        %675 = vmatpush1.bf16.msra.mxu0 %v569
        %676 = vmatprep.subr.bf16.mxu0 %v574
        %677 = vmatpush1.bf16.msra.mxu0 %v573
        %678 = vmatprep.subr.bf16.mxu0 %v578
        %679 = vmatpush1.bf16.msra.mxu0 %v577
        %680 = vmatprep.subr.bf16.mxu0 0
        %681 = vmatpush1.bf16.msra.mxu0 0
        %682 = vmatprep.subr.bf16.mxu0 0
        %683 = vmatpush1.bf16.msra.mxu0 0
        %684 = vmatprep.subr.bf16.mxu0 0
        %685 = vmatpush1.bf16.msra.mxu0 0
        %686 = vmatprep.subr.bf16.mxu0 0
        %687 = vmatpush1.bf16.msra.mxu0 0
        %688 = vmatprep.subr.bf16.mxu0 0
        %689 = vmatpush1.bf16.msra.mxu0 0
        %690 = vmatprep.subr.bf16.mxu0 0
        %691 = vmatpush1.bf16.msra.mxu0 0
        %692 = vmatprep.subr.bf16.mxu0 0
        %693 = vmatpush1.bf16.msra.mxu0 0
        %694 = vmatprep.subr.bf16.mxu0 0
        %695 = vmatpush1.bf16.msra.mxu0 0
        %696 = vmatprep.mubr.bf16.mxu0 0
        %697 = vmatmul.mubr.bf16.gmra.mrb[0].mxu0 %v447
        %v698 = vpop.f32.mrb[0].mxu0
        %v699 = vadd.f32 %v430, %v698
        %v700 = vpop.f32.mrb[0].mxu0
        %v701 = vadd.f32 %v434, %v700
        %v702 = vpop.f32.mrb[0].mxu0
        %v703 = vadd.f32 %v430, %v702
        %v704 = vpop.f32.mrb[0].mxu0
        %v705 = vadd.f32 %v434, %v704
        %706 = vmatprep.mubr.bf16.mxu0 0
        %707 = vmatmul.mubr.bf16.gmra.mrb[0].mxu0 %v448
        %v708 = vpop.f32.mrb[0].mxu0
        %v709 = vadd.f32 %v430, %v708
        %v710 = vpop.f32.mrb[0].mxu0
        %v711 = vadd.f32 %v434, %v710
        %v712 = vpop.f32.mrb[0].mxu0
        %v713 = vadd.f32 %v430, %v712
        %v714 = vpop.f32.mrb[0].mxu0
        %v715 = vadd.f32 %v434, %v714
        %716 = vdwg.mxu0
        %717 = vst [vmem:[#allocation6] sm:$0xff] %v646
        %718 = vst [vmem:[#allocation6 + $0x8] sm:$0xff] %v648
        %719 = vst [vmem:[#allocation6 + $0x10] sm:$0xff] %v699
        %720 = vst [vmem:[#allocation6 + $0x18] sm:$0xff] %v701
        %721 = vst [vmem:[#allocation6 + $0x20] sm:$0xff] %v650
        %722 = vst [vmem:[#allocation6 + $0x28] sm:$0xff] %v652
        %723 = vst [vmem:[#allocation6 + $0x30] sm:$0xff] %v703
        %724 = vst [vmem:[#allocation6 + $0x38] sm:$0xff] %v705
        %725 = vst [vmem:[#allocation6 + $0x40] sm:$0xff] %v656
        %726 = vst [vmem:[#allocation6 + $0x48] sm:$0xff] %v658
        %727 = vst [vmem:[#allocation6 + $0x50] sm:$0xff] %v709
        %728 = vst [vmem:[#allocation6 + $0x58] sm:$0xff] %v711
        %729 = vst [vmem:[#allocation6 + $0x60] sm:$0xff] %v660
        %730 = vst [vmem:[#allocation6 + $0x68] sm:$0xff] %v662
        %731 = vst [vmem:[#allocation6 + $0x70] sm:$0xff] %v713
        %732 = vst [vmem:[#allocation6 + $0x78] sm:$0xff] %v715
        %v733 = vld [vmem:[#allocation2] sm:$0xff]
        %v734 = vld [vmem:[#allocation3] sm:$0xff]
        %s735 = smul.u32 0, 4
        %s736 = smul.addr %s735, 8
        %s737 = scalar_lea.vmem [#allocation6], %s736
        %v738 = vld [vmem:[%s737] sm:$0xff]
        %v739 = vld [vmem:[%s737 + $0x8] sm:$0xff]
        %v740 = vld [vmem:[%s737 + $0x10] sm:$0xff]
        %v741 = vld [vmem:[%s737 + $0x18] sm:$0xff]
        %v742 = vpack.c.bf16 %v733, %v733
        %v743 = vld [vmem:[#allocation13] sm:$0xff]
        %v744 = vld [vmem:[#allocation13 + $0x8] sm:$0xff]
        %v745 = vld [vmem:[#allocation13 + $0x10] sm:$0xff]
        %v746 = vld [vmem:[#allocation13 + $0x18] sm:$0xff]
        %v747 = vld [vmem:[#allocation13 + $0x20] sm:$0xff]
        %v748 = vld [vmem:[#allocation13 + $0x28] sm:$0xff]
        %v749 = vld [vmem:[#allocation13 + $0x30] sm:$0xff]
        %v750 = vld [vmem:[#allocation13 + $0x38] sm:$0xff]
        %v751 = vld [vmem:[#allocation13 + $0x40] sm:$0xff]
        %v752 = vld [vmem:[#allocation13 + $0x48] sm:$0xff]
        %v753 = vld [vmem:[#allocation13 + $0x50] sm:$0xff]
        %v754 = vld [vmem:[#allocation13 + $0x58] sm:$0xff]
        %v755 = vld [vmem:[#allocation13 + $0x60] sm:$0xff]
        %v756 = vld [vmem:[#allocation13 + $0x68] sm:$0xff]
        %v757 = vld [vmem:[#allocation13 + $0x70] sm:$0xff]
        %v758 = vld [vmem:[#allocation13 + $0x78] sm:$0xff]
        %v759 = vld [vmem:[#allocation13 + $0x80] sm:$0xff]
        %v760 = vld [vmem:[#allocation13 + $0x88] sm:$0xff]
        %v761 = vld [vmem:[#allocation13 + $0x90] sm:$0xff]
        %v762 = vld [vmem:[#allocation13 + $0x98] sm:$0xff]
        %v763 = vld [vmem:[#allocation13 + $0xa0] sm:$0xff]
        %v764 = vld [vmem:[#allocation13 + $0xa8] sm:$0xff]
        %v765 = vld [vmem:[#allocation13 + $0xb0] sm:$0xff]
        %v766 = vld [vmem:[#allocation13 + $0xb8] sm:$0xff]
        %v767 = vld [vmem:[#allocation13 + $0xc0] sm:$0xff]
        %v768 = vld [vmem:[#allocation13 + $0xc8] sm:$0xff]
        %v769 = vld [vmem:[#allocation13 + $0xd0] sm:$0xff]
        %v770 = vld [vmem:[#allocation13 + $0xd8] sm:$0xff]
        %v771 = vld [vmem:[#allocation13 + $0xe0] sm:$0xff]
        %v772 = vld [vmem:[#allocation13 + $0xe8] sm:$0xff]
        %v773 = vld [vmem:[#allocation13 + $0xf0] sm:$0xff]
        %v774 = vld [vmem:[#allocation13 + $0xf8] sm:$0xff]
        %v807 = vunpack.c.l.b16 %v743
        %v808 = vunpack.c.h.b16 %v743
        %v809 = vunpack.c.l.b16 %v744
        %v810 = vunpack.c.h.b16 %v744
        %v811 = vunpack.c.l.b16 %v745
        %v812 = vunpack.c.h.b16 %v745
        %v813 = vunpack.c.l.b16 %v746
        %v814 = vunpack.c.h.b16 %v746
        %v815 = vunpack.c.l.b16 %v747
        %v816 = vunpack.c.h.b16 %v747
        %v817 = vunpack.c.l.b16 %v748
        %v818 = vunpack.c.h.b16 %v748
        %v819 = vunpack.c.l.b16 %v749
        %v820 = vunpack.c.h.b16 %v749
        %v821 = vunpack.c.l.b16 %v750
        %v822 = vunpack.c.h.b16 %v750
        %v823 = vunpack.c.l.b16 %v751
        %v824 = vunpack.c.h.b16 %v751
        %v825 = vunpack.c.l.b16 %v752
        %v826 = vunpack.c.h.b16 %v752
        %v827 = vunpack.c.l.b16 %v753
        %v828 = vunpack.c.h.b16 %v753
        %v829 = vunpack.c.l.b16 %v754
        %v830 = vunpack.c.h.b16 %v754
        %v831 = vunpack.c.l.b16 %v755
        %v832 = vunpack.c.h.b16 %v755
        %v833 = vunpack.c.l.b16 %v756
        %v834 = vunpack.c.h.b16 %v756
        %v835 = vunpack.c.l.b16 %v757
        %v836 = vunpack.c.h.b16 %v757
        %v837 = vunpack.c.l.b16 %v758
        %v838 = vunpack.c.h.b16 %v758
        %v839 = vunpack.c.l.b16 %v759
        %v840 = vunpack.c.h.b16 %v759
        %v841 = vunpack.c.l.b16 %v760
        %v842 = vunpack.c.h.b16 %v760
        %v843 = vunpack.c.l.b16 %v761
        %v844 = vunpack.c.h.b16 %v761
        %v845 = vunpack.c.l.b16 %v762
        %v846 = vunpack.c.h.b16 %v762
        %v847 = vunpack.c.l.b16 %v763
        %v848 = vunpack.c.h.b16 %v763
        %v849 = vunpack.c.l.b16 %v764
        %v850 = vunpack.c.h.b16 %v764
        %v851 = vunpack.c.l.b16 %v765
        %v852 = vunpack.c.h.b16 %v765
        %v853 = vunpack.c.l.b16 %v766
        %v854 = vunpack.c.h.b16 %v766
        %v855 = vunpack.c.l.b16 %v767
        %v856 = vunpack.c.h.b16 %v767
        %v857 = vunpack.c.l.b16 %v768
        %v858 = vunpack.c.h.b16 %v768
        %v859 = vunpack.c.l.b16 %v769
        %v860 = vunpack.c.h.b16 %v769
        %v861 = vunpack.c.l.b16 %v770
        %v862 = vunpack.c.h.b16 %v770
        %v863 = vunpack.c.l.b16 %v771
        %v864 = vunpack.c.h.b16 %v771
        %v865 = vunpack.c.l.b16 %v772
        %v866 = vunpack.c.h.b16 %v772
        %v867 = vunpack.c.l.b16 %v773
        %v868 = vunpack.c.h.b16 %v773
        %v869 = vunpack.c.l.b16 %v774
        %v870 = vunpack.c.h.b16 %v774
        %v871 = vpack.c.b16 %v811, %v807
        %v872 = vpack.c.b16 %v812, %v808
        %v873 = vpack.c.b16 %v813, %v809
        %v874 = vpack.c.b16 %v814, %v810
        %v875 = vpack.c.b16 %v819, %v815
        %v876 = vpack.c.b16 %v820, %v816
        %v877 = vpack.c.b16 %v821, %v817
        %v878 = vpack.c.b16 %v822, %v818
        %v879 = vpack.c.b16 %v827, %v823
        %v880 = vpack.c.b16 %v828, %v824
        %v881 = vpack.c.b16 %v829, %v825
        %v882 = vpack.c.b16 %v830, %v826
        %v883 = vpack.c.b16 %v835, %v831
        %v884 = vpack.c.b16 %v836, %v832
        %v885 = vpack.c.b16 %v837, %v833
        %v886 = vpack.c.b16 %v838, %v834
        %v887 = vpack.c.b16 %v843, %v839
        %v888 = vpack.c.b16 %v844, %v840
        %v889 = vpack.c.b16 %v845, %v841
        %v890 = vpack.c.b16 %v846, %v842
        %v891 = vpack.c.b16 %v851, %v847
        %v892 = vpack.c.b16 %v852, %v848
        %v893 = vpack.c.b16 %v853, %v849
        %v894 = vpack.c.b16 %v854, %v850
        %v895 = vpack.c.b16 %v859, %v855
        %v896 = vpack.c.b16 %v860, %v856
        %v897 = vpack.c.b16 %v861, %v857
        %v898 = vpack.c.b16 %v862, %v858
        %v899 = vpack.c.b16 %v867, %v863
        %v900 = vpack.c.b16 %v868, %v864
        %v901 = vpack.c.b16 %v869, %v865
        %v902 = vpack.c.b16 %v870, %v866
        %935 = vmatprep.subr.bf16.mxu0 %v872
        %936 = vmatpush1.bf16.msra.mxu0 %v871
        %937 = vmatprep.subr.bf16.mxu0 %v876
        %938 = vmatpush1.bf16.msra.mxu0 %v875
        %939 = vmatprep.subr.bf16.mxu0 %v880
        %940 = vmatpush1.bf16.msra.mxu0 %v879
        %941 = vmatprep.subr.bf16.mxu0 %v884
        %942 = vmatpush1.bf16.msra.mxu0 %v883
        %943 = vmatprep.subr.bf16.mxu0 %v888
        %944 = vmatpush1.bf16.msra.mxu0 %v887
        %945 = vmatprep.subr.bf16.mxu0 %v892
        %946 = vmatpush1.bf16.msra.mxu0 %v891
        %947 = vmatprep.subr.bf16.mxu0 %v896
        %948 = vmatpush1.bf16.msra.mxu0 %v895
        %949 = vmatprep.subr.bf16.mxu0 %v900
        %950 = vmatpush1.bf16.msra.mxu0 %v899
        %951 = vmatprep.subr.bf16.mxu0 0
        %952 = vmatpush1.bf16.msra.mxu0 0
        %953 = vmatprep.subr.bf16.mxu0 0
        %954 = vmatpush1.bf16.msra.mxu0 0
        %955 = vmatprep.subr.bf16.mxu0 0
        %956 = vmatpush1.bf16.msra.mxu0 0
        %957 = vmatprep.subr.bf16.mxu0 0
        %958 = vmatpush1.bf16.msra.mxu0 0
        %959 = vmatprep.subr.bf16.mxu0 0
        %960 = vmatpush1.bf16.msra.mxu0 0
        %961 = vmatprep.subr.bf16.mxu0 0
        %962 = vmatpush1.bf16.msra.mxu0 0
        %963 = vmatprep.subr.bf16.mxu0 0
        %964 = vmatpush1.bf16.msra.mxu0 0
        %965 = vmatprep.subr.bf16.mxu0 0
        %966 = vmatpush1.bf16.msra.mxu0 0
        %967 = vmatprep.mubr.bf16.mxu0 0
        %968 = vmatmul.mubr.bf16.gmra.mrb[0].mxu0 %v742
        %v969 = vpop.f32.mrb[0].mxu0
        %v970 = vadd.f32 0.0, %v969
        %v971 = vpop.f32.mrb[0].mxu0
        %v972 = vadd.f32 0.0, %v971
        %v973 = vpop.f32.mrb[0].mxu0
        %v974 = vpop.f32.mrb[0].mxu0
        %975 = vdwg.mxu0
        %976 = vmatprep.subr.bf16.mxu0 %v874
        %977 = vmatpush1.bf16.msra.mxu0 %v873
        %978 = vmatprep.subr.bf16.mxu0 %v878
        %979 = vmatpush1.bf16.msra.mxu0 %v877
        %980 = vmatprep.subr.bf16.mxu0 %v882
        %981 = vmatpush1.bf16.msra.mxu0 %v881
        %982 = vmatprep.subr.bf16.mxu0 %v886
        %983 = vmatpush1.bf16.msra.mxu0 %v885
        %984 = vmatprep.subr.bf16.mxu0 %v890
        %985 = vmatpush1.bf16.msra.mxu0 %v889
        %986 = vmatprep.subr.bf16.mxu0 %v894
        %987 = vmatpush1.bf16.msra.mxu0 %v893
        %988 = vmatprep.subr.bf16.mxu0 %v898
        %989 = vmatpush1.bf16.msra.mxu0 %v897
        %990 = vmatprep.subr.bf16.mxu0 %v902
        %991 = vmatpush1.bf16.msra.mxu0 %v901
        %992 = vmatprep.subr.bf16.mxu0 0
        %993 = vmatpush1.bf16.msra.mxu0 0
        %994 = vmatprep.subr.bf16.mxu0 0
        %995 = vmatpush1.bf16.msra.mxu0 0
        %996 = vmatprep.subr.bf16.mxu0 0
        %997 = vmatpush1.bf16.msra.mxu0 0
        %998 = vmatprep.subr.bf16.mxu0 0
        %999 = vmatpush1.bf16.msra.mxu0 0
        %1000 = vmatprep.subr.bf16.mxu0 0
        %1001 = vmatpush1.bf16.msra.mxu0 0
        %1002 = vmatprep.subr.bf16.mxu0 0
        %1003 = vmatpush1.bf16.msra.mxu0 0
        %1004 = vmatprep.subr.bf16.mxu0 0
        %1005 = vmatpush1.bf16.msra.mxu0 0
        %1006 = vmatprep.subr.bf16.mxu0 0
        %1007 = vmatpush1.bf16.msra.mxu0 0
        %1008 = vmatprep.mubr.bf16.mxu0 0
        %1009 = vmatmul.mubr.bf16.gmra.mrb[0].mxu0 %v742
        %v1010 = vpop.f32.mrb[0].mxu0
        %v1011 = vadd.f32 0.0, %v1010
        %v1012 = vpop.f32.mrb[0].mxu0
        %v1013 = vadd.f32 0.0, %v1012
        %v1014 = vpop.f32.mrb[0].mxu0
        %v1015 = vpop.f32.mrb[0].mxu0
        %1016 = vdwg.mxu0
        %v1017 = vadd.f32 %v738, %v970
        %v1018 = vadd.f32 %v739, %v972
        %v1019 = vadd.f32 %v740, %v1011
        %v1020 = vadd.f32 %v741, %v1013
        %v1021 = vmul.f32 %v1017, 0.5
        %v1022 = vtanh.pop %v1021
        %v1023 = vadd.f32 %v1022, 1.0
        %v1024 = vmul.f32 %v1023, 0.5
        %v1025 = vmul.f32 %v1018, 0.5
        %v1026 = vtanh.pop %v1025
        %v1027 = vadd.f32 %v1026, 1.0
        %v1028 = vmul.f32 %v1027, 0.5
        %v1029 = vtanh.pop %v1019
        %v1030 = vmul.f32 %v1020, 0.5
        %v1031 = vtanh.pop %v1030
        %v1032 = vadd.f32 %v1031, 1.0
        %v1033 = vmul.f32 %v1032, 0.5
        %v1034 = vmul.f32 %v1028, %v734
        %v1035 = vmul.f32 %v1024, %v1029
        %v1036 = vadd.f32 %v1034, %v1035
        %v1037 = vtanh.pop %v1036
        %v1038 = vmul.f32 %v1033, %v1037
        %1039 = vst [vmem:[#allocation5] sm:$0xff] %v1038
        %s1040 = smul.u32 1, 4
        %s1041 = smul.addr %s1040, 8
        %s1042 = scalar_lea.vmem [#allocation6], %s1041
        %v1043 = vld [vmem:[%s1042] sm:$0xff]
        %v1044 = vld [vmem:[%s1042 + $0x8] sm:$0xff]
        %v1045 = vld [vmem:[%s1042 + $0x10] sm:$0xff]
        %v1046 = vld [vmem:[%s1042 + $0x18] sm:$0xff]
        %v1047 = vpack.c.bf16 %v1038, %v1038
        %v1048 = vld [vmem:[#allocation13] sm:$0xff]
        %v1049 = vld [vmem:[#allocation13 + $0x8] sm:$0xff]
        %v1050 = vld [vmem:[#allocation13 + $0x10] sm:$0xff]
        %v1051 = vld [vmem:[#allocation13 + $0x18] sm:$0xff]
        %v1052 = vld [vmem:[#allocation13 + $0x20] sm:$0xff]
        %v1053 = vld [vmem:[#allocation13 + $0x28] sm:$0xff]
        %v1054 = vld [vmem:[#allocation13 + $0x30] sm:$0xff]
        %v1055 = vld [vmem:[#allocation13 + $0x38] sm:$0xff]
        %v1056 = vld [vmem:[#allocation13 + $0x40] sm:$0xff]
        %v1057 = vld [vmem:[#allocation13 + $0x48] sm:$0xff]
        %v1058 = vld [vmem:[#allocation13 + $0x50] sm:$0xff]
        %v1059 = vld [vmem:[#allocation13 + $0x58] sm:$0xff]
        %v1060 = vld [vmem:[#allocation13 + $0x60] sm:$0xff]
        %v1061 = vld [vmem:[#allocation13 + $0x68] sm:$0xff]
        %v1062 = vld [vmem:[#allocation13 + $0x70] sm:$0xff]
        %v1063 = vld [vmem:[#allocation13 + $0x78] sm:$0xff]
        %v1064 = vld [vmem:[#allocation13 + $0x80] sm:$0xff]
        %v1065 = vld [vmem:[#allocation13 + $0x88] sm:$0xff]
        %v1066 = vld [vmem:[#allocation13 + $0x90] sm:$0xff]
        %v1067 = vld [vmem:[#allocation13 + $0x98] sm:$0xff]
        %v1068 = vld [vmem:[#allocation13 + $0xa0] sm:$0xff]
        %v1069 = vld [vmem:[#allocation13 + $0xa8] sm:$0xff]
        %v1070 = vld [vmem:[#allocation13 + $0xb0] sm:$0xff]
        %v1071 = vld [vmem:[#allocation13 + $0xb8] sm:$0xff]
        %v1072 = vld [vmem:[#allocation13 + $0xc0] sm:$0xff]
        %v1073 = vld [vmem:[#allocation13 + $0xc8] sm:$0xff]
        %v1074 = vld [vmem:[#allocation13 + $0xd0] sm:$0xff]
        %v1075 = vld [vmem:[#allocation13 + $0xd8] sm:$0xff]
        %v1076 = vld [vmem:[#allocation13 + $0xe0] sm:$0xff]
        %v1077 = vld [vmem:[#allocation13 + $0xe8] sm:$0xff]
        %v1078 = vld [vmem:[#allocation13 + $0xf0] sm:$0xff]
        %v1079 = vld [vmem:[#allocation13 + $0xf8] sm:$0xff]
        %v1112 = vunpack.c.l.b16 %v1048
        %v1113 = vunpack.c.h.b16 %v1048
        %v1114 = vunpack.c.l.b16 %v1049
        %v1115 = vunpack.c.h.b16 %v1049
        %v1116 = vunpack.c.l.b16 %v1050
        %v1117 = vunpack.c.h.b16 %v1050
        %v1118 = vunpack.c.l.b16 %v1051
        %v1119 = vunpack.c.h.b16 %v1051
        %v1120 = vunpack.c.l.b16 %v1052
        %v1121 = vunpack.c.h.b16 %v1052
        %v1122 = vunpack.c.l.b16 %v1053
        %v1123 = vunpack.c.h.b16 %v1053
        %v1124 = vunpack.c.l.b16 %v1054
        %v1125 = vunpack.c.h.b16 %v1054
        %v1126 = vunpack.c.l.b16 %v1055
        %v1127 = vunpack.c.h.b16 %v1055
        %v1128 = vunpack.c.l.b16 %v1056
        %v1129 = vunpack.c.h.b16 %v1056
        %v1130 = vunpack.c.l.b16 %v1057
        %v1131 = vunpack.c.h.b16 %v1057
        %v1132 = vunpack.c.l.b16 %v1058
        %v1133 = vunpack.c.h.b16 %v1058
        %v1134 = vunpack.c.l.b16 %v1059
        %v1135 = vunpack.c.h.b16 %v1059
        %v1136 = vunpack.c.l.b16 %v1060
        %v1137 = vunpack.c.h.b16 %v1060
        %v1138 = vunpack.c.l.b16 %v1061
        %v1139 = vunpack.c.h.b16 %v1061
        %v1140 = vunpack.c.l.b16 %v1062
        %v1141 = vunpack.c.h.b16 %v1062
        %v1142 = vunpack.c.l.b16 %v1063
        %v1143 = vunpack.c.h.b16 %v1063
        %v1144 = vunpack.c.l.b16 %v1064
        %v1145 = vunpack.c.h.b16 %v1064
        %v1146 = vunpack.c.l.b16 %v1065
        %v1147 = vunpack.c.h.b16 %v1065
        %v1148 = vunpack.c.l.b16 %v1066
        %v1149 = vunpack.c.h.b16 %v1066
        %v1150 = vunpack.c.l.b16 %v1067
        %v1151 = vunpack.c.h.b16 %v1067
        %v1152 = vunpack.c.l.b16 %v1068
        %v1153 = vunpack.c.h.b16 %v1068
        %v1154 = vunpack.c.l.b16 %v1069
        %v1155 = vunpack.c.h.b16 %v1069
        %v1156 = vunpack.c.l.b16 %v1070
        %v1157 = vunpack.c.h.b16 %v1070
        %v1158 = vunpack.c.l.b16 %v1071
        %v1159 = vunpack.c.h.b16 %v1071
        %v1160 = vunpack.c.l.b16 %v1072
        %v1161 = vunpack.c.h.b16 %v1072
        %v1162 = vunpack.c.l.b16 %v1073
        %v1163 = vunpack.c.h.b16 %v1073
        %v1164 = vunpack.c.l.b16 %v1074
        %v1165 = vunpack.c.h.b16 %v1074
        %v1166 = vunpack.c.l.b16 %v1075
        %v1167 = vunpack.c.h.b16 %v1075
        %v1168 = vunpack.c.l.b16 %v1076
        %v1169 = vunpack.c.h.b16 %v1076
        %v1170 = vunpack.c.l.b16 %v1077
        %v1171 = vunpack.c.h.b16 %v1077
        %v1172 = vunpack.c.l.b16 %v1078
        %v1173 = vunpack.c.h.b16 %v1078
        %v1174 = vunpack.c.l.b16 %v1079
        %v1175 = vunpack.c.h.b16 %v1079
        %v1176 = vpack.c.b16 %v1116, %v1112
        %v1177 = vpack.c.b16 %v1117, %v1113
        %v1178 = vpack.c.b16 %v1118, %v1114
        %v1179 = vpack.c.b16 %v1119, %v1115
        %v1180 = vpack.c.b16 %v1124, %v1120
        %v1181 = vpack.c.b16 %v1125, %v1121
        %v1182 = vpack.c.b16 %v1126, %v1122
        %v1183 = vpack.c.b16 %v1127, %v1123
        %v1184 = vpack.c.b16 %v1132, %v1128
        %v1185 = vpack.c.b16 %v1133, %v1129
        %v1186 = vpack.c.b16 %v1134, %v1130
        %v1187 = vpack.c.b16 %v1135, %v1131
        %v1188 = vpack.c.b16 %v1140, %v1136
        %v1189 = vpack.c.b16 %v1141, %v1137
        %v1190 = vpack.c.b16 %v1142, %v1138
        %v1191 = vpack.c.b16 %v1143, %v1139
        %v1192 = vpack.c.b16 %v1148, %v1144
        %v1193 = vpack.c.b16 %v1149, %v1145
        %v1194 = vpack.c.b16 %v1150, %v1146
        %v1195 = vpack.c.b16 %v1151, %v1147
        %v1196 = vpack.c.b16 %v1156, %v1152
        %v1197 = vpack.c.b16 %v1157, %v1153
        %v1198 = vpack.c.b16 %v1158, %v1154
        %v1199 = vpack.c.b16 %v1159, %v1155
        %v1200 = vpack.c.b16 %v1164, %v1160
        %v1201 = vpack.c.b16 %v1165, %v1161
        %v1202 = vpack.c.b16 %v1166, %v1162
        %v1203 = vpack.c.b16 %v1167, %v1163
        %v1204 = vpack.c.b16 %v1172, %v1168
        %v1205 = vpack.c.b16 %v1173, %v1169
        %v1206 = vpack.c.b16 %v1174, %v1170
        %v1207 = vpack.c.b16 %v1175, %v1171
        %1240 = vmatprep.subr.bf16.mxu0 %v1177
        %1241 = vmatpush1.bf16.msra.mxu0 %v1176
        %1242 = vmatprep.subr.bf16.mxu0 %v1181
        %1243 = vmatpush1.bf16.msra.mxu0 %v1180
        %1244 = vmatprep.subr.bf16.mxu0 %v1185
        %1245 = vmatpush1.bf16.msra.mxu0 %v1184
        %1246 = vmatprep.subr.bf16.mxu0 %v1189
        %1247 = vmatpush1.bf16.msra.mxu0 %v1188
        %1248 = vmatprep.subr.bf16.mxu0 %v1193
        %1249 = vmatpush1.bf16.msra.mxu0 %v1192
        %1250 = vmatprep.subr.bf16.mxu0 %v1197
        %1251 = vmatpush1.bf16.msra.mxu0 %v1196
        %1252 = vmatprep.subr.bf16.mxu0 %v1201
        %1253 = vmatpush1.bf16.msra.mxu0 %v1200
        %1254 = vmatprep.subr.bf16.mxu0 %v1205
        %1255 = vmatpush1.bf16.msra.mxu0 %v1204
        %1256 = vmatprep.subr.bf16.mxu0 0
        %1257 = vmatpush1.bf16.msra.mxu0 0
        %1258 = vmatprep.subr.bf16.mxu0 0
        %1259 = vmatpush1.bf16.msra.mxu0 0
        %1260 = vmatprep.subr.bf16.mxu0 0
        %1261 = vmatpush1.bf16.msra.mxu0 0
        %1262 = vmatprep.subr.bf16.mxu0 0
        %1263 = vmatpush1.bf16.msra.mxu0 0
        %1264 = vmatprep.subr.bf16.mxu0 0
        %1265 = vmatpush1.bf16.msra.mxu0 0
        %1266 = vmatprep.subr.bf16.mxu0 0
        %1267 = vmatpush1.bf16.msra.mxu0 0
        %1268 = vmatprep.subr.bf16.mxu0 0
        %1269 = vmatpush1.bf16.msra.mxu0 0
        %1270 = vmatprep.subr.bf16.mxu0 0
        %1271 = vmatpush1.bf16.msra.mxu0 0
        %1272 = vmatprep.mubr.bf16.mxu0 0
        %1273 = vmatmul.mubr.bf16.gmra.mrb[0].mxu0 %v1047
        %v1274 = vpop.f32.mrb[0].mxu0
        %v1275 = vadd.f32 0.0, %v1274
        %v1276 = vpop.f32.mrb[0].mxu0
        %v1277 = vadd.f32 0.0, %v1276
        %v1278 = vpop.f32.mrb[0].mxu0
        %v1279 = vpop.f32.mrb[0].mxu0
        %1280 = vdwg.mxu0
        %1281 = vmatprep.subr.bf16.mxu0 %v1179
        %1282 = vmatpush1.bf16.msra.mxu0 %v1178
        %1283 = vmatprep.subr.bf16.mxu0 %v1183
        %1284 = vmatpush1.bf16.msra.mxu0 %v1182
        %1285 = vmatprep.subr.bf16.mxu0 %v1187
        %1286 = vmatpush1.bf16.msra.mxu0 %v1186
        %1287 = vmatprep.subr.bf16.mxu0 %v1191
        %1288 = vmatpush1.bf16.msra.mxu0 %v1190
        %1289 = vmatprep.subr.bf16.mxu0 %v1195
        %1290 = vmatpush1.bf16.msra.mxu0 %v1194
        %1291 = vmatprep.subr.bf16.mxu0 %v1199
        %1292 = vmatpush1.bf16.msra.mxu0 %v1198
        %1293 = vmatprep.subr.bf16.mxu0 %v1203
        %1294 = vmatpush1.bf16.msra.mxu0 %v1202
        %1295 = vmatprep.subr.bf16.mxu0 %v1207
        %1296 = vmatpush1.bf16.msra.mxu0 %v1206
        %1297 = vmatprep.subr.bf16.mxu0 0
        %1298 = vmatpush1.bf16.msra.mxu0 0
        %1299 = vmatprep.subr.bf16.mxu0 0
        %1300 = vmatpush1.bf16.msra.mxu0 0
        %1301 = vmatprep.subr.bf16.mxu0 0
        %1302 = vmatpush1.bf16.msra.mxu0 0
        %1303 = vmatprep.subr.bf16.mxu0 0
        %1304 = vmatpush1.bf16.msra.mxu0 0
        %1305 = vmatprep.subr.bf16.mxu0 0
        %1306 = vmatpush1.bf16.msra.mxu0 0
        %1307 = vmatprep.subr.bf16.mxu0 0
        %1308 = vmatpush1.bf16.msra.mxu0 0
        %1309 = vmatprep.subr.bf16.mxu0 0
        %1310 = vmatpush1.bf16.msra.mxu0 0
        %1311 = vmatprep.subr.bf16.mxu0 0
        %1312 = vmatpush1.bf16.msra.mxu0 0
        %1313 = vmatprep.mubr.bf16.mxu0 0
        %1314 = vmatmul.mubr.bf16.gmra.mrb[0].mxu0 %v1047
        %v1315 = vpop.f32.mrb[0].mxu0
        %v1316 = vadd.f32 0.0, %v1315
        %v1317 = vpop.f32.mrb[0].mxu0
        %v1318 = vadd.f32 0.0, %v1317
        %v1319 = vpop.f32.mrb[0].mxu0
        %v1320 = vpop.f32.mrb[0].mxu0
        %1321 = vdwg.mxu0
        %v1322 = vadd.f32 %v1043, %v1275
        %v1323 = vadd.f32 %v1044, %v1277
        %v1324 = vadd.f32 %v1045, %v1316
        %v1325 = vadd.f32 %v1046, %v1318
        %v1326 = vmul.f32 %v1322, 0.5
        %v1327 = vtanh.pop %v1326
        %v1328 = vadd.f32 %v1327, 1.0
        %v1329 = vmul.f32 %v1328, 0.5
        %v1330 = vmul.f32 %v1323, 0.5
        %v1331 = vtanh.pop %v1330
        %v1332 = vadd.f32 %v1331, 1.0
        %v1333 = vmul.f32 %v1332, 0.5
        %v1334 = vtanh.pop %v1324
        %v1335 = vmul.f32 %v1325, 0.5
        %v1336 = vtanh.pop %v1335
        %v1337 = vadd.f32 %v1336, 1.0
        %v1338 = vmul.f32 %v1337, 0.5
        %v1339 = vmul.f32 %v1333, %v1036
        %v1340 = vmul.f32 %v1329, %v1334
        %v1341 = vadd.f32 %v1339, %v1340
        %v1342 = vtanh.pop %v1341
        %v1343 = vmul.f32 %v1338, %v1342
        %s1344 = scalar_lea.vmem [#allocation5], 8
        %1345 = vst [vmem:[%s1344] sm:$0xff] %v1343
        %s1346 = smul.u32 2, 4
        %s1347 = smul.addr %s1346, 8
        %s1348 = scalar_lea.vmem [#allocation6], %s1347
        %v1349 = vld [vmem:[%s1348] sm:$0xff]
        %v1350 = vld [vmem:[%s1348 + $0x8] sm:$0xff]
        %v1351 = vld [vmem:[%s1348 + $0x10] sm:$0xff]
        %v1352 = vld [vmem:[%s1348 + $0x18] sm:$0xff]
        %v1353 = vpack.c.bf16 %v1343, %v1343
        %v1354 = vld [vmem:[#allocation13] sm:$0xff]
        %v1355 = vld [vmem:[#allocation13 + $0x8] sm:$0xff]
        %v1356 = vld [vmem:[#allocation13 + $0x10] sm:$0xff]
        %v1357 = vld [vmem:[#allocation13 + $0x18] sm:$0xff]
        %v1358 = vld [vmem:[#allocation13 + $0x20] sm:$0xff]
        %v1359 = vld [vmem:[#allocation13 + $0x28] sm:$0xff]
        %v1360 = vld [vmem:[#allocation13 + $0x30] sm:$0xff]
        %v1361 = vld [vmem:[#allocation13 + $0x38] sm:$0xff]
        %v1362 = vld [vmem:[#allocation13 + $0x40] sm:$0xff]
        %v1363 = vld [vmem:[#allocation13 + $0x48] sm:$0xff]
        %v1364 = vld [vmem:[#allocation13 + $0x50] sm:$0xff]
        %v1365 = vld [vmem:[#allocation13 + $0x58] sm:$0xff]
        %v1366 = vld [vmem:[#allocation13 + $0x60] sm:$0xff]
        %v1367 = vld [vmem:[#allocation13 + $0x68] sm:$0xff]
        %v1368 = vld [vmem:[#allocation13 + $0x70] sm:$0xff]
        %v1369 = vld [vmem:[#allocation13 + $0x78] sm:$0xff]
        %v1370 = vld [vmem:[#allocation13 + $0x80] sm:$0xff]
        %v1371 = vld [vmem:[#allocation13 + $0x88] sm:$0xff]
        %v1372 = vld [vmem:[#allocation13 + $0x90] sm:$0xff]
        %v1373 = vld [vmem:[#allocation13 + $0x98] sm:$0xff]
        %v1374 = vld [vmem:[#allocation13 + $0xa0] sm:$0xff]
        %v1375 = vld [vmem:[#allocation13 + $0xa8] sm:$0xff]
        %v1376 = vld [vmem:[#allocation13 + $0xb0] sm:$0xff]
        %v1377 = vld [vmem:[#allocation13 + $0xb8] sm:$0xff]
        %v1378 = vld [vmem:[#allocation13 + $0xc0] sm:$0xff]
        %v1379 = vld [vmem:[#allocation13 + $0xc8] sm:$0xff]
        %v1380 = vld [vmem:[#allocation13 + $0xd0] sm:$0xff]
        %v1381 = vld [vmem:[#allocation13 + $0xd8] sm:$0xff]
        %v1382 = vld [vmem:[#allocation13 + $0xe0] sm:$0xff]
        %v1383 = vld [vmem:[#allocation13 + $0xe8] sm:$0xff]
        %v1384 = vld [vmem:[#allocation13 + $0xf0] sm:$0xff]
        %v1385 = vld [vmem:[#allocation13 + $0xf8] sm:$0xff]
        %v1418 = vunpack.c.l.b16 %v1354
        %v1419 = vunpack.c.h.b16 %v1354
        %v1420 = vunpack.c.l.b16 %v1355
        %v1421 = vunpack.c.h.b16 %v1355
        %v1422 = vunpack.c.l.b16 %v1356
        %v1423 = vunpack.c.h.b16 %v1356
        %v1424 = vunpack.c.l.b16 %v1357
        %v1425 = vunpack.c.h.b16 %v1357
        %v1426 = vunpack.c.l.b16 %v1358
        %v1427 = vunpack.c.h.b16 %v1358
        %v1428 = vunpack.c.l.b16 %v1359
        %v1429 = vunpack.c.h.b16 %v1359
        %v1430 = vunpack.c.l.b16 %v1360
        %v1431 = vunpack.c.h.b16 %v1360
        %v1432 = vunpack.c.l.b16 %v1361
        %v1433 = vunpack.c.h.b16 %v1361
        %v1434 = vunpack.c.l.b16 %v1362
        %v1435 = vunpack.c.h.b16 %v1362
        %v1436 = vunpack.c.l.b16 %v1363
        %v1437 = vunpack.c.h.b16 %v1363
        %v1438 = vunpack.c.l.b16 %v1364
        %v1439 = vunpack.c.h.b16 %v1364
        %v1440 = vunpack.c.l.b16 %v1365
        %v1441 = vunpack.c.h.b16 %v1365
        %v1442 = vunpack.c.l.b16 %v1366
        %v1443 = vunpack.c.h.b16 %v1366
        %v1444 = vunpack.c.l.b16 %v1367
        %v1445 = vunpack.c.h.b16 %v1367
        %v1446 = vunpack.c.l.b16 %v1368
        %v1447 = vunpack.c.h.b16 %v1368
        %v1448 = vunpack.c.l.b16 %v1369
        %v1449 = vunpack.c.h.b16 %v1369
        %v1450 = vunpack.c.l.b16 %v1370
        %v1451 = vunpack.c.h.b16 %v1370
        %v1452 = vunpack.c.l.b16 %v1371
        %v1453 = vunpack.c.h.b16 %v1371
        %v1454 = vunpack.c.l.b16 %v1372
        %v1455 = vunpack.c.h.b16 %v1372
        %v1456 = vunpack.c.l.b16 %v1373
        %v1457 = vunpack.c.h.b16 %v1373
        %v1458 = vunpack.c.l.b16 %v1374
        %v1459 = vunpack.c.h.b16 %v1374
        %v1460 = vunpack.c.l.b16 %v1375
        %v1461 = vunpack.c.h.b16 %v1375
        %v1462 = vunpack.c.l.b16 %v1376
        %v1463 = vunpack.c.h.b16 %v1376
        %v1464 = vunpack.c.l.b16 %v1377
        %v1465 = vunpack.c.h.b16 %v1377
        %v1466 = vunpack.c.l.b16 %v1378
        %v1467 = vunpack.c.h.b16 %v1378
        %v1468 = vunpack.c.l.b16 %v1379
        %v1469 = vunpack.c.h.b16 %v1379
        %v1470 = vunpack.c.l.b16 %v1380
        %v1471 = vunpack.c.h.b16 %v1380
        %v1472 = vunpack.c.l.b16 %v1381
        %v1473 = vunpack.c.h.b16 %v1381
        %v1474 = vunpack.c.l.b16 %v1382
        %v1475 = vunpack.c.h.b16 %v1382
        %v1476 = vunpack.c.l.b16 %v1383
        %v1477 = vunpack.c.h.b16 %v1383
        %v1478 = vunpack.c.l.b16 %v1384
        %v1479 = vunpack.c.h.b16 %v1384
        %v1480 = vunpack.c.l.b16 %v1385
        %v1481 = vunpack.c.h.b16 %v1385
        %v1482 = vpack.c.b16 %v1422, %v1418
        %v1483 = vpack.c.b16 %v1423, %v1419
        %v1484 = vpack.c.b16 %v1424, %v1420
        %v1485 = vpack.c.b16 %v1425, %v1421
        %v1486 = vpack.c.b16 %v1430, %v1426
        %v1487 = vpack.c.b16 %v1431, %v1427
        %v1488 = vpack.c.b16 %v1432, %v1428
        %v1489 = vpack.c.b16 %v1433, %v1429
        %v1490 = vpack.c.b16 %v1438, %v1434
        %v1491 = vpack.c.b16 %v1439, %v1435
        %v1492 = vpack.c.b16 %v1440, %v1436
        %v1493 = vpack.c.b16 %v1441, %v1437
        %v1494 = vpack.c.b16 %v1446, %v1442
        %v1495 = vpack.c.b16 %v1447, %v1443
        %v1496 = vpack.c.b16 %v1448, %v1444
        %v1497 = vpack.c.b16 %v1449, %v1445
        %v1498 = vpack.c.b16 %v1454, %v1450
        %v1499 = vpack.c.b16 %v1455, %v1451
        %v1500 = vpack.c.b16 %v1456, %v1452
        %v1501 = vpack.c.b16 %v1457, %v1453
        %v1502 = vpack.c.b16 %v1462, %v1458
        %v1503 = vpack.c.b16 %v1463, %v1459
        %v1504 = vpack.c.b16 %v1464, %v1460
        %v1505 = vpack.c.b16 %v1465, %v1461
        %v1506 = vpack.c.b16 %v1470, %v1466
        %v1507 = vpack.c.b16 %v1471, %v1467
        %v1508 = vpack.c.b16 %v1472, %v1468
        %v1509 = vpack.c.b16 %v1473, %v1469
        %v1510 = vpack.c.b16 %v1478, %v1474
        %v1511 = vpack.c.b16 %v1479, %v1475
        %v1512 = vpack.c.b16 %v1480, %v1476
        %v1513 = vpack.c.b16 %v1481, %v1477
        %1546 = vmatprep.subr.bf16.mxu0 %v1483
        %1547 = vmatpush1.bf16.msra.mxu0 %v1482
        %1548 = vmatprep.subr.bf16.mxu0 %v1487
        %1549 = vmatpush1.bf16.msra.mxu0 %v1486
        %1550 = vmatprep.subr.bf16.mxu0 %v1491
        %1551 = vmatpush1.bf16.msra.mxu0 %v1490
        %1552 = vmatprep.subr.bf16.mxu0 %v1495
        %1553 = vmatpush1.bf16.msra.mxu0 %v1494
        %1554 = vmatprep.subr.bf16.mxu0 %v1499
        %1555 = vmatpush1.bf16.msra.mxu0 %v1498
        %1556 = vmatprep.subr.bf16.mxu0 %v1503
        %1557 = vmatpush1.bf16.msra.mxu0 %v1502
        %1558 = vmatprep.subr.bf16.mxu0 %v1507
        %1559 = vmatpush1.bf16.msra.mxu0 %v1506
        %1560 = vmatprep.subr.bf16.mxu0 %v1511
        %1561 = vmatpush1.bf16.msra.mxu0 %v1510
        %1562 = vmatprep.subr.bf16.mxu0 0
        %1563 = vmatpush1.bf16.msra.mxu0 0
        %1564 = vmatprep.subr.bf16.mxu0 0
        %1565 = vmatpush1.bf16.msra.mxu0 0
        %1566 = vmatprep.subr.bf16.mxu0 0
        %1567 = vmatpush1.bf16.msra.mxu0 0
        %1568 = vmatprep.subr.bf16.mxu0 0
        %1569 = vmatpush1.bf16.msra.mxu0 0
        %1570 = vmatprep.subr.bf16.mxu0 0
        %1571 = vmatpush1.bf16.msra.mxu0 0
        %1572 = vmatprep.subr.bf16.mxu0 0
        %1573 = vmatpush1.bf16.msra.mxu0 0
        %1574 = vmatprep.subr.bf16.mxu0 0
        %1575 = vmatpush1.bf16.msra.mxu0 0
        %1576 = vmatprep.subr.bf16.mxu0 0
        %1577 = vmatpush1.bf16.msra.mxu0 0
        %1578 = vmatprep.mubr.bf16.mxu0 0
        %1579 = vmatmul.mubr.bf16.gmra.mrb[0].mxu0 %v1353
        %v1580 = vpop.f32.mrb[0].mxu0
        %v1581 = vadd.f32 0.0, %v1580
        %v1582 = vpop.f32.mrb[0].mxu0
        %v1583 = vadd.f32 0.0, %v1582
        %v1584 = vpop.f32.mrb[0].mxu0
        %v1585 = vpop.f32.mrb[0].mxu0
        %1586 = vdwg.mxu0
        %1587 = vmatprep.subr.bf16.mxu0 %v1485
        %1588 = vmatpush1.bf16.msra.mxu0 %v1484
        %1589 = vmatprep.subr.bf16.mxu0 %v1489
        %1590 = vmatpush1.bf16.msra.mxu0 %v1488
        %1591 = vmatprep.subr.bf16.mxu0 %v1493
        %1592 = vmatpush1.bf16.msra.mxu0 %v1492
        %1593 = vmatprep.subr.bf16.mxu0 %v1497
        %1594 = vmatpush1.bf16.msra.mxu0 %v1496
        %1595 = vmatprep.subr.bf16.mxu0 %v1501
        %1596 = vmatpush1.bf16.msra.mxu0 %v1500
        %1597 = vmatprep.subr.bf16.mxu0 %v1505
        %1598 = vmatpush1.bf16.msra.mxu0 %v1504
        %1599 = vmatprep.subr.bf16.mxu0 %v1509
        %1600 = vmatpush1.bf16.msra.mxu0 %v1508
        %1601 = vmatprep.subr.bf16.mxu0 %v1513
        %1602 = vmatpush1.bf16.msra.mxu0 %v1512
        %1603 = vmatprep.subr.bf16.mxu0 0
        %1604 = vmatpush1.bf16.msra.mxu0 0
        %1605 = vmatprep.subr.bf16.mxu0 0
        %1606 = vmatpush1.bf16.msra.mxu0 0
        %1607 = vmatprep.subr.bf16.mxu0 0
        %1608 = vmatpush1.bf16.msra.mxu0 0
        %1609 = vmatprep.subr.bf16.mxu0 0
        %1610 = vmatpush1.bf16.msra.mxu0 0
        %1611 = vmatprep.subr.bf16.mxu0 0
        %1612 = vmatpush1.bf16.msra.mxu0 0
        %1613 = vmatprep.subr.bf16.mxu0 0
        %1614 = vmatpush1.bf16.msra.mxu0 0
        %1615 = vmatprep.subr.bf16.mxu0 0
        %1616 = vmatpush1.bf16.msra.mxu0 0
        %1617 = vmatprep.subr.bf16.mxu0 0
        %1618 = vmatpush1.bf16.msra.mxu0 0
        %1619 = vmatprep.mubr.bf16.mxu0 0
        %1620 = vmatmul.mubr.bf16.gmra.mrb[0].mxu0 %v1353
        %v1621 = vpop.f32.mrb[0].mxu0
        %v1622 = vadd.f32 0.0, %v1621
        %v1623 = vpop.f32.mrb[0].mxu0
        %v1624 = vadd.f32 0.0, %v1623
        %v1625 = vpop.f32.mrb[0].mxu0
        %v1626 = vpop.f32.mrb[0].mxu0
        %1627 = vdwg.mxu0
        %v1628 = vadd.f32 %v1349, %v1581
        %v1629 = vadd.f32 %v1350, %v1583
        %v1630 = vadd.f32 %v1351, %v1622
        %v1631 = vadd.f32 %v1352, %v1624
        %v1632 = vmul.f32 %v1628, 0.5
        %v1633 = vtanh.pop %v1632
        %v1634 = vadd.f32 %v1633, 1.0
        %v1635 = vmul.f32 %v1634, 0.5
        %v1636 = vmul.f32 %v1629, 0.5
        %v1637 = vtanh.pop %v1636
        %v1638 = vadd.f32 %v1637, 1.0
        %v1639 = vmul.f32 %v1638, 0.5
        %v1640 = vtanh.pop %v1630
        %v1641 = vmul.f32 %v1631, 0.5
        %v1642 = vtanh.pop %v1641
        %v1643 = vadd.f32 %v1642, 1.0
        %v1644 = vmul.f32 %v1643, 0.5
        %v1645 = vmul.f32 %v1639, %v1341
        %v1646 = vmul.f32 %v1635, %v1640
        %v1647 = vadd.f32 %v1645, %v1646
        %v1648 = vtanh.pop %v1647
        %v1649 = vmul.f32 %v1644, %v1648
        %s1650 = scalar_lea.vmem [#allocation5], 16
        %1651 = vst [vmem:[%s1650] sm:$0xff] %v1649
        %s1652 = smul.u32 3, 4
        %s1653 = smul.addr %s1652, 8
        %s1654 = scalar_lea.vmem [#allocation6], %s1653
        %v1655 = vld [vmem:[%s1654] sm:$0xff]
        %v1656 = vld [vmem:[%s1654 + $0x8] sm:$0xff]
        %v1657 = vld [vmem:[%s1654 + $0x10] sm:$0xff]
        %v1658 = vld [vmem:[%s1654 + $0x18] sm:$0xff]
        %v1659 = vpack.c.bf16 %v1649, %v1649
        %v1660 = vld [vmem:[#allocation13] sm:$0xff]
        %v1661 = vld [vmem:[#allocation13 + $0x8] sm:$0xff]
        %v1662 = vld [vmem:[#allocation13 + $0x10] sm:$0xff]
        %v1663 = vld [vmem:[#allocation13 + $0x18] sm:$0xff]
        %v1664 = vld [vmem:[#allocation13 + $0x20] sm:$0xff]
        %v1665 = vld [vmem:[#allocation13 + $0x28] sm:$0xff]
        %v1666 = vld [vmem:[#allocation13 + $0x30] sm:$0xff]
        %v1667 = vld [vmem:[#allocation13 + $0x38] sm:$0xff]
        %v1668 = vld [vmem:[#allocation13 + $0x40] sm:$0xff]
        %v1669 = vld [vmem:[#allocation13 + $0x48] sm:$0xff]
        %v1670 = vld [vmem:[#allocation13 + $0x50] sm:$0xff]
        %v1671 = vld [vmem:[#allocation13 + $0x58] sm:$0xff]
        %v1672 = vld [vmem:[#allocation13 + $0x60] sm:$0xff]
        %v1673 = vld [vmem:[#allocation13 + $0x68] sm:$0xff]
        %v1674 = vld [vmem:[#allocation13 + $0x70] sm:$0xff]
        %v1675 = vld [vmem:[#allocation13 + $0x78] sm:$0xff]
        %v1676 = vld [vmem:[#allocation13 + $0x80] sm:$0xff]
        %v1677 = vld [vmem:[#allocation13 + $0x88] sm:$0xff]
        %v1678 = vld [vmem:[#allocation13 + $0x90] sm:$0xff]
        %v1679 = vld [vmem:[#allocation13 + $0x98] sm:$0xff]
        %v1680 = vld [vmem:[#allocation13 + $0xa0] sm:$0xff]
        %v1681 = vld [vmem:[#allocation13 + $0xa8] sm:$0xff]
        %v1682 = vld [vmem:[#allocation13 + $0xb0] sm:$0xff]
        %v1683 = vld [vmem:[#allocation13 + $0xb8] sm:$0xff]
        %v1684 = vld [vmem:[#allocation13 + $0xc0] sm:$0xff]
        %v1685 = vld [vmem:[#allocation13 + $0xc8] sm:$0xff]
        %v1686 = vld [vmem:[#allocation13 + $0xd0] sm:$0xff]
        %v1687 = vld [vmem:[#allocation13 + $0xd8] sm:$0xff]
        %v1688 = vld [vmem:[#allocation13 + $0xe0] sm:$0xff]
        %v1689 = vld [vmem:[#allocation13 + $0xe8] sm:$0xff]
        %v1690 = vld [vmem:[#allocation13 + $0xf0] sm:$0xff]
        %v1691 = vld [vmem:[#allocation13 + $0xf8] sm:$0xff]
        %v1724 = vunpack.c.l.b16 %v1660
        %v1725 = vunpack.c.h.b16 %v1660
        %v1726 = vunpack.c.l.b16 %v1661
        %v1727 = vunpack.c.h.b16 %v1661
        %v1728 = vunpack.c.l.b16 %v1662
        %v1729 = vunpack.c.h.b16 %v1662
        %v1730 = vunpack.c.l.b16 %v1663
        %v1731 = vunpack.c.h.b16 %v1663
        %v1732 = vunpack.c.l.b16 %v1664
        %v1733 = vunpack.c.h.b16 %v1664
        %v1734 = vunpack.c.l.b16 %v1665
        %v1735 = vunpack.c.h.b16 %v1665
        %v1736 = vunpack.c.l.b16 %v1666
        %v1737 = vunpack.c.h.b16 %v1666
        %v1738 = vunpack.c.l.b16 %v1667
        %v1739 = vunpack.c.h.b16 %v1667
        %v1740 = vunpack.c.l.b16 %v1668
        %v1741 = vunpack.c.h.b16 %v1668
        %v1742 = vunpack.c.l.b16 %v1669
        %v1743 = vunpack.c.h.b16 %v1669
        %v1744 = vunpack.c.l.b16 %v1670
        %v1745 = vunpack.c.h.b16 %v1670
        %v1746 = vunpack.c.l.b16 %v1671
        %v1747 = vunpack.c.h.b16 %v1671
        %v1748 = vunpack.c.l.b16 %v1672
        %v1749 = vunpack.c.h.b16 %v1672
        %v1750 = vunpack.c.l.b16 %v1673
        %v1751 = vunpack.c.h.b16 %v1673
        %v1752 = vunpack.c.l.b16 %v1674
        %v1753 = vunpack.c.h.b16 %v1674
        %v1754 = vunpack.c.l.b16 %v1675
        %v1755 = vunpack.c.h.b16 %v1675
        %v1756 = vunpack.c.l.b16 %v1676
        %v1757 = vunpack.c.h.b16 %v1676
        %v1758 = vunpack.c.l.b16 %v1677
        %v1759 = vunpack.c.h.b16 %v1677
        %v1760 = vunpack.c.l.b16 %v1678
        %v1761 = vunpack.c.h.b16 %v1678
        %v1762 = vunpack.c.l.b16 %v1679
        %v1763 = vunpack.c.h.b16 %v1679
        %v1764 = vunpack.c.l.b16 %v1680
        %v1765 = vunpack.c.h.b16 %v1680
        %v1766 = vunpack.c.l.b16 %v1681
        %v1767 = vunpack.c.h.b16 %v1681
        %v1768 = vunpack.c.l.b16 %v1682
        %v1769 = vunpack.c.h.b16 %v1682
        %v1770 = vunpack.c.l.b16 %v1683
        %v1771 = vunpack.c.h.b16 %v1683
        %v1772 = vunpack.c.l.b16 %v1684
        %v1773 = vunpack.c.h.b16 %v1684
        %v1774 = vunpack.c.l.b16 %v1685
        %v1775 = vunpack.c.h.b16 %v1685
        %v1776 = vunpack.c.l.b16 %v1686
        %v1777 = vunpack.c.h.b16 %v1686
        %v1778 = vunpack.c.l.b16 %v1687
        %v1779 = vunpack.c.h.b16 %v1687
        %v1780 = vunpack.c.l.b16 %v1688
        %v1781 = vunpack.c.h.b16 %v1688
        %v1782 = vunpack.c.l.b16 %v1689
        %v1783 = vunpack.c.h.b16 %v1689
        %v1784 = vunpack.c.l.b16 %v1690
        %v1785 = vunpack.c.h.b16 %v1690
        %v1786 = vunpack.c.l.b16 %v1691
        %v1787 = vunpack.c.h.b16 %v1691
        %v1788 = vpack.c.b16 %v1728, %v1724
        %v1789 = vpack.c.b16 %v1729, %v1725
        %v1790 = vpack.c.b16 %v1730, %v1726
        %v1791 = vpack.c.b16 %v1731, %v1727
        %v1792 = vpack.c.b16 %v1736, %v1732
        %v1793 = vpack.c.b16 %v1737, %v1733
        %v1794 = vpack.c.b16 %v1738, %v1734
        %v1795 = vpack.c.b16 %v1739, %v1735
        %v1796 = vpack.c.b16 %v1744, %v1740
        %v1797 = vpack.c.b16 %v1745, %v1741
        %v1798 = vpack.c.b16 %v1746, %v1742
        %v1799 = vpack.c.b16 %v1747, %v1743
        %v1800 = vpack.c.b16 %v1752, %v1748
        %v1801 = vpack.c.b16 %v1753, %v1749
        %v1802 = vpack.c.b16 %v1754, %v1750
        %v1803 = vpack.c.b16 %v1755, %v1751
        %v1804 = vpack.c.b16 %v1760, %v1756
        %v1805 = vpack.c.b16 %v1761, %v1757
        %v1806 = vpack.c.b16 %v1762, %v1758
        %v1807 = vpack.c.b16 %v1763, %v1759
        %v1808 = vpack.c.b16 %v1768, %v1764
        %v1809 = vpack.c.b16 %v1769, %v1765
        %v1810 = vpack.c.b16 %v1770, %v1766
        %v1811 = vpack.c.b16 %v1771, %v1767
        %v1812 = vpack.c.b16 %v1776, %v1772
        %v1813 = vpack.c.b16 %v1777, %v1773
        %v1814 = vpack.c.b16 %v1778, %v1774
        %v1815 = vpack.c.b16 %v1779, %v1775
        %v1816 = vpack.c.b16 %v1784, %v1780
        %v1817 = vpack.c.b16 %v1785, %v1781
        %v1818 = vpack.c.b16 %v1786, %v1782
        %v1819 = vpack.c.b16 %v1787, %v1783
        %1852 = vmatprep.subr.bf16.mxu0 %v1789
        %1853 = vmatpush1.bf16.msra.mxu0 %v1788
        %1854 = vmatprep.subr.bf16.mxu0 %v1793
        %1855 = vmatpush1.bf16.msra.mxu0 %v1792
        %1856 = vmatprep.subr.bf16.mxu0 %v1797
        %1857 = vmatpush1.bf16.msra.mxu0 %v1796
        %1858 = vmatprep.subr.bf16.mxu0 %v1801
        %1859 = vmatpush1.bf16.msra.mxu0 %v1800
        %1860 = vmatprep.subr.bf16.mxu0 %v1805
        %1861 = vmatpush1.bf16.msra.mxu0 %v1804
        %1862 = vmatprep.subr.bf16.mxu0 %v1809
        %1863 = vmatpush1.bf16.msra.mxu0 %v1808
        %1864 = vmatprep.subr.bf16.mxu0 %v1813
        %1865 = vmatpush1.bf16.msra.mxu0 %v1812
        %1866 = vmatprep.subr.bf16.mxu0 %v1817
        %1867 = vmatpush1.bf16.msra.mxu0 %v1816
        %1868 = vmatprep.subr.bf16.mxu0 0
        %1869 = vmatpush1.bf16.msra.mxu0 0
        %1870 = vmatprep.subr.bf16.mxu0 0
        %1871 = vmatpush1.bf16.msra.mxu0 0
        %1872 = vmatprep.subr.bf16.mxu0 0
        %1873 = vmatpush1.bf16.msra.mxu0 0
        %1874 = vmatprep.subr.bf16.mxu0 0
        %1875 = vmatpush1.bf16.msra.mxu0 0
        %1876 = vmatprep.subr.bf16.mxu0 0
        %1877 = vmatpush1.bf16.msra.mxu0 0
        %1878 = vmatprep.subr.bf16.mxu0 0
        %1879 = vmatpush1.bf16.msra.mxu0 0
        %1880 = vmatprep.subr.bf16.mxu0 0
        %1881 = vmatpush1.bf16.msra.mxu0 0
        %1882 = vmatprep.subr.bf16.mxu0 0
        %1883 = vmatpush1.bf16.msra.mxu0 0
        %1884 = vmatprep.mubr.bf16.mxu0 0
        %1885 = vmatmul.mubr.bf16.gmra.mrb[0].mxu0 %v1659
        %v1886 = vpop.f32.mrb[0].mxu0
        %v1887 = vadd.f32 0.0, %v1886
        %v1888 = vpop.f32.mrb[0].mxu0
        %v1889 = vadd.f32 0.0, %v1888
        %v1890 = vpop.f32.mrb[0].mxu0
        %v1891 = vpop.f32.mrb[0].mxu0
        %1892 = vdwg.mxu0
        %1893 = vmatprep.subr.bf16.mxu0 %v1791
        %1894 = vmatpush1.bf16.msra.mxu0 %v1790
        %1895 = vmatprep.subr.bf16.mxu0 %v1795
        %1896 = vmatpush1.bf16.msra.mxu0 %v1794
        %1897 = vmatprep.subr.bf16.mxu0 %v1799
        %1898 = vmatpush1.bf16.msra.mxu0 %v1798
        %1899 = vmatprep.subr.bf16.mxu0 %v1803
        %1900 = vmatpush1.bf16.msra.mxu0 %v1802
        %1901 = vmatprep.subr.bf16.mxu0 %v1807
        %1902 = vmatpush1.bf16.msra.mxu0 %v1806
        %1903 = vmatprep.subr.bf16.mxu0 %v1811
        %1904 = vmatpush1.bf16.msra.mxu0 %v1810
        %1905 = vmatprep.subr.bf16.mxu0 %v1815
        %1906 = vmatpush1.bf16.msra.mxu0 %v1814
        %1907 = vmatprep.subr.bf16.mxu0 %v1819
        %1908 = vmatpush1.bf16.msra.mxu0 %v1818
        %1909 = vmatprep.subr.bf16.mxu0 0
        %1910 = vmatpush1.bf16.msra.mxu0 0
        %1911 = vmatprep.subr.bf16.mxu0 0
        %1912 = vmatpush1.bf16.msra.mxu0 0
        %1913 = vmatprep.subr.bf16.mxu0 0
        %1914 = vmatpush1.bf16.msra.mxu0 0
        %1915 = vmatprep.subr.bf16.mxu0 0
        %1916 = vmatpush1.bf16.msra.mxu0 0
        %1917 = vmatprep.subr.bf16.mxu0 0
        %1918 = vmatpush1.bf16.msra.mxu0 0
        %1919 = vmatprep.subr.bf16.mxu0 0
        %1920 = vmatpush1.bf16.msra.mxu0 0
        %1921 = vmatprep.subr.bf16.mxu0 0
        %1922 = vmatpush1.bf16.msra.mxu0 0
        %1923 = vmatprep.subr.bf16.mxu0 0
        %1924 = vmatpush1.bf16.msra.mxu0 0
        %1925 = vmatprep.mubr.bf16.mxu0 0
        %1926 = vmatmul.mubr.bf16.gmra.mrb[0].mxu0 %v1659
        %v1927 = vpop.f32.mrb[0].mxu0
        %v1928 = vadd.f32 0.0, %v1927
        %v1929 = vpop.f32.mrb[0].mxu0
        %v1930 = vadd.f32 0.0, %v1929
        %v1931 = vpop.f32.mrb[0].mxu0
        %v1932 = vpop.f32.mrb[0].mxu0
        %1933 = vdwg.mxu0
        %v1934 = vadd.f32 %v1655, %v1887
        %v1935 = vadd.f32 %v1656, %v1889
        %v1936 = vadd.f32 %v1657, %v1928
        %v1937 = vadd.f32 %v1658, %v1930
        %v1938 = vmul.f32 %v1934, 0.5
        %v1939 = vtanh.pop %v1938
        %v1940 = vadd.f32 %v1939, 1.0
        %v1941 = vmul.f32 %v1940, 0.5
        %v1942 = vmul.f32 %v1935, 0.5
        %v1943 = vtanh.pop %v1942
        %v1944 = vadd.f32 %v1943, 1.0
        %v1945 = vmul.f32 %v1944, 0.5
        %v1946 = vtanh.pop %v1936
        %v1947 = vmul.f32 %v1937, 0.5
        %v1948 = vtanh.pop %v1947
        %v1949 = vadd.f32 %v1948, 1.0
        %v1950 = vmul.f32 %v1949, 0.5
        %v1951 = vmul.f32 %v1945, %v1647
        %v1952 = vmul.f32 %v1941, %v1946
        %v1953 = vadd.f32 %v1951, %v1952
        %v1954 = vtanh.pop %v1953
        %v1955 = vmul.f32 %v1950, %v1954
        %s1956 = scalar_lea.vmem [#allocation5], 24
        %1957 = vst [vmem:[%s1956] sm:$0xff] %v1955
        %1958 = vst [vmem:[#allocation2] sm:$0xff] %v1955
        %1959 = vst [vmem:[#allocation3] sm:$0xff] %v1953
        %v1960 = vld [vmem:[#allocation5] sm:$0xff]
        %v1961 = vld [vmem:[#allocation5 + $0x8] sm:$0xff]
        %v1962 = vld [vmem:[#allocation5 + $0x10] sm:$0xff]
        %v1963 = vld [vmem:[#allocation5 + $0x18] sm:$0xff]
        %v1964 = vpack.c.bf16 %v1961, %v1960
        %v1965 = vpack.c.bf16 %v1963, %v1962
        %v1966 = vld [vmem:[#allocation12] sm:$0xff]
        %v1967 = vld [vmem:[#allocation12 + $0x8] sm:$0xff]
        %v1968 = vld [vmem:[#allocation12 + $0x10] sm:$0xff]
        %v1969 = vld [vmem:[#allocation12 + $0x18] sm:$0xff]
        %v1970 = vld [vmem:[#allocation12 + $0x20] sm:$0xff]
        %v1971 = vld [vmem:[#allocation12 + $0x28] sm:$0xff]
        %v1972 = vld [vmem:[#allocation12 + $0x30] sm:$0xff]
        %v1973 = vld [vmem:[#allocation12 + $0x38] sm:$0xff]
        %v1974 = vld [vmem:[#allocation12 + $0x40] sm:$0xff]
        %v1975 = vld [vmem:[#allocation12 + $0x48] sm:$0xff]
        %v1976 = vld [vmem:[#allocation12 + $0x50] sm:$0xff]
        %v1977 = vld [vmem:[#allocation12 + $0x58] sm:$0xff]
        %v1978 = vld [vmem:[#allocation12 + $0x60] sm:$0xff]
        %v1979 = vld [vmem:[#allocation12 + $0x68] sm:$0xff]
        %v1980 = vld [vmem:[#allocation12 + $0x70] sm:$0xff]
        %v1981 = vld [vmem:[#allocation12 + $0x78] sm:$0xff]
        %v1982 = vld [vmem:[#allocation12 + $0x80] sm:$0xff]
        %v1983 = vld [vmem:[#allocation12 + $0x88] sm:$0xff]
        %v1984 = vld [vmem:[#allocation12 + $0x90] sm:$0xff]
        %v1985 = vld [vmem:[#allocation12 + $0x98] sm:$0xff]
        %v1986 = vld [vmem:[#allocation12 + $0xa0] sm:$0xff]
        %v1987 = vld [vmem:[#allocation12 + $0xa8] sm:$0xff]
        %v1988 = vld [vmem:[#allocation12 + $0xb0] sm:$0xff]
        %v1989 = vld [vmem:[#allocation12 + $0xb8] sm:$0xff]
        %v1990 = vld [vmem:[#allocation12 + $0xc0] sm:$0xff]
        %v1991 = vld [vmem:[#allocation12 + $0xc8] sm:$0xff]
        %v1992 = vld [vmem:[#allocation12 + $0xd0] sm:$0xff]
        %v1993 = vld [vmem:[#allocation12 + $0xd8] sm:$0xff]
        %v1994 = vld [vmem:[#allocation12 + $0xe0] sm:$0xff]
        %v1995 = vld [vmem:[#allocation12 + $0xe8] sm:$0xff]
        %v1996 = vld [vmem:[#allocation12 + $0xf0] sm:$0xff]
        %v1997 = vld [vmem:[#allocation12 + $0xf8] sm:$0xff]
        %s1998 = scalar_lea.vmem [#allocation15], 4
        %v1999 = vld [vmem:[%s1998] sm:$0xf]
        %v2001 = vlaneseq
        %v2002 = vshrl.u32 %v2001, 7
        %v2003 = vsub.s32 0, %v2002
        %v2004 = vrot.slane %v1999, %v2003
        %v2005 = vlaneseq
        %v2006 = vshrl.u32 %v2005, 7
        %v2007 = vsub.s32 1, %v2006
        %v2008 = vrot.slane %v1999, %v2007
        %v2009 = vlaneseq
        %v2010 = vshrl.u32 %v2009, 7
        %v2011 = vsub.s32 2, %v2010
        %v2012 = vrot.slane %v1999, %v2011
        %v2013 = vlaneseq
        %v2014 = vshrl.u32 %v2013, 7
        %v2015 = vsub.s32 3, %v2014
        %v2016 = vrot.slane %v1999, %v2015
        %v2053 = vunpack.c.l.b16 %v1966
        %v2054 = vunpack.c.h.b16 %v1966
        %v2055 = vunpack.c.l.b16 %v1967
        %v2056 = vunpack.c.h.b16 %v1967
        %v2057 = vunpack.c.l.b16 %v1968
        %v2058 = vunpack.c.h.b16 %v1968
        %v2059 = vunpack.c.l.b16 %v1969
        %v2060 = vunpack.c.h.b16 %v1969
        %v2061 = vunpack.c.l.b16 %v1970
        %v2062 = vunpack.c.h.b16 %v1970
        %v2063 = vunpack.c.l.b16 %v1971
        %v2064 = vunpack.c.h.b16 %v1971
        %v2065 = vunpack.c.l.b16 %v1972
        %v2066 = vunpack.c.h.b16 %v1972
        %v2067 = vunpack.c.l.b16 %v1973
        %v2068 = vunpack.c.h.b16 %v1973
        %v2069 = vunpack.c.l.b16 %v1974
        %v2070 = vunpack.c.h.b16 %v1974
        %v2071 = vunpack.c.l.b16 %v1975
        %v2072 = vunpack.c.h.b16 %v1975
        %v2073 = vunpack.c.l.b16 %v1976
        %v2074 = vunpack.c.h.b16 %v1976
        %v2075 = vunpack.c.l.b16 %v1977
        %v2076 = vunpack.c.h.b16 %v1977
        %v2077 = vunpack.c.l.b16 %v1978
        %v2078 = vunpack.c.h.b16 %v1978
        %v2079 = vunpack.c.l.b16 %v1979
        %v2080 = vunpack.c.h.b16 %v1979
        %v2081 = vunpack.c.l.b16 %v1980
        %v2082 = vunpack.c.h.b16 %v1980
        %v2083 = vunpack.c.l.b16 %v1981
        %v2084 = vunpack.c.h.b16 %v1981
        %v2085 = vunpack.c.l.b16 %v1982
        %v2086 = vunpack.c.h.b16 %v1982
        %v2087 = vunpack.c.l.b16 %v1983
        %v2088 = vunpack.c.h.b16 %v1983
        %v2089 = vunpack.c.l.b16 %v1984
        %v2090 = vunpack.c.h.b16 %v1984
        %v2091 = vunpack.c.l.b16 %v1985
        %v2092 = vunpack.c.h.b16 %v1985
        %v2093 = vunpack.c.l.b16 %v1986
        %v2094 = vunpack.c.h.b16 %v1986
        %v2095 = vunpack.c.l.b16 %v1987
        %v2096 = vunpack.c.h.b16 %v1987
        %v2097 = vunpack.c.l.b16 %v1988
        %v2098 = vunpack.c.h.b16 %v1988
        %v2099 = vunpack.c.l.b16 %v1989
        %v2100 = vunpack.c.h.b16 %v1989
        %v2101 = vunpack.c.l.b16 %v1990
        %v2102 = vunpack.c.h.b16 %v1990
        %v2103 = vunpack.c.l.b16 %v1991
        %v2104 = vunpack.c.h.b16 %v1991
        %v2105 = vunpack.c.l.b16 %v1992
        %v2106 = vunpack.c.h.b16 %v1992
        %v2107 = vunpack.c.l.b16 %v1993
        %v2108 = vunpack.c.h.b16 %v1993
        %v2109 = vunpack.c.l.b16 %v1994
        %v2110 = vunpack.c.h.b16 %v1994
        %v2111 = vunpack.c.l.b16 %v1995
        %v2112 = vunpack.c.h.b16 %v1995
        %v2113 = vunpack.c.l.b16 %v1996
        %v2114 = vunpack.c.h.b16 %v1996
        %v2115 = vunpack.c.l.b16 %v1997
        %v2116 = vunpack.c.h.b16 %v1997
        %v2117 = vpack.c.b16 %v2057, %v2053
        %v2118 = vpack.c.b16 %v2058, %v2054
        %v2119 = vpack.c.b16 %v2059, %v2055
        %v2120 = vpack.c.b16 %v2060, %v2056
        %v2121 = vpack.c.b16 %v2065, %v2061
        %v2122 = vpack.c.b16 %v2066, %v2062
        %v2123 = vpack.c.b16 %v2067, %v2063
        %v2124 = vpack.c.b16 %v2068, %v2064
        %v2125 = vpack.c.b16 %v2073, %v2069
        %v2126 = vpack.c.b16 %v2074, %v2070
        %v2127 = vpack.c.b16 %v2075, %v2071
        %v2128 = vpack.c.b16 %v2076, %v2072
        %v2129 = vpack.c.b16 %v2081, %v2077
        %v2130 = vpack.c.b16 %v2082, %v2078
        %v2131 = vpack.c.b16 %v2083, %v2079
        %v2132 = vpack.c.b16 %v2084, %v2080
        %v2133 = vpack.c.b16 %v2089, %v2085
        %v2134 = vpack.c.b16 %v2090, %v2086
        %v2135 = vpack.c.b16 %v2091, %v2087
        %v2136 = vpack.c.b16 %v2092, %v2088
        %v2137 = vpack.c.b16 %v2097, %v2093
        %v2138 = vpack.c.b16 %v2098, %v2094
        %v2139 = vpack.c.b16 %v2099, %v2095
        %v2140 = vpack.c.b16 %v2100, %v2096
        %v2141 = vpack.c.b16 %v2105, %v2101
        %v2142 = vpack.c.b16 %v2106, %v2102
        %v2143 = vpack.c.b16 %v2107, %v2103
        %v2144 = vpack.c.b16 %v2108, %v2104
        %v2145 = vpack.c.b16 %v2113, %v2109
        %v2146 = vpack.c.b16 %v2114, %v2110
        %v2147 = vpack.c.b16 %v2115, %v2111
        %v2148 = vpack.c.b16 %v2116, %v2112
        %2181 = vmatprep.subr.bf16.mxu0 %v2118
        %2182 = vmatpush1.bf16.msra.mxu0 %v2117
        %2183 = vmatprep.subr.bf16.mxu0 %v2122
        %2184 = vmatpush1.bf16.msra.mxu0 %v2121
        %2185 = vmatprep.subr.bf16.mxu0 %v2126
        %2186 = vmatpush1.bf16.msra.mxu0 %v2125
        %2187 = vmatprep.subr.bf16.mxu0 %v2130
        %2188 = vmatpush1.bf16.msra.mxu0 %v2129
        %2189 = vmatprep.subr.bf16.mxu0 %v2134
        %2190 = vmatpush1.bf16.msra.mxu0 %v2133
        %2191 = vmatprep.subr.bf16.mxu0 %v2138
        %2192 = vmatpush1.bf16.msra.mxu0 %v2137
        %2193 = vmatprep.subr.bf16.mxu0 %v2142
        %2194 = vmatpush1.bf16.msra.mxu0 %v2141
        %2195 = vmatprep.subr.bf16.mxu0 %v2146
        %2196 = vmatpush1.bf16.msra.mxu0 %v2145
        %2197 = vmatprep.subr.bf16.mxu0 0
        %2198 = vmatpush1.bf16.msra.mxu0 0
        %2199 = vmatprep.subr.bf16.mxu0 0
        %2200 = vmatpush1.bf16.msra.mxu0 0
        %2201 = vmatprep.subr.bf16.mxu0 0
        %2202 = vmatpush1.bf16.msra.mxu0 0
        %2203 = vmatprep.subr.bf16.mxu0 0
        %2204 = vmatpush1.bf16.msra.mxu0 0
        %2205 = vmatprep.subr.bf16.mxu0 0
        %2206 = vmatpush1.bf16.msra.mxu0 0
        %2207 = vmatprep.subr.bf16.mxu0 0
        %2208 = vmatpush1.bf16.msra.mxu0 0
        %2209 = vmatprep.subr.bf16.mxu0 0
        %2210 = vmatpush1.bf16.msra.mxu0 0
        %2211 = vmatprep.subr.bf16.mxu0 0
        %2212 = vmatpush1.bf16.msra.mxu0 0
        %2213 = vmatprep.mubr.bf16.mxu0 0
        %2214 = vmatmul.mubr.bf16.gmra.mrb[0].mxu0 %v1964
        %v2215 = vpop.f32.mrb[0].mxu0
        %v2216 = vadd.f32 %v2004, %v2215
        %v2217 = vpop.f32.mrb[0].mxu0
        %v2218 = vadd.f32 %v2008, %v2217
        %v2219 = vpop.f32.mrb[0].mxu0
        %v2220 = vadd.f32 %v2004, %v2219
        %v2221 = vpop.f32.mrb[0].mxu0
        %v2222 = vadd.f32 %v2008, %v2221
        %2223 = vmatprep.mubr.bf16.mxu0 0
        %2224 = vmatmul.mubr.bf16.gmra.mrb[0].mxu0 %v1965
        %v2225 = vpop.f32.mrb[0].mxu0
        %v2226 = vadd.f32 %v2004, %v2225
        %v2227 = vpop.f32.mrb[0].mxu0
        %v2228 = vadd.f32 %v2008, %v2227
        %v2229 = vpop.f32.mrb[0].mxu0
        %v2230 = vadd.f32 %v2004, %v2229
        %v2231 = vpop.f32.mrb[0].mxu0
        %v2232 = vadd.f32 %v2008, %v2231
        %2233 = vdwg.mxu0
        %2234 = vmatprep.subr.bf16.mxu0 %v2120
        %2235 = vmatpush1.bf16.msra.mxu0 %v2119
        %2236 = vmatprep.subr.bf16.mxu0 %v2124
        %2237 = vmatpush1.bf16.msra.mxu0 %v2123
        %2238 = vmatprep.subr.bf16.mxu0 %v2128
        %2239 = vmatpush1.bf16.msra.mxu0 %v2127
        %2240 = vmatprep.subr.bf16.mxu0 %v2132
        %2241 = vmatpush1.bf16.msra.mxu0 %v2131
        %2242 = vmatprep.subr.bf16.mxu0 %v2136
        %2243 = vmatpush1.bf16.msra.mxu0 %v2135
        %2244 = vmatprep.subr.bf16.mxu0 %v2140
        %2245 = vmatpush1.bf16.msra.mxu0 %v2139
        %2246 = vmatprep.subr.bf16.mxu0 %v2144
        %2247 = vmatpush1.bf16.msra.mxu0 %v2143
        %2248 = vmatprep.subr.bf16.mxu0 %v2148
        %2249 = vmatpush1.bf16.msra.mxu0 %v2147
        %2250 = vmatprep.subr.bf16.mxu0 0
        %2251 = vmatpush1.bf16.msra.mxu0 0
        %2252 = vmatprep.subr.bf16.mxu0 0
        %2253 = vmatpush1.bf16.msra.mxu0 0
        %2254 = vmatprep.subr.bf16.mxu0 0
        %2255 = vmatpush1.bf16.msra.mxu0 0
        %2256 = vmatprep.subr.bf16.mxu0 0
        %2257 = vmatpush1.bf16.msra.mxu0 0
        %2258 = vmatprep.subr.bf16.mxu0 0
        %2259 = vmatpush1.bf16.msra.mxu0 0
        %2260 = vmatprep.subr.bf16.mxu0 0
        %2261 = vmatpush1.bf16.msra.mxu0 0
        %2262 = vmatprep.subr.bf16.mxu0 0
        %2263 = vmatpush1.bf16.msra.mxu0 0
        %2264 = vmatprep.subr.bf16.mxu0 0
        %2265 = vmatpush1.bf16.msra.mxu0 0
        %2266 = vmatprep.mubr.bf16.mxu0 0
        %2267 = vmatmul.mubr.bf16.gmra.mrb[0].mxu0 %v1964
        %v2268 = vpop.f32.mrb[0].mxu0
        %v2269 = vadd.f32 %v2012, %v2268
        %v2270 = vpop.f32.mrb[0].mxu0
        %v2271 = vadd.f32 %v2016, %v2270
        %v2272 = vpop.f32.mrb[0].mxu0
        %v2273 = vadd.f32 %v2012, %v2272
        %v2274 = vpop.f32.mrb[0].mxu0
        %v2275 = vadd.f32 %v2016, %v2274
        %2276 = vmatprep.mubr.bf16.mxu0 0
        %2277 = vmatmul.mubr.bf16.gmra.mrb[0].mxu0 %v1965
        %v2278 = vpop.f32.mrb[0].mxu0
        %v2279 = vadd.f32 %v2012, %v2278
        %v2280 = vpop.f32.mrb[0].mxu0
        %v2281 = vadd.f32 %v2016, %v2280
        %v2282 = vpop.f32.mrb[0].mxu0
        %v2283 = vadd.f32 %v2012, %v2282
        %v2284 = vpop.f32.mrb[0].mxu0
        %v2285 = vadd.f32 %v2016, %v2284
        %2286 = vdwg.mxu0
        %2287 = vst [vmem:[#allocation6] sm:$0xff] %v2216
        %2288 = vst [vmem:[#allocation6 + $0x8] sm:$0xff] %v2218
        %2289 = vst [vmem:[#allocation6 + $0x10] sm:$0xff] %v2269
        %2290 = vst [vmem:[#allocation6 + $0x18] sm:$0xff] %v2271
        %2291 = vst [vmem:[#allocation6 + $0x20] sm:$0xff] %v2220
        %2292 = vst [vmem:[#allocation6 + $0x28] sm:$0xff] %v2222
        %2293 = vst [vmem:[#allocation6 + $0x30] sm:$0xff] %v2273
        %2294 = vst [vmem:[#allocation6 + $0x38] sm:$0xff] %v2275
        %2295 = vst [vmem:[#allocation6 + $0x40] sm:$0xff] %v2226
        %2296 = vst [vmem:[#allocation6 + $0x48] sm:$0xff] %v2228
        %2297 = vst [vmem:[#allocation6 + $0x50] sm:$0xff] %v2279
        %2298 = vst [vmem:[#allocation6 + $0x58] sm:$0xff] %v2281
        %2299 = vst [vmem:[#allocation6 + $0x60] sm:$0xff] %v2230
        %2300 = vst [vmem:[#allocation6 + $0x68] sm:$0xff] %v2232
        %2301 = vst [vmem:[#allocation6 + $0x70] sm:$0xff] %v2283
        %2302 = vst [vmem:[#allocation6 + $0x78] sm:$0xff] %v2285
        %s2303 = scalar_lea.vmem [#allocation2], 8
        %v2304 = vld [vmem:[%s2303] sm:$0xff]
        %s2305 = scalar_lea.vmem [#allocation3], 8
        %v2306 = vld [vmem:[%s2305] sm:$0xff]
        %v2307 = vld [vmem:[#allocation4] sm:$0xff]
        %v2308 = vld [vmem:[%s737] sm:$0xff]
        %v2309 = vld [vmem:[%s737 + $0x8] sm:$0xff]
        %v2310 = vld [vmem:[%s737 + $0x10] sm:$0xff]
        %v2311 = vld [vmem:[%s737 + $0x18] sm:$0xff]
        %v2312 = vpack.c.bf16 %v2304, %v2304
        %s2313 = scalar_lea.vmem [#allocation13], 256
        %v2314 = vld [vmem:[%s2313] sm:$0xff]
        %v2315 = vld [vmem:[%s2313 + $0x8] sm:$0xff]
        %v2316 = vld [vmem:[%s2313 + $0x10] sm:$0xff]
        %v2317 = vld [vmem:[%s2313 + $0x18] sm:$0xff]
        %v2318 = vld [vmem:[%s2313 + $0x20] sm:$0xff]
        %v2319 = vld [vmem:[%s2313 + $0x28] sm:$0xff]
        %v2320 = vld [vmem:[%s2313 + $0x30] sm:$0xff]
        %v2321 = vld [vmem:[%s2313 + $0x38] sm:$0xff]
        %v2322 = vld [vmem:[%s2313 + $0x40] sm:$0xff]
        %v2323 = vld [vmem:[%s2313 + $0x48] sm:$0xff]
        %v2324 = vld [vmem:[%s2313 + $0x50] sm:$0xff]
        %v2325 = vld [vmem:[%s2313 + $0x58] sm:$0xff]
        %v2326 = vld [vmem:[%s2313 + $0x60] sm:$0xff]
        %v2327 = vld [vmem:[%s2313 + $0x68] sm:$0xff]
        %v2328 = vld [vmem:[%s2313 + $0x70] sm:$0xff]
        %v2329 = vld [vmem:[%s2313 + $0x78] sm:$0xff]
        %v2330 = vld [vmem:[%s2313 + $0x80] sm:$0xff]
        %v2331 = vld [vmem:[%s2313 + $0x88] sm:$0xff]
        %v2332 = vld [vmem:[%s2313 + $0x90] sm:$0xff]
        %v2333 = vld [vmem:[%s2313 + $0x98] sm:$0xff]
        %v2334 = vld [vmem:[%s2313 + $0xa0] sm:$0xff]
        %v2335 = vld [vmem:[%s2313 + $0xa8] sm:$0xff]
        %v2336 = vld [vmem:[%s2313 + $0xb0] sm:$0xff]
        %v2337 = vld [vmem:[%s2313 + $0xb8] sm:$0xff]
        %v2338 = vld [vmem:[%s2313 + $0xc0] sm:$0xff]
        %v2339 = vld [vmem:[%s2313 + $0xc8] sm:$0xff]
        %v2340 = vld [vmem:[%s2313 + $0xd0] sm:$0xff]
        %v2341 = vld [vmem:[%s2313 + $0xd8] sm:$0xff]
        %v2342 = vld [vmem:[%s2313 + $0xe0] sm:$0xff]
        %v2343 = vld [vmem:[%s2313 + $0xe8] sm:$0xff]
        %v2344 = vld [vmem:[%s2313 + $0xf0] sm:$0xff]
        %v2345 = vld [vmem:[%s2313 + $0xf8] sm:$0xff]
        %v2378 = vunpack.c.l.b16 %v2314
        %v2379 = vunpack.c.h.b16 %v2314
        %v2380 = vunpack.c.l.b16 %v2315
        %v2381 = vunpack.c.h.b16 %v2315
        %v2382 = vunpack.c.l.b16 %v2316
        %v2383 = vunpack.c.h.b16 %v2316
        %v2384 = vunpack.c.l.b16 %v2317
        %v2385 = vunpack.c.h.b16 %v2317
        %v2386 = vunpack.c.l.b16 %v2318
        %v2387 = vunpack.c.h.b16 %v2318
        %v2388 = vunpack.c.l.b16 %v2319
        %v2389 = vunpack.c.h.b16 %v2319
        %v2390 = vunpack.c.l.b16 %v2320
        %v2391 = vunpack.c.h.b16 %v2320
        %v2392 = vunpack.c.l.b16 %v2321
        %v2393 = vunpack.c.h.b16 %v2321
        %v2394 = vunpack.c.l.b16 %v2322
        %v2395 = vunpack.c.h.b16 %v2322
        %v2396 = vunpack.c.l.b16 %v2323
        %v2397 = vunpack.c.h.b16 %v2323
        %v2398 = vunpack.c.l.b16 %v2324
        %v2399 = vunpack.c.h.b16 %v2324
        %v2400 = vunpack.c.l.b16 %v2325
        %v2401 = vunpack.c.h.b16 %v2325
        %v2402 = vunpack.c.l.b16 %v2326
        %v2403 = vunpack.c.h.b16 %v2326
        %v2404 = vunpack.c.l.b16 %v2327
        %v2405 = vunpack.c.h.b16 %v2327
        %v2406 = vunpack.c.l.b16 %v2328
        %v2407 = vunpack.c.h.b16 %v2328
        %v2408 = vunpack.c.l.b16 %v2329
        %v2409 = vunpack.c.h.b16 %v2329
        %v2410 = vunpack.c.l.b16 %v2330
        %v2411 = vunpack.c.h.b16 %v2330
        %v2412 = vunpack.c.l.b16 %v2331
        %v2413 = vunpack.c.h.b16 %v2331
        %v2414 = vunpack.c.l.b16 %v2332
        %v2415 = vunpack.c.h.b16 %v2332
        %v2416 = vunpack.c.l.b16 %v2333
        %v2417 = vunpack.c.h.b16 %v2333
        %v2418 = vunpack.c.l.b16 %v2334
        %v2419 = vunpack.c.h.b16 %v2334
        %v2420 = vunpack.c.l.b16 %v2335
        %v2421 = vunpack.c.h.b16 %v2335
        %v2422 = vunpack.c.l.b16 %v2336
        %v2423 = vunpack.c.h.b16 %v2336
        %v2424 = vunpack.c.l.b16 %v2337
        %v2425 = vunpack.c.h.b16 %v2337
        %v2426 = vunpack.c.l.b16 %v2338
        %v2427 = vunpack.c.h.b16 %v2338
        %v2428 = vunpack.c.l.b16 %v2339
        %v2429 = vunpack.c.h.b16 %v2339
        %v2430 = vunpack.c.l.b16 %v2340
        %v2431 = vunpack.c.h.b16 %v2340
        %v2432 = vunpack.c.l.b16 %v2341
        %v2433 = vunpack.c.h.b16 %v2341
        %v2434 = vunpack.c.l.b16 %v2342
        %v2435 = vunpack.c.h.b16 %v2342
        %v2436 = vunpack.c.l.b16 %v2343
        %v2437 = vunpack.c.h.b16 %v2343
        %v2438 = vunpack.c.l.b16 %v2344
        %v2439 = vunpack.c.h.b16 %v2344
        %v2440 = vunpack.c.l.b16 %v2345
        %v2441 = vunpack.c.h.b16 %v2345
        %v2442 = vpack.c.b16 %v2382, %v2378
        %v2443 = vpack.c.b16 %v2383, %v2379
        %v2444 = vpack.c.b16 %v2384, %v2380
        %v2445 = vpack.c.b16 %v2385, %v2381
        %v2446 = vpack.c.b16 %v2390, %v2386
        %v2447 = vpack.c.b16 %v2391, %v2387
        %v2448 = vpack.c.b16 %v2392, %v2388
        %v2449 = vpack.c.b16 %v2393, %v2389
        %v2450 = vpack.c.b16 %v2398, %v2394
        %v2451 = vpack.c.b16 %v2399, %v2395
        %v2452 = vpack.c.b16 %v2400, %v2396
        %v2453 = vpack.c.b16 %v2401, %v2397
        %v2454 = vpack.c.b16 %v2406, %v2402
        %v2455 = vpack.c.b16 %v2407, %v2403
        %v2456 = vpack.c.b16 %v2408, %v2404
        %v2457 = vpack.c.b16 %v2409, %v2405
        %v2458 = vpack.c.b16 %v2414, %v2410
        %v2459 = vpack.c.b16 %v2415, %v2411
        %v2460 = vpack.c.b16 %v2416, %v2412
        %v2461 = vpack.c.b16 %v2417, %v2413
        %v2462 = vpack.c.b16 %v2422, %v2418
        %v2463 = vpack.c.b16 %v2423, %v2419
        %v2464 = vpack.c.b16 %v2424, %v2420
        %v2465 = vpack.c.b16 %v2425, %v2421
        %v2466 = vpack.c.b16 %v2430, %v2426
        %v2467 = vpack.c.b16 %v2431, %v2427
        %v2468 = vpack.c.b16 %v2432, %v2428
        %v2469 = vpack.c.b16 %v2433, %v2429
        %v2470 = vpack.c.b16 %v2438, %v2434
        %v2471 = vpack.c.b16 %v2439, %v2435
        %v2472 = vpack.c.b16 %v2440, %v2436
        %v2473 = vpack.c.b16 %v2441, %v2437
        %2506 = vmatprep.subr.bf16.mxu0 %v2443
        %2507 = vmatpush1.bf16.msra.mxu0 %v2442
        %2508 = vmatprep.subr.bf16.mxu0 %v2447
        %2509 = vmatpush1.bf16.msra.mxu0 %v2446
        %2510 = vmatprep.subr.bf16.mxu0 %v2451
        %2511 = vmatpush1.bf16.msra.mxu0 %v2450
        %2512 = vmatprep.subr.bf16.mxu0 %v2455
        %2513 = vmatpush1.bf16.msra.mxu0 %v2454
        %2514 = vmatprep.subr.bf16.mxu0 %v2459
        %2515 = vmatpush1.bf16.msra.mxu0 %v2458
        %2516 = vmatprep.subr.bf16.mxu0 %v2463
        %2517 = vmatpush1.bf16.msra.mxu0 %v2462
        %2518 = vmatprep.subr.bf16.mxu0 %v2467
        %2519 = vmatpush1.bf16.msra.mxu0 %v2466
        %2520 = vmatprep.subr.bf16.mxu0 %v2471
        %2521 = vmatpush1.bf16.msra.mxu0 %v2470
        %2522 = vmatprep.subr.bf16.mxu0 0
        %2523 = vmatpush1.bf16.msra.mxu0 0
        %2524 = vmatprep.subr.bf16.mxu0 0
        %2525 = vmatpush1.bf16.msra.mxu0 0
        %2526 = vmatprep.subr.bf16.mxu0 0
        %2527 = vmatpush1.bf16.msra.mxu0 0
        %2528 = vmatprep.subr.bf16.mxu0 0
        %2529 = vmatpush1.bf16.msra.mxu0 0
        %2530 = vmatprep.subr.bf16.mxu0 0
        %2531 = vmatpush1.bf16.msra.mxu0 0
        %2532 = vmatprep.subr.bf16.mxu0 0
        %2533 = vmatpush1.bf16.msra.mxu0 0
        %2534 = vmatprep.subr.bf16.mxu0 0
        %2535 = vmatpush1.bf16.msra.mxu0 0
        %2536 = vmatprep.subr.bf16.mxu0 0
        %2537 = vmatpush1.bf16.msra.mxu0 0
        %2538 = vmatprep.mubr.bf16.mxu0 0
        %2539 = vmatmul.mubr.bf16.gmra.mrb[0].mxu0 %v2312
        %v2540 = vpop.f32.mrb[0].mxu0
        %v2541 = vadd.f32 0.0, %v2540
        %v2542 = vpop.f32.mrb[0].mxu0
        %v2543 = vadd.f32 0.0, %v2542
        %v2544 = vpop.f32.mrb[0].mxu0
        %v2545 = vpop.f32.mrb[0].mxu0
        %2546 = vdwg.mxu0
        %2547 = vmatprep.subr.bf16.mxu0 %v2445
        %2548 = vmatpush1.bf16.msra.mxu0 %v2444
        %2549 = vmatprep.subr.bf16.mxu0 %v2449
        %2550 = vmatpush1.bf16.msra.mxu0 %v2448
        %2551 = vmatprep.subr.bf16.mxu0 %v2453
        %2552 = vmatpush1.bf16.msra.mxu0 %v2452
        %2553 = vmatprep.subr.bf16.mxu0 %v2457
        %2554 = vmatpush1.bf16.msra.mxu0 %v2456
        %2555 = vmatprep.subr.bf16.mxu0 %v2461
        %2556 = vmatpush1.bf16.msra.mxu0 %v2460
        %2557 = vmatprep.subr.bf16.mxu0 %v2465
        %2558 = vmatpush1.bf16.msra.mxu0 %v2464
        %2559 = vmatprep.subr.bf16.mxu0 %v2469
        %2560 = vmatpush1.bf16.msra.mxu0 %v2468
        %2561 = vmatprep.subr.bf16.mxu0 %v2473
        %2562 = vmatpush1.bf16.msra.mxu0 %v2472
        %2563 = vmatprep.subr.bf16.mxu0 0
        %2564 = vmatpush1.bf16.msra.mxu0 0
        %2565 = vmatprep.subr.bf16.mxu0 0
        %2566 = vmatpush1.bf16.msra.mxu0 0
        %2567 = vmatprep.subr.bf16.mxu0 0
        %2568 = vmatpush1.bf16.msra.mxu0 0
        %2569 = vmatprep.subr.bf16.mxu0 0
        %2570 = vmatpush1.bf16.msra.mxu0 0
        %2571 = vmatprep.subr.bf16.mxu0 0
        %2572 = vmatpush1.bf16.msra.mxu0 0
        %2573 = vmatprep.subr.bf16.mxu0 0
        %2574 = vmatpush1.bf16.msra.mxu0 0
        %2575 = vmatprep.subr.bf16.mxu0 0
        %2576 = vmatpush1.bf16.msra.mxu0 0
        %2577 = vmatprep.subr.bf16.mxu0 0
        %2578 = vmatpush1.bf16.msra.mxu0 0
        %2579 = vmatprep.mubr.bf16.mxu0 0
        %2580 = vmatmul.mubr.bf16.gmra.mrb[0].mxu0 %v2312
        %v2581 = vpop.f32.mrb[0].mxu0
        %v2582 = vadd.f32 0.0, %v2581
        %v2583 = vpop.f32.mrb[0].mxu0
        %v2584 = vadd.f32 0.0, %v2583
        %v2585 = vpop.f32.mrb[0].mxu0
        %v2586 = vpop.f32.mrb[0].mxu0
        %2587 = vdwg.mxu0
        %v2588 = vadd.f32 %v2308, %v2541
        %v2589 = vadd.f32 %v2309, %v2543
        %v2590 = vadd.f32 %v2310, %v2582
        %v2591 = vadd.f32 %v2311, %v2584
        %v2592 = vmul.f32 %v2588, 0.5
        %v2593 = vtanh.pop %v2592
        %v2594 = vadd.f32 %v2593, 1.0
        %v2595 = vmul.f32 %v2594, 0.5
        %v2596 = vmul.f32 %v2589, 0.5
        %v2597 = vtanh.pop %v2596
        %v2598 = vadd.f32 %v2597, 1.0
        %v2599 = vmul.f32 %v2598, 0.5
        %v2600 = vtanh.pop %v2590
        %v2601 = vmul.f32 %v2591, 0.5
        %v2602 = vtanh.pop %v2601
        %v2603 = vadd.f32 %v2602, 1.0
        %v2604 = vmul.f32 %v2603, 0.5
        %v2605 = vmul.f32 %v2599, %v2306
        %v2606 = vmul.f32 %v2595, %v2600
        %v2607 = vadd.f32 %v2605, %v2606
        %v2608 = vtanh.pop %v2607
        %v2609 = vmul.f32 %v2604, %v2608
        %v2610 = vadd.f32 %v2307, %v2609
        %v2611 = vld [vmem:[%s1042] sm:$0xff]
        %v2612 = vld [vmem:[%s1042 + $0x8] sm:$0xff]
        %v2613 = vld [vmem:[%s1042 + $0x10] sm:$0xff]
        %v2614 = vld [vmem:[%s1042 + $0x18] sm:$0xff]
        %v2615 = vpack.c.bf16 %v2609, %v2609
        %2616 = vmatprep.subr.bf16.mxu0 %v2443
        %2617 = vmatpush1.bf16.msra.mxu0 %v2442
        %2618 = vmatprep.subr.bf16.mxu0 %v2447
        %2619 = vmatpush1.bf16.msra.mxu0 %v2446
        %2620 = vmatprep.subr.bf16.mxu0 %v2451
        %2621 = vmatpush1.bf16.msra.mxu0 %v2450
        %2622 = vmatprep.subr.bf16.mxu0 %v2455
        %2623 = vmatpush1.bf16.msra.mxu0 %v2454
        %2624 = vmatprep.subr.bf16.mxu0 %v2459
        %2625 = vmatpush1.bf16.msra.mxu0 %v2458
        %2626 = vmatprep.subr.bf16.mxu0 %v2463
        %2627 = vmatpush1.bf16.msra.mxu0 %v2462
        %2628 = vmatprep.subr.bf16.mxu0 %v2467
        %2629 = vmatpush1.bf16.msra.mxu0 %v2466
        %2630 = vmatprep.subr.bf16.mxu0 %v2471
        %2631 = vmatpush1.bf16.msra.mxu0 %v2470
        %2632 = vmatprep.subr.bf16.mxu0 0
        %2633 = vmatpush1.bf16.msra.mxu0 0
        %2634 = vmatprep.subr.bf16.mxu0 0
        %2635 = vmatpush1.bf16.msra.mxu0 0
        %2636 = vmatprep.subr.bf16.mxu0 0
        %2637 = vmatpush1.bf16.msra.mxu0 0
        %2638 = vmatprep.subr.bf16.mxu0 0
        %2639 = vmatpush1.bf16.msra.mxu0 0
        %2640 = vmatprep.subr.bf16.mxu0 0
        %2641 = vmatpush1.bf16.msra.mxu0 0
        %2642 = vmatprep.subr.bf16.mxu0 0
        %2643 = vmatpush1.bf16.msra.mxu0 0
        %2644 = vmatprep.subr.bf16.mxu0 0
        %2645 = vmatpush1.bf16.msra.mxu0 0
        %2646 = vmatprep.subr.bf16.mxu0 0
        %2647 = vmatpush1.bf16.msra.mxu0 0
        %2648 = vmatprep.mubr.bf16.mxu0 0
        %2649 = vmatmul.mubr.bf16.gmra.mrb[0].mxu0 %v2615
        %v2650 = vpop.f32.mrb[0].mxu0
        %v2651 = vadd.f32 0.0, %v2650
        %v2652 = vpop.f32.mrb[0].mxu0
        %v2653 = vadd.f32 0.0, %v2652
        %v2654 = vpop.f32.mrb[0].mxu0
        %v2655 = vpop.f32.mrb[0].mxu0
        %2656 = vdwg.mxu0
        %2657 = vmatprep.subr.bf16.mxu0 %v2445
        %2658 = vmatpush1.bf16.msra.mxu0 %v2444
        %2659 = vmatprep.subr.bf16.mxu0 %v2449
        %2660 = vmatpush1.bf16.msra.mxu0 %v2448
        %2661 = vmatprep.subr.bf16.mxu0 %v2453
        %2662 = vmatpush1.bf16.msra.mxu0 %v2452
        %2663 = vmatprep.subr.bf16.mxu0 %v2457
        %2664 = vmatpush1.bf16.msra.mxu0 %v2456
        %2665 = vmatprep.subr.bf16.mxu0 %v2461
        %2666 = vmatpush1.bf16.msra.mxu0 %v2460
        %2667 = vmatprep.subr.bf16.mxu0 %v2465
        %2668 = vmatpush1.bf16.msra.mxu0 %v2464
        %2669 = vmatprep.subr.bf16.mxu0 %v2469
        %2670 = vmatpush1.bf16.msra.mxu0 %v2468
        %2671 = vmatprep.subr.bf16.mxu0 %v2473
        %2672 = vmatpush1.bf16.msra.mxu0 %v2472
        %2673 = vmatprep.subr.bf16.mxu0 0
        %2674 = vmatpush1.bf16.msra.mxu0 0
        %2675 = vmatprep.subr.bf16.mxu0 0
        %2676 = vmatpush1.bf16.msra.mxu0 0
        %2677 = vmatprep.subr.bf16.mxu0 0
        %2678 = vmatpush1.bf16.msra.mxu0 0
        %2679 = vmatprep.subr.bf16.mxu0 0
        %2680 = vmatpush1.bf16.msra.mxu0 0
        %2681 = vmatprep.subr.bf16.mxu0 0
        %2682 = vmatpush1.bf16.msra.mxu0 0
        %2683 = vmatprep.subr.bf16.mxu0 0
        %2684 = vmatpush1.bf16.msra.mxu0 0
        %2685 = vmatprep.subr.bf16.mxu0 0
        %2686 = vmatpush1.bf16.msra.mxu0 0
        %2687 = vmatprep.subr.bf16.mxu0 0
        %2688 = vmatpush1.bf16.msra.mxu0 0
        %2689 = vmatprep.mubr.bf16.mxu0 0
        %2690 = vmatmul.mubr.bf16.gmra.mrb[0].mxu0 %v2615
        %v2691 = vpop.f32.mrb[0].mxu0
        %v2692 = vadd.f32 0.0, %v2691
        %v2693 = vpop.f32.mrb[0].mxu0
        %v2694 = vadd.f32 0.0, %v2693
        %v2695 = vpop.f32.mrb[0].mxu0
        %v2696 = vpop.f32.mrb[0].mxu0
        %2697 = vdwg.mxu0
        %v2698 = vadd.f32 %v2611, %v2651
        %v2699 = vadd.f32 %v2612, %v2653
        %v2700 = vadd.f32 %v2613, %v2692
        %v2701 = vadd.f32 %v2614, %v2694
        %v2702 = vmul.f32 %v2698, 0.5
        %v2703 = vtanh.pop %v2702
        %v2704 = vadd.f32 %v2703, 1.0
        %v2705 = vmul.f32 %v2704, 0.5
        %v2706 = vmul.f32 %v2699, 0.5
        %v2707 = vtanh.pop %v2706
        %v2708 = vadd.f32 %v2707, 1.0
        %v2709 = vmul.f32 %v2708, 0.5
        %v2710 = vtanh.pop %v2700
        %v2711 = vmul.f32 %v2701, 0.5
        %v2712 = vtanh.pop %v2711
        %v2713 = vadd.f32 %v2712, 1.0
        %v2714 = vmul.f32 %v2713, 0.5
        %v2715 = vmul.f32 %v2709, %v2607
        %v2716 = vmul.f32 %v2705, %v2710
        %v2717 = vadd.f32 %v2715, %v2716
        %v2718 = vtanh.pop %v2717
        %v2719 = vmul.f32 %v2714, %v2718
        %v2720 = vadd.f32 %v2610, %v2719
        %v2721 = vld [vmem:[%s1348] sm:$0xff]
        %v2722 = vld [vmem:[%s1348 + $0x8] sm:$0xff]
        %v2723 = vld [vmem:[%s1348 + $0x10] sm:$0xff]
        %v2724 = vld [vmem:[%s1348 + $0x18] sm:$0xff]
        %v2725 = vpack.c.bf16 %v2719, %v2719
        %2726 = vmatprep.subr.bf16.mxu0 %v2443
        %2727 = vmatpush1.bf16.msra.mxu0 %v2442
        %2728 = vmatprep.subr.bf16.mxu0 %v2447
        %2729 = vmatpush1.bf16.msra.mxu0 %v2446
        %2730 = vmatprep.subr.bf16.mxu0 %v2451
        %2731 = vmatpush1.bf16.msra.mxu0 %v2450
        %2732 = vmatprep.subr.bf16.mxu0 %v2455
        %2733 = vmatpush1.bf16.msra.mxu0 %v2454
        %2734 = vmatprep.subr.bf16.mxu0 %v2459
        %2735 = vmatpush1.bf16.msra.mxu0 %v2458
        %2736 = vmatprep.subr.bf16.mxu0 %v2463
        %2737 = vmatpush1.bf16.msra.mxu0 %v2462
        %2738 = vmatprep.subr.bf16.mxu0 %v2467
        %2739 = vmatpush1.bf16.msra.mxu0 %v2466
        %2740 = vmatprep.subr.bf16.mxu0 %v2471
        %2741 = vmatpush1.bf16.msra.mxu0 %v2470
        %2742 = vmatprep.subr.bf16.mxu0 0
        %2743 = vmatpush1.bf16.msra.mxu0 0
        %2744 = vmatprep.subr.bf16.mxu0 0
        %2745 = vmatpush1.bf16.msra.mxu0 0
        %2746 = vmatprep.subr.bf16.mxu0 0
        %2747 = vmatpush1.bf16.msra.mxu0 0
        %2748 = vmatprep.subr.bf16.mxu0 0
        %2749 = vmatpush1.bf16.msra.mxu0 0
        %2750 = vmatprep.subr.bf16.mxu0 0
        %2751 = vmatpush1.bf16.msra.mxu0 0
        %2752 = vmatprep.subr.bf16.mxu0 0
        %2753 = vmatpush1.bf16.msra.mxu0 0
        %2754 = vmatprep.subr.bf16.mxu0 0
        %2755 = vmatpush1.bf16.msra.mxu0 0
        %2756 = vmatprep.subr.bf16.mxu0 0
        %2757 = vmatpush1.bf16.msra.mxu0 0
        %2758 = vmatprep.mubr.bf16.mxu0 0
        %2759 = vmatmul.mubr.bf16.gmra.mrb[0].mxu0 %v2725
        %v2760 = vpop.f32.mrb[0].mxu0
        %v2761 = vadd.f32 0.0, %v2760
        %v2762 = vpop.f32.mrb[0].mxu0
        %v2763 = vadd.f32 0.0, %v2762
        %v2764 = vpop.f32.mrb[0].mxu0
        %v2765 = vpop.f32.mrb[0].mxu0
        %2766 = vdwg.mxu0
        %2767 = vmatprep.subr.bf16.mxu0 %v2445
        %2768 = vmatpush1.bf16.msra.mxu0 %v2444
        %2769 = vmatprep.subr.bf16.mxu0 %v2449
        %2770 = vmatpush1.bf16.msra.mxu0 %v2448
        %2771 = vmatprep.subr.bf16.mxu0 %v2453
        %2772 = vmatpush1.bf16.msra.mxu0 %v2452
        %2773 = vmatprep.subr.bf16.mxu0 %v2457
        %2774 = vmatpush1.bf16.msra.mxu0 %v2456
        %2775 = vmatprep.subr.bf16.mxu0 %v2461
        %2776 = vmatpush1.bf16.msra.mxu0 %v2460
        %2777 = vmatprep.subr.bf16.mxu0 %v2465
        %2778 = vmatpush1.bf16.msra.mxu0 %v2464
        %2779 = vmatprep.subr.bf16.mxu0 %v2469
        %2780 = vmatpush1.bf16.msra.mxu0 %v2468
        %2781 = vmatprep.subr.bf16.mxu0 %v2473
        %2782 = vmatpush1.bf16.msra.mxu0 %v2472
        %2783 = vmatprep.subr.bf16.mxu0 0
        %2784 = vmatpush1.bf16.msra.mxu0 0
        %2785 = vmatprep.subr.bf16.mxu0 0
        %2786 = vmatpush1.bf16.msra.mxu0 0
        %2787 = vmatprep.subr.bf16.mxu0 0
        %2788 = vmatpush1.bf16.msra.mxu0 0
        %2789 = vmatprep.subr.bf16.mxu0 0
        %2790 = vmatpush1.bf16.msra.mxu0 0
        %2791 = vmatprep.subr.bf16.mxu0 0
        %2792 = vmatpush1.bf16.msra.mxu0 0
        %2793 = vmatprep.subr.bf16.mxu0 0
        %2794 = vmatpush1.bf16.msra.mxu0 0
        %2795 = vmatprep.subr.bf16.mxu0 0
        %2796 = vmatpush1.bf16.msra.mxu0 0
        %2797 = vmatprep.subr.bf16.mxu0 0
        %2798 = vmatpush1.bf16.msra.mxu0 0
        %2799 = vmatprep.mubr.bf16.mxu0 0
        %2800 = vmatmul.mubr.bf16.gmra.mrb[0].mxu0 %v2725
        %v2801 = vpop.f32.mrb[0].mxu0
        %v2802 = vadd.f32 0.0, %v2801
        %v2803 = vpop.f32.mrb[0].mxu0
        %v2804 = vadd.f32 0.0, %v2803
        %v2805 = vpop.f32.mrb[0].mxu0
        %v2806 = vpop.f32.mrb[0].mxu0
        %2807 = vdwg.mxu0
        %v2808 = vadd.f32 %v2721, %v2761
        %v2809 = vadd.f32 %v2722, %v2763
        %v2810 = vadd.f32 %v2723, %v2802
        %v2811 = vadd.f32 %v2724, %v2804
        %v2812 = vmul.f32 %v2808, 0.5
        %v2813 = vtanh.pop %v2812
        %v2814 = vadd.f32 %v2813, 1.0
        %v2815 = vmul.f32 %v2814, 0.5
        %v2816 = vmul.f32 %v2809, 0.5
        %v2817 = vtanh.pop %v2816
        %v2818 = vadd.f32 %v2817, 1.0
        %v2819 = vmul.f32 %v2818, 0.5
        %v2820 = vtanh.pop %v2810
        %v2821 = vmul.f32 %v2811, 0.5
        %v2822 = vtanh.pop %v2821
        %v2823 = vadd.f32 %v2822, 1.0
        %v2824 = vmul.f32 %v2823, 0.5
        %v2825 = vmul.f32 %v2819, %v2717
        %v2826 = vmul.f32 %v2815, %v2820
        %v2827 = vadd.f32 %v2825, %v2826
        %v2828 = vtanh.pop %v2827
        %v2829 = vmul.f32 %v2824, %v2828
        %v2830 = vadd.f32 %v2720, %v2829
        %v2831 = vld [vmem:[%s1654] sm:$0xff]
        %v2832 = vld [vmem:[%s1654 + $0x8] sm:$0xff]
        %v2833 = vld [vmem:[%s1654 + $0x10] sm:$0xff]
        %v2834 = vld [vmem:[%s1654 + $0x18] sm:$0xff]
        %v2835 = vpack.c.bf16 %v2829, %v2829
        %2836 = vmatprep.subr.bf16.mxu0 %v2443
        %2837 = vmatpush1.bf16.msra.mxu0 %v2442
        %2838 = vmatprep.subr.bf16.mxu0 %v2447
        %2839 = vmatpush1.bf16.msra.mxu0 %v2446
        %2840 = vmatprep.subr.bf16.mxu0 %v2451
        %2841 = vmatpush1.bf16.msra.mxu0 %v2450
        %2842 = vmatprep.subr.bf16.mxu0 %v2455
        %2843 = vmatpush1.bf16.msra.mxu0 %v2454
        %2844 = vmatprep.subr.bf16.mxu0 %v2459
        %2845 = vmatpush1.bf16.msra.mxu0 %v2458
        %2846 = vmatprep.subr.bf16.mxu0 %v2463
        %2847 = vmatpush1.bf16.msra.mxu0 %v2462
        %2848 = vmatprep.subr.bf16.mxu0 %v2467
        %2849 = vmatpush1.bf16.msra.mxu0 %v2466
        %2850 = vmatprep.subr.bf16.mxu0 %v2471
        %2851 = vmatpush1.bf16.msra.mxu0 %v2470
        %2852 = vmatprep.subr.bf16.mxu0 0
        %2853 = vmatpush1.bf16.msra.mxu0 0
        %2854 = vmatprep.subr.bf16.mxu0 0
        %2855 = vmatpush1.bf16.msra.mxu0 0
        %2856 = vmatprep.subr.bf16.mxu0 0
        %2857 = vmatpush1.bf16.msra.mxu0 0
        %2858 = vmatprep.subr.bf16.mxu0 0
        %2859 = vmatpush1.bf16.msra.mxu0 0
        %2860 = vmatprep.subr.bf16.mxu0 0
        %2861 = vmatpush1.bf16.msra.mxu0 0
        %2862 = vmatprep.subr.bf16.mxu0 0
        %2863 = vmatpush1.bf16.msra.mxu0 0
        %2864 = vmatprep.subr.bf16.mxu0 0
        %2865 = vmatpush1.bf16.msra.mxu0 0
        %2866 = vmatprep.subr.bf16.mxu0 0
        %2867 = vmatpush1.bf16.msra.mxu0 0
        %2868 = vmatprep.mubr.bf16.mxu0 0
        %2869 = vmatmul.mubr.bf16.gmra.mrb[0].mxu0 %v2835
        %v2870 = vpop.f32.mrb[0].mxu0
        %v2871 = vadd.f32 0.0, %v2870
        %v2872 = vpop.f32.mrb[0].mxu0
        %v2873 = vadd.f32 0.0, %v2872
        %v2874 = vpop.f32.mrb[0].mxu0
        %v2875 = vpop.f32.mrb[0].mxu0
        %2876 = vdwg.mxu0
        %2877 = vmatprep.subr.bf16.mxu0 %v2445
        %2878 = vmatpush1.bf16.msra.mxu0 %v2444
        %2879 = vmatprep.subr.bf16.mxu0 %v2449
        %2880 = vmatpush1.bf16.msra.mxu0 %v2448
        %2881 = vmatprep.subr.bf16.mxu0 %v2453
        %2882 = vmatpush1.bf16.msra.mxu0 %v2452
        %2883 = vmatprep.subr.bf16.mxu0 %v2457
        %2884 = vmatpush1.bf16.msra.mxu0 %v2456
        %2885 = vmatprep.subr.bf16.mxu0 %v2461
        %2886 = vmatpush1.bf16.msra.mxu0 %v2460
        %2887 = vmatprep.subr.bf16.mxu0 %v2465
        %2888 = vmatpush1.bf16.msra.mxu0 %v2464
        %2889 = vmatprep.subr.bf16.mxu0 %v2469
        %2890 = vmatpush1.bf16.msra.mxu0 %v2468
        %2891 = vmatprep.subr.bf16.mxu0 %v2473
        %2892 = vmatpush1.bf16.msra.mxu0 %v2472
        %2893 = vmatprep.subr.bf16.mxu0 0
        %2894 = vmatpush1.bf16.msra.mxu0 0
        %2895 = vmatprep.subr.bf16.mxu0 0
        %2896 = vmatpush1.bf16.msra.mxu0 0
        %2897 = vmatprep.subr.bf16.mxu0 0
        %2898 = vmatpush1.bf16.msra.mxu0 0
        %2899 = vmatprep.subr.bf16.mxu0 0
        %2900 = vmatpush1.bf16.msra.mxu0 0
        %2901 = vmatprep.subr.bf16.mxu0 0
        %2902 = vmatpush1.bf16.msra.mxu0 0
        %2903 = vmatprep.subr.bf16.mxu0 0
        %2904 = vmatpush1.bf16.msra.mxu0 0
        %2905 = vmatprep.subr.bf16.mxu0 0
        %2906 = vmatpush1.bf16.msra.mxu0 0
        %2907 = vmatprep.subr.bf16.mxu0 0
        %2908 = vmatpush1.bf16.msra.mxu0 0
        %2909 = vmatprep.mubr.bf16.mxu0 0
        %2910 = vmatmul.mubr.bf16.gmra.mrb[0].mxu0 %v2835
        %v2911 = vpop.f32.mrb[0].mxu0
        %v2912 = vadd.f32 0.0, %v2911
        %v2913 = vpop.f32.mrb[0].mxu0
        %v2914 = vadd.f32 0.0, %v2913
        %v2915 = vpop.f32.mrb[0].mxu0
        %v2916 = vpop.f32.mrb[0].mxu0
        %2917 = vdwg.mxu0
        %v2918 = vadd.f32 %v2831, %v2871
        %v2919 = vadd.f32 %v2832, %v2873
        %v2920 = vadd.f32 %v2833, %v2912
        %v2921 = vadd.f32 %v2834, %v2914
        %v2922 = vmul.f32 %v2918, 0.5
        %v2923 = vtanh.pop %v2922
        %v2924 = vadd.f32 %v2923, 1.0
        %v2925 = vmul.f32 %v2924, 0.5
        %v2926 = vmul.f32 %v2919, 0.5
        %v2927 = vtanh.pop %v2926
        %v2928 = vadd.f32 %v2927, 1.0
        %v2929 = vmul.f32 %v2928, 0.5
        %v2930 = vtanh.pop %v2920
        %v2931 = vmul.f32 %v2921, 0.5
        %v2932 = vtanh.pop %v2931
        %v2933 = vadd.f32 %v2932, 1.0
        %v2934 = vmul.f32 %v2933, 0.5
        %v2935 = vmul.f32 %v2929, %v2827
        %v2936 = vmul.f32 %v2925, %v2930
        %v2937 = vadd.f32 %v2935, %v2936
        %v2938 = vtanh.pop %v2937
        %v2939 = vmul.f32 %v2934, %v2938
        %v2940 = vadd.f32 %v2830, %v2939
        %2941 = vst [vmem:[#allocation4] sm:$0xff] %v2940
        %2942 = vst [vmem:[%s2303] sm:$0xff] %v2939
        %2943 = vst [vmem:[%s2305] sm:$0xff] %v2937
        %p2944 = scmp.eq.s32.totalorder %s25, 1
        // Predicated region
        $region81: #{tpu_custom_call.1} parent=47 // pred_check
          %p2945 = pneg %p2944
        $region82: #{tpu_custom_call.1} parent=47 // pred_check_branch
          %2947 = sbr.rel (%p2945) target = $region84
        $region83: #{tpu_custom_call.1} parent=47 // pred_region
          %v2948 = vld [vmem:[#allocation4] sm:$0xff]
          %v2949 = vmul.f32 %v2948, 0.125
          %v2950 = vld [vmem:[#allocation16] sm:$0xff]
          %v2951 = vld [vmem:[#allocation16 + $0x8] sm:$0xff]
          %v2952 = vld [vmem:[#allocation16 + $0x10] sm:$0xff]
          %v2953 = vld [vmem:[#allocation16 + $0x18] sm:$0xff]
          %v2954 = vld [vmem:[#allocation16 + $0x20] sm:$0xff]
          %v2955 = vld [vmem:[#allocation16 + $0x28] sm:$0xff]
          %v2956 = vld [vmem:[#allocation16 + $0x30] sm:$0xff]
          %v2957 = vld [vmem:[#allocation16 + $0x38] sm:$0xff]
          %v2958 = vld [vmem:[#allocation16 + $0x40] sm:$0xff]
          %v2959 = vld [vmem:[#allocation16 + $0x48] sm:$0xff]
          %v2960 = vld [vmem:[#allocation16 + $0x50] sm:$0xff]
          %v2961 = vld [vmem:[#allocation16 + $0x58] sm:$0xff]
          %v2962 = vld [vmem:[#allocation16 + $0x60] sm:$0xff]
          %v2963 = vld [vmem:[#allocation16 + $0x68] sm:$0xff]
          %v2964 = vld [vmem:[#allocation16 + $0x70] sm:$0xff]
          %v2965 = vld [vmem:[#allocation16 + $0x78] sm:$0xff]
          %v2966 = vld [vmem:[#allocation18] sm:$0x1]
          %v2968 = vlaneseq
          %v2969 = vshrl.u32 %v2968, 7
          %v2970 = vsub.s32 0, %v2969
          %v2971 = vrot.slane %v2966, %v2970
          %2973 = vmatprep.subr.mxu0 0.0
          %2974 = vmatpush1.msra.mxu0 %v2950
          %2975 = vmatprep.subr.mxu0 0.0
          %2976 = vmatpush1.msra.mxu0 %v2951
          %2977 = vmatprep.subr.mxu0 0.0
          %2978 = vmatpush1.msra.mxu0 %v2952
          %2979 = vmatprep.subr.mxu0 0.0
          %2980 = vmatpush1.msra.mxu0 %v2953
          %2981 = vmatprep.subr.mxu0 0.0
          %2982 = vmatpush1.msra.mxu0 %v2954
          %2983 = vmatprep.subr.mxu0 0.0
          %2984 = vmatpush1.msra.mxu0 %v2955
          %2985 = vmatprep.subr.mxu0 0.0
          %2986 = vmatpush1.msra.mxu0 %v2956
          %2987 = vmatprep.subr.mxu0 0.0
          %2988 = vmatpush1.msra.mxu0 %v2957
          %2989 = vmatprep.subr.mxu0 0.0
          %2990 = vmatpush1.msra.mxu0 %v2958
          %2991 = vmatprep.subr.mxu0 0.0
          %2992 = vmatpush1.msra.mxu0 %v2959
          %2993 = vmatprep.subr.mxu0 0.0
          %2994 = vmatpush1.msra.mxu0 %v2960
          %2995 = vmatprep.subr.mxu0 0.0
          %2996 = vmatpush1.msra.mxu0 %v2961
          %2997 = vmatprep.subr.mxu0 0.0
          %2998 = vmatpush1.msra.mxu0 %v2962
          %2999 = vmatprep.subr.mxu0 0.0
          %3000 = vmatpush1.msra.mxu0 %v2963
          %3001 = vmatprep.subr.mxu0 0.0
          %3002 = vmatpush1.msra.mxu0 %v2964
          %3003 = vmatprep.subr.mxu0 0.0
          %3004 = vmatpush1.msra.mxu0 %v2965
          %3005 = vmatprep.subr.mxu0 0.0
          %3006 = vmatpush1.msra.mxu0 0.0
          %3007 = vmatprep.subr.mxu0 0.0
          %3008 = vmatpush1.msra.mxu0 0.0
          %3009 = vmatprep.subr.mxu0 0.0
          %3010 = vmatpush1.msra.mxu0 0.0
          %3011 = vmatprep.subr.mxu0 0.0
          %3012 = vmatpush1.msra.mxu0 0.0
          %3013 = vmatprep.subr.mxu0 0.0
          %3014 = vmatpush1.msra.mxu0 0.0
          %3015 = vmatprep.subr.mxu0 0.0
          %3016 = vmatpush1.msra.mxu0 0.0
          %3017 = vmatprep.subr.mxu0 0.0
          %3018 = vmatpush1.msra.mxu0 0.0
          %3019 = vmatprep.subr.mxu0 0.0
          %3020 = vmatpush1.msra.mxu0 0.0
          %3021 = vmatprep.subr.mxu0 0.0
          %3022 = vmatpush1.msra.mxu0 0.0
          %3023 = vmatprep.subr.mxu0 0.0
          %3024 = vmatpush1.msra.mxu0 0.0
          %3025 = vmatprep.subr.mxu0 0.0
          %3026 = vmatpush1.msra.mxu0 0.0
          %3027 = vmatprep.subr.mxu0 0.0
          %3028 = vmatpush1.msra.mxu0 0.0
          %3029 = vmatprep.subr.mxu0 0.0
          %3030 = vmatpush1.msra.mxu0 0.0
          %3031 = vmatprep.subr.mxu0 0.0
          %3032 = vmatpush1.msra.mxu0 0.0
          %3033 = vmatprep.subr.mxu0 0.0
          %3034 = vmatpush1.msra.mxu0 0.0
          %3035 = vmatprep.subr.mxu0 0.0
          %3036 = vmatpush1.msra.mxu0 0.0
          %3037 = vmatprep.mubr.f32.mxu0 0.0
          %3038 = vmatmul.mubr.f32.gmra.mrb[0].mxu0 %v2949
          %v3039 = vpop.f32.mrb[0].mxu0
          %v3040 = vadd.f32 %v2971, %v3039
          %v3041 = vpop.f32.mrb[0].mxu0
          %3042 = vdwg.mxu0
          %vm3043 = vcmask 31744
          %3044 = vst.msk [vmem:[#allocation19] sm:$0xff] %vm3043, %v3040
        $region84: #{tpu_custom_call.1} parent=47 // pred_fallthru
          _
        // Predicated region
        $region85: #{tpu_custom_call.1} parent=47 // pred_check
          %p3045 = pneg %p190
        $region86: #{tpu_custom_call.1} parent=47 // pred_check_branch
          %3047 = sbr.rel (%p3045) target = $region88
        $region87: #{tpu_custom_call.1} parent=47 // pred_region
          %s3049 = ssub.s32 128, 128
          %3050 = vsyncadd [#allocation9], %s3049
          %s3052 = sshll.u32 [#allocation19], 4
          %s3053 = int_to_ptr.vmem [resolvable:$true] %s3052
          %3055 = dma.vmem_to_hbm [thread:$0]  %s3053, 128, %s7, [#allocation9]
        $region88: #{tpu_custom_call.1} parent=47 // pred_fallthru
          _
        // Predicated region
        $region89: #{tpu_custom_call.1} parent=47 // pred_check
          %p3056 = pneg %p190
        $region90: #{tpu_custom_call.1} parent=47 // pred_check_branch
          %3058 = sbr.rel (%p3056) target = $region92
        $region91: #{tpu_custom_call.1} parent=47 // pred_region
          %3059 = dma.done [#allocation9], 128
        $region92: #{tpu_custom_call.1} parent=47 // pred_fallthru
          _
      $region48: #{tpu_custom_call.1} parent=5 // pred_fallthru
        _
      %p3060 = scmp.le.s32.totalorder 2, %s20
      // Predicated region
      $region93: #{tpu_custom_call.1} parent=5 // pred_check
        %p3061 = pneg %p3060
      $region94: #{tpu_custom_call.1} parent=5 // pred_check_branch
        %3063 = sbr.rel (%p3061) target = $region96
      $region95: #{tpu_custom_call.1} parent=5 // pred_region
        %s3064 = ssub.s32 %s20, 2
      $region96: #{tpu_custom_call.1} parent=5 // pred_fallthru
        _
    $region6: #{tpu_custom_call.1} parent=1 // loop_footer
      %s24 = sadd.s32 1, %s20
    $region7: #{tpu_custom_call.1} parent=1 // loop_footer_branch
      %19 = sbr.rel target = $region3
    $region8: #{tpu_custom_call.1} parent=1 // loop_exit
      _
    %3065 = vsyncpa [#allocation8], 1
    %s3066 = scalar_lea.sflag [#allocation8], 1
    %3067 = vsyncpa %s3066, 1
    %3068 = vsyncpa [#allocation11], 1
    %3069 = vsyncpa [#allocation14], 1
    %3070 = vsyncpa [#allocation17], 1
    %3071 = vsyncpa [#allocation9], 1
    %s3072 = scalar_lea.sflag [#allocation9], 1
    %3073 = vsyncpa %s3072, 1

</llo_original>
